<compile_context>
chip_gen: v6e
topology: v6e:2x2x1
jax: 0.10.0
libtpu: 0.0.40
codegen_flags: <defaults>
</compile_context>

<pallas_src>
import numpy as np

import jax
import jax.numpy as jnp
from jax.experimental import pallas as pl
from jax.experimental.pallas import tpu as pltpu

KSIZE = 5
PAD = 2
C_OUT = 30
THRESHOLD = 3.0


# ----------------------------------------------------------------------------
# Fixed SRM filter bank (the module's `all_normalized_hpf_list`, 30 filters).
# TODO(synk): reconstructed from the standard SRM/YeNet bank (1st/2nd/3rd-order
# residuals, SQUARE3x3, SQUARE5x5, EDGE3x3, EDGE5x5 with q = 1/2/3/4/12);
# verify exact ordering/values against the original `all_normalized_hpf_list`.
# ----------------------------------------------------------------------------
def make_hpf_weights():
    filters = []
    shifts = [(-1, -1), (-1, 0), (-1, 1), (0, -1), (0, 1), (1, -1), (1, 0), (1, 1)]

    # 8 first-order residuals (neighbour - centre), normalization 1.
    for dy, dx in shifts:
        k = np.zeros((3, 3), np.float64)
        k[1, 1] = -1.0
        k[1 + dy, 1 + dx] = 1.0
        filters.append(k)

    # 4 second-order residuals [1, -2, 1], normalization 2.
    for a, b in [((0, -1), (0, 1)), ((-1, 0), (1, 0)),
                 ((-1, -1), (1, 1)), ((-1, 1), (1, -1))]:
        k = np.zeros((3, 3), np.float64)
        k[1, 1] = -2.0
        k[1 + a[0], 1 + a[1]] = 1.0
        k[1 + b[0], 1 + b[1]] = 1.0
        filters.append(k / 2.0)

    # 8 third-order residuals [1, -3, 3, -1] along 8 directions, normalization 3.
    for dy, dx in shifts:
        k = np.zeros((5, 5), np.float64)
        k[2, 2] = -3.0
        k[2 - dy, 2 - dx] = 1.0
        k[2 + dy, 2 + dx] = 3.0
        k[2 + 2 * dy, 2 + 2 * dx] = -1.0
        filters.append(k / 3.0)

    # SQUARE 3x3 ("KB"), normalization 4.
    sq3 = np.array([[-1., 2., -1.],
                    [2., -4., 2.],
                    [-1., 2., -1.]]) / 4.0
    filters.append(sq3)

    # SQUARE 5x5, normalization 12.
    sq5 = np.array([[-1., 2., -2., 2., -1.],
                    [2., -6., 8., -6., 2.],
                    [-2., 8., -12., 8., -2.],
                    [2., -6., 8., -6., 2.],
                    [-1., 2., -2., 2., -1.]]) / 12.0
    filters.append(sq5)

    # 4 EDGE 3x3 (KB with one half zeroed), normalization 4.
    e3 = np.array([[-1., 2., -1.],
                   [2., -4., 2.],
                   [0., 0., 0.]]) / 4.0
    for r in range(4):
        filters.append(np.rot90(e3, r))

    # 4 EDGE 5x5, normalization 12.
    e5 = np.array([[-1., 2., -2., 2., -1.],
                   [2., -6., 8., -6., 2.],
                   [-2., 8., -12., 8., -2.],
                   [0., 0., 0., 0., 0.],
                   [0., 0., 0., 0., 0.]]) / 12.0
    for r in range(4):
        filters.append(np.rot90(e5, r))

    # Pad 3x3 filters to 5x5 (exactly what HPF.__init__ does) and stack (30,1,5,5).
    padded = []
    for k in filters:
        if k.shape[0] == 3:
            k = np.pad(k, ((1, 1), (1, 1)), mode="constant")
        padded.append(np.ascontiguousarray(k))
    w = np.stack(padded).astype(np.float32).reshape(C_OUT, 1, KSIZE, KSIZE)
    return w


# ----------------------------------------------------------------------------
# Kernel construction: taps are baked as Python float constants.
# ----------------------------------------------------------------------------
def _build_tap_table(w_np):
    """Per-channel list of (patch_index, weight) for non-zero taps + the set of
    patch indices referenced by any channel."""
    taps = []
    needed = set()
    for c in range(C_OUT):
        lst = []
        for dy in range(KSIZE):
            for dx in range(KSIZE):
                w = float(w_np[c, dy, dx])
                if w != 0.0:
                    k = dy * KSIZE + dx
                    lst.append((k, w))
                    needed.add(k)
        taps.append(lst)
    needed = sorted(needed)
    slot_of = {k: i for i, k in enumerate(needed)}
    return taps, needed, slot_of


def _make_hpf_kernel(w_np, tH, W):
    """Returns (kernel_fn, n_patches) with the fixed taps constant-folded."""
    taps, needed, slot_of = _build_tap_table(w_np)
    n_patches = max(len(needed), 1)

    # Group needed patches by dy so each (tH, Wp) halo row-window is loaded once.
    by_dy = {}
    for k in needed:
        dy, dx = divmod(k, KSIZE)
        by_dy.setdefault(dy, []).append((k, dx))

    def kernel(x_ref, o_ref, patch_ref):
        # x_ref:     (H+4, W+4)      full padded single-channel image (VMEM)
        # o_ref:     (C_OUT, tH, W)  NCHW output tile                 (VMEM)
        # patch_ref: (n_patches, tH, W) shifted-patch scratch         (VMEM)
        row0 = pl.program_id(1) * tH
        if tH % 8 == 0:
            row0 = pl.multiple_of(row0, 8)

        # Stage the lane/sublane-shifted patches once; all later reads are
        # aligned (tH, W) loads shared by every output channel.
        for dy, items in by_dy.items():
            rows = x_ref[pl.ds(row0 + dy, tH), :]          # (tH, W + 4)
            for k, dx in items:
                patch_ref[slot_of[k]] = rows[:, dx:dx + W]

        # Constant-folded sparse MAC per channel: zero taps skipped at trace
        # time, +/-1 taps are add/sub only (no f32 FMA on the VPU, so every
        # avoided multiply is a saved VALU slot).  Fused TLU clamp on store.
        for c in range(C_OUT):
            lst = taps[c]
            if not lst:
                o_ref[c] = jnp.zeros((tH, W), jnp.float32)
                continue
            k0, w0 = lst[0]
            p0 = patch_ref[slot_of[k0]]
            if w0 == 1.0:
                acc = p0
            elif w0 == -1.0:
                acc = -p0
            else:
                acc = w0 * p0
            for k, w in lst[1:]:
                p = patch_ref[slot_of[k]]
                if w == 1.0:
                    acc = acc + p
                elif w == -1.0:
                    acc = acc - p
                else:
                    acc = acc + w * p
            o_ref[c] = jnp.clip(acc, -THRESHOLD, THRESHOLD)

    return kernel, n_patches


def _choose_tile_h(H, W, n_patches, N):
    """Largest multiple-of-8 divisor of H whose output block stays <= ~4 MiB and
    whose total VMEM estimate (2x out block + patch scratch + 2x padded input)
    stays <= ~24 MiB, so it also fits v7x's smaller scoped VMEM.  Mild megacore
    preference for an even N * n_t when N is odd."""
    if H % 8 != 0:
        return H  # block must then equal the full dim

    out_budget = 4 << 20
    vmem_budget = 24 << 20
    in_bytes = (H + 2 * PAD) * (W + 2 * PAD) * 4

    def fits(t):
        out_blk = C_OUT * t * W * 4
        total = 2 * out_blk + n_patches * t * W * 4 + 2 * in_bytes
        return out_blk <= out_budget and total <= vmem_budget

    cands = [t for t in range(8, H + 1, 8) if H % t == 0 and fits(t)]
    if not cands:
        return 8
    best = max(cands)

    # v7x has 2 TensorCores; avoid leaving one idle when N is odd, but do not
    # shrink tiles by more than 2x to get there.
    if (N * (H // best)) % 2 == 1:
        even = [t for t in cands if (N * (H // t)) % 2 == 0]
        if even:
            e = max(even)
            if 2 * e >= best:
                best = e
    return best


def hpf_forward(x_nchw, hpf_weight):
    """x_nchw: (N, 1, H, W) float32; hpf_weight: (30, 1, 5, 5) concrete array
    (the module's fixed, non-trainable SRM bank -> baked in as constants).

    Returns (N, 30, H, W) float32 (NCHW), matching the PyTorch module.
    """
    N, C_in, H, W = x_nchw.shape
    assert C_in == 1

    # Fixed weights: must be concrete so taps can be constant-folded.
    w_np = np.asarray(jax.device_get(hpf_weight), dtype=np.float32)
    w_np = w_np.reshape(C_OUT, KSIZE, KSIZE)

    # Glue: spatial zero-pad (padding=2) and channel squeeze.
    # (Input traffic is ~1/30th of output traffic, so the extra pad copy is
    #  a minor cost; folding it into the kernel is a possible follow-up.)
    x_pad = jnp.pad(
        x_nchw[:, 0, :, :],
        ((0, 0), (PAD, PAD), (PAD, PAD)),
        mode="constant",
    ).astype(jnp.float32)                              # (N, H+4, W+4)
    Hp, Wp = H + 2 * PAD, W + 2 * PAD

    # Build the constant-folded kernel for this (tile, width) configuration.
    _, needed, _ = _build_tap_table(w_np)
    n_patches = max(len(needed), 1)
    tH = _choose_tile_h(H, W, n_patches, N)
    n_t = H // tH
    kernel, n_patches = _make_hpf_kernel(w_np, tH, W)

    out = pl.pallas_call(
        kernel,
        out_shape=jax.ShapeDtypeStruct((N, C_OUT, H, W), jnp.float32),
        grid_spec=pltpu.PrefetchScalarGridSpec(
            num_scalar_prefetch=0,
            grid=(N, n_t),
            in_specs=[
                # Full padded image per batch element; halo rows sliced in-kernel.
                pl.BlockSpec((None, Hp, Wp), lambda n, t: (n, 0, 0)),
            ],
            # Channels-leading output tile: W on lanes, NCHW written directly.
            out_specs=pl.BlockSpec((None, C_OUT, tH, W), lambda n, t: (n, 0, t, 0)),
            scratch_shapes=[pltpu.VMEM((n_patches, tH, W), jnp.float32)],
        ),
        compiler_params=pltpu.CompilerParams(
            dimension_semantics=("parallel", "parallel"),
            vmem_limit_bytes=32 * 1024 * 1024,
        ),
    )(x_pad)

    return out  # already NCHW — no wrapper transpose


def _reference_forward(x_nchw, hpf_weight):
    """Pure-JAX reference (lax conv) for correctness checking."""
    out = jax.lax.conv_general_dilated(
        x_nchw, jnp.asarray(hpf_weight, jnp.float32),
        window_strides=(1, 1),
        padding=((PAD, PAD), (PAD, PAD)),
        dimension_numbers=("NCHW", "OIHW", "NCHW"),
    )
    return jnp.clip(out, -THRESHOLD, THRESHOLD)


if __name__ == "__main__":
    key = jax.random.PRNGKey(0)

    N, C, H, W = 2, 1, 16, 16  # HPF takes single-channel images
    x = jax.random.normal(key, (N, C, H, W), dtype=jnp.float32) * 4.0
    hpf_weight = make_hpf_weights()          # (30, 1, 5, 5) fixed SRM bank

    out = jax.block_until_ready(hpf_forward(x, hpf_weight))

    ref = _reference_forward(x, hpf_weight)
    assert out.shape == (N, C_OUT, H, W)
    assert jnp.allclose(out, ref, atol=1e-4, rtol=1e-4), "mismatch vs reference"

    print("KERNEL_OK")
</pallas_src>

<mosaic_0001>
module attributes {stable_mosaic.version = 11 : i64} {
  func.func @kernel(%arg0: i32, %arg1: i32, %arg2: memref<1x20x20xf32, #tpu.memory_space<vmem>>, %arg3: memref<1x30x16x16xf32, #tpu.memory_space<vmem>>, %arg4: memref<25x16x16xf32, #tpu.memory_space<vmem>>) attributes {dimension_semantics = [#tpu.dimension_semantics<parallel>, #tpu.dimension_semantics<parallel>], iteration_bounds = array<i64: 2, 1>, scalar_prefetch = 0 : i64, scratch_operands = 1 : i64, tpu.core_type = #tpu.core_type<tc>, window_params = [{transform_indices = @transform_0, window_bounds = array<i64: 1, 20, 20>}, {transform_indices = @transform_1, window_bounds = array<i64: 1, 30, 16, 16>}]} {
    %c16_i32 = arith.constant 16 : i32
    %0 = arith.muli %arg1, %c16_i32 : i32
    %1 = tpu.assume_multiple %0, 8 : i32
    %c0_i32 = arith.constant 0 : i32
    %2 = arith.addi %1, %c0_i32 : i32
    %c0 = arith.constant 0 : index
    %3 = arith.index_cast %2 : i32 to index
    %c0_0 = arith.constant 0 : index
    %4 = vector.load %arg2[%c0, %3, %c0_0] : memref<1x20x20xf32, #tpu.memory_space<vmem>>, vector<1x16x20xf32>
    %5 = vector.shape_cast %4 : vector<1x16x20xf32> to vector<16x20xf32>
    %6 = vector.extract_strided_slice %5 {offsets = [0, 0], sizes = [16, 16], strides = [1, 1]} : vector<16x20xf32> to vector<16x16xf32>
    %c0_1 = arith.constant 0 : index
    %c0_2 = arith.constant 0 : index
    %c0_3 = arith.constant 0 : index
    %7 = vector.load %arg4[%c0_1, %c0_2, %c0_3] : memref<25x16x16xf32, #tpu.memory_space<vmem>>, vector<1x16x16xf32>
    %8 = vector.shape_cast %7 : vector<1x16x16xf32> to vector<16x16xf32>
    %9 = vector.shape_cast %6 : vector<16x16xf32> to vector<1x16x16xf32>
    tpu.vector_store %arg4[%c0_1, %c0_2, %c0_3], %9 {strides = array<i32>} : memref<25x16x16xf32, #tpu.memory_space<vmem>>, vector<1x16x16xf32>,
    %10 = vector.extract_strided_slice %5 {offsets = [0, 1], sizes = [16, 16], strides = [1, 1]} : vector<16x20xf32> to vector<16x16xf32>
    %c1 = arith.constant 1 : index
    %c0_4 = arith.constant 0 : index
    %c0_5 = arith.constant 0 : index
    %11 = vector.load %arg4[%c1, %c0_4, %c0_5] : memref<25x16x16xf32, #tpu.memory_space<vmem>>, vector<1x16x16xf32>
    %12 = vector.shape_cast %11 : vector<1x16x16xf32> to vector<16x16xf32>
    %13 = vector.shape_cast %10 : vector<16x16xf32> to vector<1x16x16xf32>
    tpu.vector_store %arg4[%c1, %c0_4, %c0_5], %13 {strides = array<i32>} : memref<25x16x16xf32, #tpu.memory_space<vmem>>, vector<1x16x16xf32>,
    %14 = vector.extract_strided_slice %5 {offsets = [0, 2], sizes = [16, 16], strides = [1, 1]} : vector<16x20xf32> to vector<16x16xf32>
    %c2 = arith.constant 2 : index
    %c0_6 = arith.constant 0 : index
    %c0_7 = arith.constant 0 : index
    %15 = vector.load %arg4[%c2, %c0_6, %c0_7] : memref<25x16x16xf32, #tpu.memory_space<vmem>>, vector<1x16x16xf32>
    %16 = vector.shape_cast %15 : vector<1x16x16xf32> to vector<16x16xf32>
    %17 = vector.shape_cast %14 : vector<16x16xf32> to vector<1x16x16xf32>
    tpu.vector_store %arg4[%c2, %c0_6, %c0_7], %17 {strides = array<i32>} : memref<25x16x16xf32, #tpu.memory_space<vmem>>, vector<1x16x16xf32>,
    %18 = vector.extract_strided_slice %5 {offsets = [0, 3], sizes = [16, 16], strides = [1, 1]} : vector<16x20xf32> to vector<16x16xf32>
    %c3 = arith.constant 3 : index
    %c0_8 = arith.constant 0 : index
    %c0_9 = arith.constant 0 : index
    %19 = vector.load %arg4[%c3, %c0_8, %c0_9] : memref<25x16x16xf32, #tpu.memory_space<vmem>>, vector<1x16x16xf32>
    %20 = vector.shape_cast %19 : vector<1x16x16xf32> to vector<16x16xf32>
    %21 = vector.shape_cast %18 : vector<16x16xf32> to vector<1x16x16xf32>
    tpu.vector_store %arg4[%c3, %c0_8, %c0_9], %21 {strides = array<i32>} : memref<25x16x16xf32, #tpu.memory_space<vmem>>, vector<1x16x16xf32>,
    %22 = vector.extract_strided_slice %5 {offsets = [0, 4], sizes = [16, 16], strides = [1, 1]} : vector<16x20xf32> to vector<16x16xf32>
    %c4 = arith.constant 4 : index
    %c0_10 = arith.constant 0 : index
    %c0_11 = arith.constant 0 : index
    %23 = vector.load %arg4[%c4, %c0_10, %c0_11] : memref<25x16x16xf32, #tpu.memory_space<vmem>>, vector<1x16x16xf32>
    %24 = vector.shape_cast %23 : vector<1x16x16xf32> to vector<16x16xf32>
    %25 = vector.shape_cast %22 : vector<16x16xf32> to vector<1x16x16xf32>
    tpu.vector_store %arg4[%c4, %c0_10, %c0_11], %25 {strides = array<i32>} : memref<25x16x16xf32, #tpu.memory_space<vmem>>, vector<1x16x16xf32>,
    %c1_i32 = arith.constant 1 : i32
    %26 = arith.addi %1, %c1_i32 : i32
    %c0_12 = arith.constant 0 : index
    %27 = arith.index_cast %26 : i32 to index
    %c0_13 = arith.constant 0 : index
    %28 = vector.load %arg2[%c0_12, %27, %c0_13] : memref<1x20x20xf32, #tpu.memory_space<vmem>>, vector<1x16x20xf32>
    %29 = vector.shape_cast %28 : vector<1x16x20xf32> to vector<16x20xf32>
    %30 = vector.extract_strided_slice %29 {offsets = [0, 0], sizes = [16, 16], strides = [1, 1]} : vector<16x20xf32> to vector<16x16xf32>
    %c5 = arith.constant 5 : index
    %c0_14 = arith.constant 0 : index
    %c0_15 = arith.constant 0 : index
    %31 = vector.load %arg4[%c5, %c0_14, %c0_15] : memref<25x16x16xf32, #tpu.memory_space<vmem>>, vector<1x16x16xf32>
    %32 = vector.shape_cast %31 : vector<1x16x16xf32> to vector<16x16xf32>
    %33 = vector.shape_cast %30 : vector<16x16xf32> to vector<1x16x16xf32>
    tpu.vector_store %arg4[%c5, %c0_14, %c0_15], %33 {strides = array<i32>} : memref<25x16x16xf32, #tpu.memory_space<vmem>>, vector<1x16x16xf32>,
    %34 = vector.extract_strided_slice %29 {offsets = [0, 1], sizes = [16, 16], strides = [1, 1]} : vector<16x20xf32> to vector<16x16xf32>
    %c6 = arith.constant 6 : index
    %c0_16 = arith.constant 0 : index
    %c0_17 = arith.constant 0 : index
    %35 = vector.load %arg4[%c6, %c0_16, %c0_17] : memref<25x16x16xf32, #tpu.memory_space<vmem>>, vector<1x16x16xf32>
    %36 = vector.shape_cast %35 : vector<1x16x16xf32> to vector<16x16xf32>
    %37 = vector.shape_cast %34 : vector<16x16xf32> to vector<1x16x16xf32>
    tpu.vector_store %arg4[%c6, %c0_16, %c0_17], %37 {strides = array<i32>} : memref<25x16x16xf32, #tpu.memory_space<vmem>>, vector<1x16x16xf32>,
    %38 = vector.extract_strided_slice %29 {offsets = [0, 2], sizes = [16, 16], strides = [1, 1]} : vector<16x20xf32> to vector<16x16xf32>
    %c7 = arith.constant 7 : index
    %c0_18 = arith.constant 0 : index
    %c0_19 = arith.constant 0 : index
    %39 = vector.load %arg4[%c7, %c0_18, %c0_19] : memref<25x16x16xf32, #tpu.memory_space<vmem>>, vector<1x16x16xf32>
    %40 = vector.shape_cast %39 : vector<1x16x16xf32> to vector<16x16xf32>
    %41 = vector.shape_cast %38 : vector<16x16xf32> to vector<1x16x16xf32>
    tpu.vector_store %arg4[%c7, %c0_18, %c0_19], %41 {strides = array<i32>} : memref<25x16x16xf32, #tpu.memory_space<vmem>>, vector<1x16x16xf32>,
    %42 = vector.extract_strided_slice %29 {offsets = [0, 3], sizes = [16, 16], strides = [1, 1]} : vector<16x20xf32> to vector<16x16xf32>
    %c8 = arith.constant 8 : index
    %c0_20 = arith.constant 0 : index
    %c0_21 = arith.constant 0 : index
    %43 = vector.load %arg4[%c8, %c0_20, %c0_21] : memref<25x16x16xf32, #tpu.memory_space<vmem>>, vector<1x16x16xf32>
    %44 = vector.shape_cast %43 : vector<1x16x16xf32> to vector<16x16xf32>
    %45 = vector.shape_cast %42 : vector<16x16xf32> to vector<1x16x16xf32>
    tpu.vector_store %arg4[%c8, %c0_20, %c0_21], %45 {strides = array<i32>} : memref<25x16x16xf32, #tpu.memory_space<vmem>>, vector<1x16x16xf32>,
    %46 = vector.extract_strided_slice %29 {offsets = [0, 4], sizes = [16, 16], strides = [1, 1]} : vector<16x20xf32> to vector<16x16xf32>
    %c9 = arith.constant 9 : index
    %c0_22 = arith.constant 0 : index
    %c0_23 = arith.constant 0 : index
    %47 = vector.load %arg4[%c9, %c0_22, %c0_23] : memref<25x16x16xf32, #tpu.memory_space<vmem>>, vector<1x16x16xf32>
    %48 = vector.shape_cast %47 : vector<1x16x16xf32> to vector<16x16xf32>
    %49 = vector.shape_cast %46 : vector<16x16xf32> to vector<1x16x16xf32>
    tpu.vector_store %arg4[%c9, %c0_22, %c0_23], %49 {strides = array<i32>} : memref<25x16x16xf32, #tpu.memory_space<vmem>>, vector<1x16x16xf32>,
    %c2_i32 = arith.constant 2 : i32
    %50 = arith.addi %1, %c2_i32 : i32
    %c0_24 = arith.constant 0 : index
    %51 = arith.index_cast %50 : i32 to index
    %c0_25 = arith.constant 0 : index
    %52 = vector.load %arg2[%c0_24, %51, %c0_25] : memref<1x20x20xf32, #tpu.memory_space<vmem>>, vector<1x16x20xf32>
    %53 = vector.shape_cast %52 : vector<1x16x20xf32> to vector<16x20xf32>
    %54 = vector.extract_strided_slice %53 {offsets = [0, 0], sizes = [16, 16], strides = [1, 1]} : vector<16x20xf32> to vector<16x16xf32>
    %c10 = arith.constant 10 : index
    %c0_26 = arith.constant 0 : index
    %c0_27 = arith.constant 0 : index
    %55 = vector.load %arg4[%c10, %c0_26, %c0_27] : memref<25x16x16xf32, #tpu.memory_space<vmem>>, vector<1x16x16xf32>
    %56 = vector.shape_cast %55 : vector<1x16x16xf32> to vector<16x16xf32>
    %57 = vector.shape_cast %54 : vector<16x16xf32> to vector<1x16x16xf32>
    tpu.vector_store %arg4[%c10, %c0_26, %c0_27], %57 {strides = array<i32>} : memref<25x16x16xf32, #tpu.memory_space<vmem>>, vector<1x16x16xf32>,
    %58 = vector.extract_strided_slice %53 {offsets = [0, 1], sizes = [16, 16], strides = [1, 1]} : vector<16x20xf32> to vector<16x16xf32>
    %c11 = arith.constant 11 : index
    %c0_28 = arith.constant 0 : index
    %c0_29 = arith.constant 0 : index
    %59 = vector.load %arg4[%c11, %c0_28, %c0_29] : memref<25x16x16xf32, #tpu.memory_space<vmem>>, vector<1x16x16xf32>
    %60 = vector.shape_cast %59 : vector<1x16x16xf32> to vector<16x16xf32>
    %61 = vector.shape_cast %58 : vector<16x16xf32> to vector<1x16x16xf32>
    tpu.vector_store %arg4[%c11, %c0_28, %c0_29], %61 {strides = array<i32>} : memref<25x16x16xf32, #tpu.memory_space<vmem>>, vector<1x16x16xf32>,
    %62 = vector.extract_strided_slice %53 {offsets = [0, 2], sizes = [16, 16], strides = [1, 1]} : vector<16x20xf32> to vector<16x16xf32>
    %c12 = arith.constant 12 : index
    %c0_30 = arith.constant 0 : index
    %c0_31 = arith.constant 0 : index
    %63 = vector.load %arg4[%c12, %c0_30, %c0_31] : memref<25x16x16xf32, #tpu.memory_space<vmem>>, vector<1x16x16xf32>
    %64 = vector.shape_cast %63 : vector<1x16x16xf32> to vector<16x16xf32>
    %65 = vector.shape_cast %62 : vector<16x16xf32> to vector<1x16x16xf32>
    tpu.vector_store %arg4[%c12, %c0_30, %c0_31], %65 {strides = array<i32>} : memref<25x16x16xf32, #tpu.memory_space<vmem>>, vector<1x16x16xf32>,
    %66 = vector.extract_strided_slice %53 {offsets = [0, 3], sizes = [16, 16], strides = [1, 1]} : vector<16x20xf32> to vector<16x16xf32>
    %c13 = arith.constant 13 : index
    %c0_32 = arith.constant 0 : index
    %c0_33 = arith.constant 0 : index
    %67 = vector.load %arg4[%c13, %c0_32, %c0_33] : memref<25x16x16xf32, #tpu.memory_space<vmem>>, vector<1x16x16xf32>
    %68 = vector.shape_cast %67 : vector<1x16x16xf32> to vector<16x16xf32>
    %69 = vector.shape_cast %66 : vector<16x16xf32> to vector<1x16x16xf32>
    tpu.vector_store %arg4[%c13, %c0_32, %c0_33], %69 {strides = array<i32>} : memref<25x16x16xf32, #tpu.memory_space<vmem>>, vector<1x16x16xf32>,
    %70 = vector.extract_strided_slice %53 {offsets = [0, 4], sizes = [16, 16], strides = [1, 1]} : vector<16x20xf32> to vector<16x16xf32>
    %c14 = arith.constant 14 : index
    %c0_34 = arith.constant 0 : index
    %c0_35 = arith.constant 0 : index
    %71 = vector.load %arg4[%c14, %c0_34, %c0_35] : memref<25x16x16xf32, #tpu.memory_space<vmem>>, vector<1x16x16xf32>
    %72 = vector.shape_cast %71 : vector<1x16x16xf32> to vector<16x16xf32>
    %73 = vector.shape_cast %70 : vector<16x16xf32> to vector<1x16x16xf32>
    tpu.vector_store %arg4[%c14, %c0_34, %c0_35], %73 {strides = array<i32>} : memref<25x16x16xf32, #tpu.memory_space<vmem>>, vector<1x16x16xf32>,
    %c3_i32 = arith.constant 3 : i32
    %74 = arith.addi %1, %c3_i32 : i32
    %c0_36 = arith.constant 0 : index
    %75 = arith.index_cast %74 : i32 to index
    %c0_37 = arith.constant 0 : index
    %76 = vector.load %arg2[%c0_36, %75, %c0_37] : memref<1x20x20xf32, #tpu.memory_space<vmem>>, vector<1x16x20xf32>
    %77 = vector.shape_cast %76 : vector<1x16x20xf32> to vector<16x20xf32>
    %78 = vector.extract_strided_slice %77 {offsets = [0, 0], sizes = [16, 16], strides = [1, 1]} : vector<16x20xf32> to vector<16x16xf32>
    %c15 = arith.constant 15 : index
    %c0_38 = arith.constant 0 : index
    %c0_39 = arith.constant 0 : index
    %79 = vector.load %arg4[%c15, %c0_38, %c0_39] : memref<25x16x16xf32, #tpu.memory_space<vmem>>, vector<1x16x16xf32>
    %80 = vector.shape_cast %79 : vector<1x16x16xf32> to vector<16x16xf32>
    %81 = vector.shape_cast %78 : vector<16x16xf32> to vector<1x16x16xf32>
    tpu.vector_store %arg4[%c15, %c0_38, %c0_39], %81 {strides = array<i32>} : memref<25x16x16xf32, #tpu.memory_space<vmem>>, vector<1x16x16xf32>,
    %82 = vector.extract_strided_slice %77 {offsets = [0, 1], sizes = [16, 16], strides = [1, 1]} : vector<16x20xf32> to vector<16x16xf32>
    %c16 = arith.constant 16 : index
    %c0_40 = arith.constant 0 : index
    %c0_41 = arith.constant 0 : index
    %83 = vector.load %arg4[%c16, %c0_40, %c0_41] : memref<25x16x16xf32, #tpu.memory_space<vmem>>, vector<1x16x16xf32>
    %84 = vector.shape_cast %83 : vector<1x16x16xf32> to vector<16x16xf32>
    %85 = vector.shape_cast %82 : vector<16x16xf32> to vector<1x16x16xf32>
    tpu.vector_store %arg4[%c16, %c0_40, %c0_41], %85 {strides = array<i32>} : memref<25x16x16xf32, #tpu.memory_space<vmem>>, vector<1x16x16xf32>,
    %86 = vector.extract_strided_slice %77 {offsets = [0, 2], sizes = [16, 16], strides = [1, 1]} : vector<16x20xf32> to vector<16x16xf32>
    %c17 = arith.constant 17 : index
    %c0_42 = arith.constant 0 : index
    %c0_43 = arith.constant 0 : index
    %87 = vector.load %arg4[%c17, %c0_42, %c0_43] : memref<25x16x16xf32, #tpu.memory_space<vmem>>, vector<1x16x16xf32>
    %88 = vector.shape_cast %87 : vector<1x16x16xf32> to vector<16x16xf32>
    %89 = vector.shape_cast %86 : vector<16x16xf32> to vector<1x16x16xf32>
    tpu.vector_store %arg4[%c17, %c0_42, %c0_43], %89 {strides = array<i32>} : memref<25x16x16xf32, #tpu.memory_space<vmem>>, vector<1x16x16xf32>,
    %90 = vector.extract_strided_slice %77 {offsets = [0, 3], sizes = [16, 16], strides = [1, 1]} : vector<16x20xf32> to vector<16x16xf32>
    %c18 = arith.constant 18 : index
    %c0_44 = arith.constant 0 : index
    %c0_45 = arith.constant 0 : index
    %91 = vector.load %arg4[%c18, %c0_44, %c0_45] : memref<25x16x16xf32, #tpu.memory_space<vmem>>, vector<1x16x16xf32>
    %92 = vector.shape_cast %91 : vector<1x16x16xf32> to vector<16x16xf32>
    %93 = vector.shape_cast %90 : vector<16x16xf32> to vector<1x16x16xf32>
    tpu.vector_store %arg4[%c18, %c0_44, %c0_45], %93 {strides = array<i32>} : memref<25x16x16xf32, #tpu.memory_space<vmem>>, vector<1x16x16xf32>,
    %94 = vector.extract_strided_slice %77 {offsets = [0, 4], sizes = [16, 16], strides = [1, 1]} : vector<16x20xf32> to vector<16x16xf32>
    %c19 = arith.constant 19 : index
    %c0_46 = arith.constant 0 : index
    %c0_47 = arith.constant 0 : index
    %95 = vector.load %arg4[%c19, %c0_46, %c0_47] : memref<25x16x16xf32, #tpu.memory_space<vmem>>, vector<1x16x16xf32>
    %96 = vector.shape_cast %95 : vector<1x16x16xf32> to vector<16x16xf32>
    %97 = vector.shape_cast %94 : vector<16x16xf32> to vector<1x16x16xf32>
    tpu.vector_store %arg4[%c19, %c0_46, %c0_47], %97 {strides = array<i32>} : memref<25x16x16xf32, #tpu.memory_space<vmem>>, vector<1x16x16xf32>,
    %c4_i32 = arith.constant 4 : i32
    %98 = arith.addi %1, %c4_i32 : i32
    %c0_48 = arith.constant 0 : index
    %99 = arith.index_cast %98 : i32 to index
    %c0_49 = arith.constant 0 : index
    %100 = vector.load %arg2[%c0_48, %99, %c0_49] : memref<1x20x20xf32, #tpu.memory_space<vmem>>, vector<1x16x20xf32>
    %101 = vector.shape_cast %100 : vector<1x16x20xf32> to vector<16x20xf32>
    %102 = vector.extract_strided_slice %101 {offsets = [0, 0], sizes = [16, 16], strides = [1, 1]} : vector<16x20xf32> to vector<16x16xf32>
    %c20 = arith.constant 20 : index
    %c0_50 = arith.constant 0 : index
    %c0_51 = arith.constant 0 : index
    %103 = vector.load %arg4[%c20, %c0_50, %c0_51] : memref<25x16x16xf32, #tpu.memory_space<vmem>>, vector<1x16x16xf32>
    %104 = vector.shape_cast %103 : vector<1x16x16xf32> to vector<16x16xf32>
    %105 = vector.shape_cast %102 : vector<16x16xf32> to vector<1x16x16xf32>
    tpu.vector_store %arg4[%c20, %c0_50, %c0_51], %105 {strides = array<i32>} : memref<25x16x16xf32, #tpu.memory_space<vmem>>, vector<1x16x16xf32>,
    %106 = vector.extract_strided_slice %101 {offsets = [0, 1], sizes = [16, 16], strides = [1, 1]} : vector<16x20xf32> to vector<16x16xf32>
    %c21 = arith.constant 21 : index
    %c0_52 = arith.constant 0 : index
    %c0_53 = arith.constant 0 : index
    %107 = vector.load %arg4[%c21, %c0_52, %c0_53] : memref<25x16x16xf32, #tpu.memory_space<vmem>>, vector<1x16x16xf32>
    %108 = vector.shape_cast %107 : vector<1x16x16xf32> to vector<16x16xf32>
    %109 = vector.shape_cast %106 : vector<16x16xf32> to vector<1x16x16xf32>
    tpu.vector_store %arg4[%c21, %c0_52, %c0_53], %109 {strides = array<i32>} : memref<25x16x16xf32, #tpu.memory_space<vmem>>, vector<1x16x16xf32>,
    %110 = vector.extract_strided_slice %101 {offsets = [0, 2], sizes = [16, 16], strides = [1, 1]} : vector<16x20xf32> to vector<16x16xf32>
    %c22 = arith.constant 22 : index
    %c0_54 = arith.constant 0 : index
    %c0_55 = arith.constant 0 : index
    %111 = vector.load %arg4[%c22, %c0_54, %c0_55] : memref<25x16x16xf32, #tpu.memory_space<vmem>>, vector<1x16x16xf32>
    %112 = vector.shape_cast %111 : vector<1x16x16xf32> to vector<16x16xf32>
    %113 = vector.shape_cast %110 : vector<16x16xf32> to vector<1x16x16xf32>
    tpu.vector_store %arg4[%c22, %c0_54, %c0_55], %113 {strides = array<i32>} : memref<25x16x16xf32, #tpu.memory_space<vmem>>, vector<1x16x16xf32>,
    %114 = vector.extract_strided_slice %101 {offsets = [0, 3], sizes = [16, 16], strides = [1, 1]} : vector<16x20xf32> to vector<16x16xf32>
    %c23 = arith.constant 23 : index
    %c0_56 = arith.constant 0 : index
    %c0_57 = arith.constant 0 : index
    %115 = vector.load %arg4[%c23, %c0_56, %c0_57] : memref<25x16x16xf32, #tpu.memory_space<vmem>>, vector<1x16x16xf32>
    %116 = vector.shape_cast %115 : vector<1x16x16xf32> to vector<16x16xf32>
    %117 = vector.shape_cast %114 : vector<16x16xf32> to vector<1x16x16xf32>
    tpu.vector_store %arg4[%c23, %c0_56, %c0_57], %117 {strides = array<i32>} : memref<25x16x16xf32, #tpu.memory_space<vmem>>, vector<1x16x16xf32>,
    %118 = vector.extract_strided_slice %101 {offsets = [0, 4], sizes = [16, 16], strides = [1, 1]} : vector<16x20xf32> to vector<16x16xf32>
    %c24 = arith.constant 24 : index
    %c0_58 = arith.constant 0 : index
    %c0_59 = arith.constant 0 : index
    %119 = vector.load %arg4[%c24, %c0_58, %c0_59] : memref<25x16x16xf32, #tpu.memory_space<vmem>>, vector<1x16x16xf32>
    %120 = vector.shape_cast %119 : vector<1x16x16xf32> to vector<16x16xf32>
    %121 = vector.shape_cast %118 : vector<16x16xf32> to vector<1x16x16xf32>
    tpu.vector_store %arg4[%c24, %c0_58, %c0_59], %121 {strides = array<i32>} : memref<25x16x16xf32, #tpu.memory_space<vmem>>, vector<1x16x16xf32>,
    %c6_60 = arith.constant 6 : index
    %c0_61 = arith.constant 0 : index
    %c0_62 = arith.constant 0 : index
    %122 = vector.load %arg4[%c6_60, %c0_61, %c0_62] : memref<25x16x16xf32, #tpu.memory_space<vmem>>, vector<1x16x16xf32>
    %123 = vector.shape_cast %122 : vector<1x16x16xf32> to vector<16x16xf32>
    %c12_63 = arith.constant 12 : index
    %c0_64 = arith.constant 0 : index
    %c0_65 = arith.constant 0 : index
    %124 = vector.load %arg4[%c12_63, %c0_64, %c0_65] : memref<25x16x16xf32, #tpu.memory_space<vmem>>, vector<1x16x16xf32>
    %125 = vector.shape_cast %124 : vector<1x16x16xf32> to vector<16x16xf32>
    %126 = arith.subf %123, %125 : vector<16x16xf32>
    %cst = arith.constant -3.000000e+00 : f32
    %cst_66 = arith.constant 3.000000e+00 : f32
    %127 = vector.broadcast %cst : f32 to vector<16x16xf32>
    %128 = arith.maximumf %127, %126 : vector<16x16xf32>
    %129 = vector.broadcast %cst_66 : f32 to vector<16x16xf32>
    %130 = arith.minimumf %129, %128 : vector<16x16xf32>
    %c0_67 = arith.constant 0 : index
    %c0_68 = arith.constant 0 : index
    %c0_69 = arith.constant 0 : index
    %c0_70 = arith.constant 0 : index
    %131 = vector.load %arg3[%c0_67, %c0_68, %c0_69, %c0_70] : memref<1x30x16x16xf32, #tpu.memory_space<vmem>>, vector<1x1x16x16xf32>
    %132 = vector.shape_cast %131 : vector<1x1x16x16xf32> to vector<16x16xf32>
    %133 = vector.shape_cast %130 : vector<16x16xf32> to vector<1x1x16x16xf32>
    tpu.vector_store %arg3[%c0_67, %c0_68, %c0_69, %c0_70], %133 {strides = array<i32>} : memref<1x30x16x16xf32, #tpu.memory_space<vmem>>, vector<1x1x16x16xf32>,
    %c7_71 = arith.constant 7 : index
    %c0_72 = arith.constant 0 : index
    %c0_73 = arith.constant 0 : index
    %134 = vector.load %arg4[%c7_71, %c0_72, %c0_73] : memref<25x16x16xf32, #tpu.memory_space<vmem>>, vector<1x16x16xf32>
    %135 = vector.shape_cast %134 : vector<1x16x16xf32> to vector<16x16xf32>
    %c12_74 = arith.constant 12 : index
    %c0_75 = arith.constant 0 : index
    %c0_76 = arith.constant 0 : index
    %136 = vector.load %arg4[%c12_74, %c0_75, %c0_76] : memref<25x16x16xf32, #tpu.memory_space<vmem>>, vector<1x16x16xf32>
    %137 = vector.shape_cast %136 : vector<1x16x16xf32> to vector<16x16xf32>
    %138 = arith.subf %135, %137 : vector<16x16xf32>
    %cst_77 = arith.constant -3.000000e+00 : f32
    %cst_78 = arith.constant 3.000000e+00 : f32
    %139 = vector.broadcast %cst_77 : f32 to vector<16x16xf32>
    %140 = arith.maximumf %139, %138 : vector<16x16xf32>
    %141 = vector.broadcast %cst_78 : f32 to vector<16x16xf32>
    %142 = arith.minimumf %141, %140 : vector<16x16xf32>
    %c0_79 = arith.constant 0 : index
    %c1_80 = arith.constant 1 : index
    %c0_81 = arith.constant 0 : index
    %c0_82 = arith.constant 0 : index
    %143 = vector.load %arg3[%c0_79, %c1_80, %c0_81, %c0_82] : memref<1x30x16x16xf32, #tpu.memory_space<vmem>>, vector<1x1x16x16xf32>
    %144 = vector.shape_cast %143 : vector<1x1x16x16xf32> to vector<16x16xf32>
    %145 = vector.shape_cast %142 : vector<16x16xf32> to vector<1x1x16x16xf32>
    tpu.vector_store %arg3[%c0_79, %c1_80, %c0_81, %c0_82], %145 {strides = array<i32>} : memref<1x30x16x16xf32, #tpu.memory_space<vmem>>, vector<1x1x16x16xf32>,
    %c8_83 = arith.constant 8 : index
    %c0_84 = arith.constant 0 : index
    %c0_85 = arith.constant 0 : index
    %146 = vector.load %arg4[%c8_83, %c0_84, %c0_85] : memref<25x16x16xf32, #tpu.memory_space<vmem>>, vector<1x16x16xf32>
    %147 = vector.shape_cast %146 : vector<1x16x16xf32> to vector<16x16xf32>
    %c12_86 = arith.constant 12 : index
    %c0_87 = arith.constant 0 : index
    %c0_88 = arith.constant 0 : index
    %148 = vector.load %arg4[%c12_86, %c0_87, %c0_88] : memref<25x16x16xf32, #tpu.memory_space<vmem>>, vector<1x16x16xf32>
    %149 = vector.shape_cast %148 : vector<1x16x16xf32> to vector<16x16xf32>
    %150 = arith.subf %147, %149 : vector<16x16xf32>
    %cst_89 = arith.constant -3.000000e+00 : f32
    %cst_90 = arith.constant 3.000000e+00 : f32
    %151 = vector.broadcast %cst_89 : f32 to vector<16x16xf32>
    %152 = arith.maximumf %151, %150 : vector<16x16xf32>
    %153 = vector.broadcast %cst_90 : f32 to vector<16x16xf32>
    %154 = arith.minimumf %153, %152 : vector<16x16xf32>
    %c0_91 = arith.constant 0 : index
    %c2_92 = arith.constant 2 : index
    %c0_93 = arith.constant 0 : index
    %c0_94 = arith.constant 0 : index
    %155 = vector.load %arg3[%c0_91, %c2_92, %c0_93, %c0_94] : memref<1x30x16x16xf32, #tpu.memory_space<vmem>>, vector<1x1x16x16xf32>
    %156 = vector.shape_cast %155 : vector<1x1x16x16xf32> to vector<16x16xf32>
    %157 = vector.shape_cast %154 : vector<16x16xf32> to vector<1x1x16x16xf32>
    tpu.vector_store %arg3[%c0_91, %c2_92, %c0_93, %c0_94], %157 {strides = array<i32>} : memref<1x30x16x16xf32, #tpu.memory_space<vmem>>, vector<1x1x16x16xf32>,
    %c11_95 = arith.constant 11 : index
    %c0_96 = arith.constant 0 : index
    %c0_97 = arith.constant 0 : index
    %158 = vector.load %arg4[%c11_95, %c0_96, %c0_97] : memref<25x16x16xf32, #tpu.memory_space<vmem>>, vector<1x16x16xf32>
    %159 = vector.shape_cast %158 : vector<1x16x16xf32> to vector<16x16xf32>
    %c12_98 = arith.constant 12 : index
    %c0_99 = arith.constant 0 : index
    %c0_100 = arith.constant 0 : index
    %160 = vector.load %arg4[%c12_98, %c0_99, %c0_100] : memref<25x16x16xf32, #tpu.memory_space<vmem>>, vector<1x16x16xf32>
    %161 = vector.shape_cast %160 : vector<1x16x16xf32> to vector<16x16xf32>
    %162 = arith.subf %159, %161 : vector<16x16xf32>
    %cst_101 = arith.constant -3.000000e+00 : f32
    %cst_102 = arith.constant 3.000000e+00 : f32
    %163 = vector.broadcast %cst_101 : f32 to vector<16x16xf32>
    %164 = arith.maximumf %163, %162 : vector<16x16xf32>
    %165 = vector.broadcast %cst_102 : f32 to vector<16x16xf32>
    %166 = arith.minimumf %165, %164 : vector<16x16xf32>
    %c0_103 = arith.constant 0 : index
    %c3_104 = arith.constant 3 : index
    %c0_105 = arith.constant 0 : index
    %c0_106 = arith.constant 0 : index
    %167 = vector.load %arg3[%c0_103, %c3_104, %c0_105, %c0_106] : memref<1x30x16x16xf32, #tpu.memory_space<vmem>>, vector<1x1x16x16xf32>
    %168 = vector.shape_cast %167 : vector<1x1x16x16xf32> to vector<16x16xf32>
    %169 = vector.shape_cast %166 : vector<16x16xf32> to vector<1x1x16x16xf32>
    tpu.vector_store %arg3[%c0_103, %c3_104, %c0_105, %c0_106], %169 {strides = array<i32>} : memref<1x30x16x16xf32, #tpu.memory_space<vmem>>, vector<1x1x16x16xf32>,
    %c12_107 = arith.constant 12 : index
    %c0_108 = arith.constant 0 : index
    %c0_109 = arith.constant 0 : index
    %170 = vector.load %arg4[%c12_107, %c0_108, %c0_109] : memref<25x16x16xf32, #tpu.memory_space<vmem>>, vector<1x16x16xf32>
    %171 = vector.shape_cast %170 : vector<1x16x16xf32> to vector<16x16xf32>
    %cst_110 = arith.constant 0.000000e+00 : f32
    %172 = vector.broadcast %cst_110 : f32 to vector<16x16xf32>
    %173 = arith.subf %172, %171 : vector<16x16xf32>
    %c13_111 = arith.constant 13 : index
    %c0_112 = arith.constant 0 : index
    %c0_113 = arith.constant 0 : index
    %174 = vector.load %arg4[%c13_111, %c0_112, %c0_113] : memref<25x16x16xf32, #tpu.memory_space<vmem>>, vector<1x16x16xf32>
    %175 = vector.shape_cast %174 : vector<1x16x16xf32> to vector<16x16xf32>
    %176 = arith.addf %173, %175 : vector<16x16xf32>
    %cst_114 = arith.constant -3.000000e+00 : f32
    %cst_115 = arith.constant 3.000000e+00 : f32
    %177 = vector.broadcast %cst_114 : f32 to vector<16x16xf32>
    %178 = arith.maximumf %177, %176 : vector<16x16xf32>
    %179 = vector.broadcast %cst_115 : f32 to vector<16x16xf32>
    %180 = arith.minimumf %179, %178 : vector<16x16xf32>
    %c0_116 = arith.constant 0 : index
    %c4_117 = arith.constant 4 : index
    %c0_118 = arith.constant 0 : index
    %c0_119 = arith.constant 0 : index
    %181 = vector.load %arg3[%c0_116, %c4_117, %c0_118, %c0_119] : memref<1x30x16x16xf32, #tpu.memory_space<vmem>>, vector<1x1x16x16xf32>
    %182 = vector.shape_cast %181 : vector<1x1x16x16xf32> to vector<16x16xf32>
    %183 = vector.shape_cast %180 : vector<16x16xf32> to vector<1x1x16x16xf32>
    tpu.vector_store %arg3[%c0_116, %c4_117, %c0_118, %c0_119], %183 {strides = array<i32>} : memref<1x30x16x16xf32, #tpu.memory_space<vmem>>, vector<1x1x16x16xf32>,
    %c12_120 = arith.constant 12 : index
    %c0_121 = arith.constant 0 : index
    %c0_122 = arith.constant 0 : index
    %184 = vector.load %arg4[%c12_120, %c0_121, %c0_122] : memref<25x16x16xf32, #tpu.memory_space<vmem>>, vector<1x16x16xf32>
    %185 = vector.shape_cast %184 : vector<1x16x16xf32> to vector<16x16xf32>
    %cst_123 = arith.constant 0.000000e+00 : f32
    %186 = vector.broadcast %cst_123 : f32 to vector<16x16xf32>
    %187 = arith.subf %186, %185 : vector<16x16xf32>
    %c16_124 = arith.constant 16 : index
    %c0_125 = arith.constant 0 : index
    %c0_126 = arith.constant 0 : index
    %188 = vector.load %arg4[%c16_124, %c0_125, %c0_126] : memref<25x16x16xf32, #tpu.memory_space<vmem>>, vector<1x16x16xf32>
    %189 = vector.shape_cast %188 : vector<1x16x16xf32> to vector<16x16xf32>
    %190 = arith.addf %187, %189 : vector<16x16xf32>
    %cst_127 = arith.constant -3.000000e+00 : f32
    %cst_128 = arith.constant 3.000000e+00 : f32
    %191 = vector.broadcast %cst_127 : f32 to vector<16x16xf32>
    %192 = arith.maximumf %191, %190 : vector<16x16xf32>
    %193 = vector.broadcast %cst_128 : f32 to vector<16x16xf32>
    %194 = arith.minimumf %193, %192 : vector<16x16xf32>
    %c0_129 = arith.constant 0 : index
    %c5_130 = arith.constant 5 : index
    %c0_131 = arith.constant 0 : index
    %c0_132 = arith.constant 0 : index
    %195 = vector.load %arg3[%c0_129, %c5_130, %c0_131, %c0_132] : memref<1x30x16x16xf32, #tpu.memory_space<vmem>>, vector<1x1x16x16xf32>
    %196 = vector.shape_cast %195 : vector<1x1x16x16xf32> to vector<16x16xf32>
    %197 = vector.shape_cast %194 : vector<16x16xf32> to vector<1x1x16x16xf32>
    tpu.vector_store %arg3[%c0_129, %c5_130, %c0_131, %c0_132], %197 {strides = array<i32>} : memref<1x30x16x16xf32, #tpu.memory_space<vmem>>, vector<1x1x16x16xf32>,
    %c12_133 = arith.constant 12 : index
    %c0_134 = arith.constant 0 : index
    %c0_135 = arith.constant 0 : index
    %198 = vector.load %arg4[%c12_133, %c0_134, %c0_135] : memref<25x16x16xf32, #tpu.memory_space<vmem>>, vector<1x16x16xf32>
    %199 = vector.shape_cast %198 : vector<1x16x16xf32> to vector<16x16xf32>
    %cst_136 = arith.constant 0.000000e+00 : f32
    %200 = vector.broadcast %cst_136 : f32 to vector<16x16xf32>
    %201 = arith.subf %200, %199 : vector<16x16xf32>
    %c17_137 = arith.constant 17 : index
    %c0_138 = arith.constant 0 : index
    %c0_139 = arith.constant 0 : index
    %202 = vector.load %arg4[%c17_137, %c0_138, %c0_139] : memref<25x16x16xf32, #tpu.memory_space<vmem>>, vector<1x16x16xf32>
    %203 = vector.shape_cast %202 : vector<1x16x16xf32> to vector<16x16xf32>
    %204 = arith.addf %201, %203 : vector<16x16xf32>
    %cst_140 = arith.constant -3.000000e+00 : f32
    %cst_141 = arith.constant 3.000000e+00 : f32
    %205 = vector.broadcast %cst_140 : f32 to vector<16x16xf32>
    %206 = arith.maximumf %205, %204 : vector<16x16xf32>
    %207 = vector.broadcast %cst_141 : f32 to vector<16x16xf32>
    %208 = arith.minimumf %207, %206 : vector<16x16xf32>
    %c0_142 = arith.constant 0 : index
    %c6_143 = arith.constant 6 : index
    %c0_144 = arith.constant 0 : index
    %c0_145 = arith.constant 0 : index
    %209 = vector.load %arg3[%c0_142, %c6_143, %c0_144, %c0_145] : memref<1x30x16x16xf32, #tpu.memory_space<vmem>>, vector<1x1x16x16xf32>
    %210 = vector.shape_cast %209 : vector<1x1x16x16xf32> to vector<16x16xf32>
    %211 = vector.shape_cast %208 : vector<16x16xf32> to vector<1x1x16x16xf32>
    tpu.vector_store %arg3[%c0_142, %c6_143, %c0_144, %c0_145], %211 {strides = array<i32>} : memref<1x30x16x16xf32, #tpu.memory_space<vmem>>, vector<1x1x16x16xf32>,
    %c12_146 = arith.constant 12 : index
    %c0_147 = arith.constant 0 : index
    %c0_148 = arith.constant 0 : index
    %212 = vector.load %arg4[%c12_146, %c0_147, %c0_148] : memref<25x16x16xf32, #tpu.memory_space<vmem>>, vector<1x16x16xf32>
    %213 = vector.shape_cast %212 : vector<1x16x16xf32> to vector<16x16xf32>
    %cst_149 = arith.constant 0.000000e+00 : f32
    %214 = vector.broadcast %cst_149 : f32 to vector<16x16xf32>
    %215 = arith.subf %214, %213 : vector<16x16xf32>
    %c18_150 = arith.constant 18 : index
    %c0_151 = arith.constant 0 : index
    %c0_152 = arith.constant 0 : index
    %216 = vector.load %arg4[%c18_150, %c0_151, %c0_152] : memref<25x16x16xf32, #tpu.memory_space<vmem>>, vector<1x16x16xf32>
    %217 = vector.shape_cast %216 : vector<1x16x16xf32> to vector<16x16xf32>
    %218 = arith.addf %215, %217 : vector<16x16xf32>
    %cst_153 = arith.constant -3.000000e+00 : f32
    %cst_154 = arith.constant 3.000000e+00 : f32
    %219 = vector.broadcast %cst_153 : f32 to vector<16x16xf32>
    %220 = arith.maximumf %219, %218 : vector<16x16xf32>
    %221 = vector.broadcast %cst_154 : f32 to vector<16x16xf32>
    %222 = arith.minimumf %221, %220 : vector<16x16xf32>
    %c0_155 = arith.constant 0 : index
    %c7_156 = arith.constant 7 : index
    %c0_157 = arith.constant 0 : index
    %c0_158 = arith.constant 0 : index
    %223 = vector.load %arg3[%c0_155, %c7_156, %c0_157, %c0_158] : memref<1x30x16x16xf32, #tpu.memory_space<vmem>>, vector<1x1x16x16xf32>
    %224 = vector.shape_cast %223 : vector<1x1x16x16xf32> to vector<16x16xf32>
    %225 = vector.shape_cast %222 : vector<16x16xf32> to vector<1x1x16x16xf32>
    tpu.vector_store %arg3[%c0_155, %c7_156, %c0_157, %c0_158], %225 {strides = array<i32>} : memref<1x30x16x16xf32, #tpu.memory_space<vmem>>, vector<1x1x16x16xf32>,
    %c11_159 = arith.constant 11 : index
    %c0_160 = arith.constant 0 : index
    %c0_161 = arith.constant 0 : index
    %226 = vector.load %arg4[%c11_159, %c0_160, %c0_161] : memref<25x16x16xf32, #tpu.memory_space<vmem>>, vector<1x16x16xf32>
    %227 = vector.shape_cast %226 : vector<1x16x16xf32> to vector<16x16xf32>
    %cst_162 = arith.constant 5.000000e-01 : f32
    %228 = vector.broadcast %cst_162 : f32 to vector<16x16xf32>
    %229 = arith.mulf %228, %227 : vector<16x16xf32>
    %c12_163 = arith.constant 12 : index
    %c0_164 = arith.constant 0 : index
    %c0_165 = arith.constant 0 : index
    %230 = vector.load %arg4[%c12_163, %c0_164, %c0_165] : memref<25x16x16xf32, #tpu.memory_space<vmem>>, vector<1x16x16xf32>
    %231 = vector.shape_cast %230 : vector<1x16x16xf32> to vector<16x16xf32>
    %232 = arith.subf %229, %231 : vector<16x16xf32>
    %c13_166 = arith.constant 13 : index
    %c0_167 = arith.constant 0 : index
    %c0_168 = arith.constant 0 : index
    %233 = vector.load %arg4[%c13_166, %c0_167, %c0_168] : memref<25x16x16xf32, #tpu.memory_space<vmem>>, vector<1x16x16xf32>
    %234 = vector.shape_cast %233 : vector<1x16x16xf32> to vector<16x16xf32>
    %cst_169 = arith.constant 5.000000e-01 : f32
    %235 = vector.broadcast %cst_169 : f32 to vector<16x16xf32>
    %236 = arith.mulf %235, %234 : vector<16x16xf32>
    %237 = arith.addf %232, %236 : vector<16x16xf32>
    %cst_170 = arith.constant -3.000000e+00 : f32
    %cst_171 = arith.constant 3.000000e+00 : f32
    %238 = vector.broadcast %cst_170 : f32 to vector<16x16xf32>
    %239 = arith.maximumf %238, %237 : vector<16x16xf32>
    %240 = vector.broadcast %cst_171 : f32 to vector<16x16xf32>
    %241 = arith.minimumf %240, %239 : vector<16x16xf32>
    %c0_172 = arith.constant 0 : index
    %c8_173 = arith.constant 8 : index
    %c0_174 = arith.constant 0 : index
    %c0_175 = arith.constant 0 : index
    %242 = vector.load %arg3[%c0_172, %c8_173, %c0_174, %c0_175] : memref<1x30x16x16xf32, #tpu.memory_space<vmem>>, vector<1x1x16x16xf32>
    %243 = vector.shape_cast %242 : vector<1x1x16x16xf32> to vector<16x16xf32>
    %244 = vector.shape_cast %241 : vector<16x16xf32> to vector<1x1x16x16xf32>
    tpu.vector_store %arg3[%c0_172, %c8_173, %c0_174, %c0_175], %244 {strides = array<i32>} : memref<1x30x16x16xf32, #tpu.memory_space<vmem>>, vector<1x1x16x16xf32>,
    %c7_176 = arith.constant 7 : index
    %c0_177 = arith.constant 0 : index
    %c0_178 = arith.constant 0 : index
    %245 = vector.load %arg4[%c7_176, %c0_177, %c0_178] : memref<25x16x16xf32, #tpu.memory_space<vmem>>, vector<1x16x16xf32>
    %246 = vector.shape_cast %245 : vector<1x16x16xf32> to vector<16x16xf32>
    %cst_179 = arith.constant 5.000000e-01 : f32
    %247 = vector.broadcast %cst_179 : f32 to vector<16x16xf32>
    %248 = arith.mulf %247, %246 : vector<16x16xf32>
    %c12_180 = arith.constant 12 : index
    %c0_181 = arith.constant 0 : index
    %c0_182 = arith.constant 0 : index
    %249 = vector.load %arg4[%c12_180, %c0_181, %c0_182] : memref<25x16x16xf32, #tpu.memory_space<vmem>>, vector<1x16x16xf32>
    %250 = vector.shape_cast %249 : vector<1x16x16xf32> to vector<16x16xf32>
    %251 = arith.subf %248, %250 : vector<16x16xf32>
    %c17_183 = arith.constant 17 : index
    %c0_184 = arith.constant 0 : index
    %c0_185 = arith.constant 0 : index
    %252 = vector.load %arg4[%c17_183, %c0_184, %c0_185] : memref<25x16x16xf32, #tpu.memory_space<vmem>>, vector<1x16x16xf32>
    %253 = vector.shape_cast %252 : vector<1x16x16xf32> to vector<16x16xf32>
    %cst_186 = arith.constant 5.000000e-01 : f32
    %254 = vector.broadcast %cst_186 : f32 to vector<16x16xf32>
    %255 = arith.mulf %254, %253 : vector<16x16xf32>
    %256 = arith.addf %251, %255 : vector<16x16xf32>
    %cst_187 = arith.constant -3.000000e+00 : f32
    %cst_188 = arith.constant 3.000000e+00 : f32
    %257 = vector.broadcast %cst_187 : f32 to vector<16x16xf32>
    %258 = arith.maximumf %257, %256 : vector<16x16xf32>
    %259 = vector.broadcast %cst_188 : f32 to vector<16x16xf32>
    %260 = arith.minimumf %259, %258 : vector<16x16xf32>
    %c0_189 = arith.constant 0 : index
    %c9_190 = arith.constant 9 : index
    %c0_191 = arith.constant 0 : index
    %c0_192 = arith.constant 0 : index
    %261 = vector.load %arg3[%c0_189, %c9_190, %c0_191, %c0_192] : memref<1x30x16x16xf32, #tpu.memory_space<vmem>>, vector<1x1x16x16xf32>
    %262 = vector.shape_cast %261 : vector<1x1x16x16xf32> to vector<16x16xf32>
    %263 = vector.shape_cast %260 : vector<16x16xf32> to vector<1x1x16x16xf32>
    tpu.vector_store %arg3[%c0_189, %c9_190, %c0_191, %c0_192], %263 {strides = array<i32>} : memref<1x30x16x16xf32, #tpu.memory_space<vmem>>, vector<1x1x16x16xf32>,
    %c6_193 = arith.constant 6 : index
    %c0_194 = arith.constant 0 : index
    %c0_195 = arith.constant 0 : index
    %264 = vector.load %arg4[%c6_193, %c0_194, %c0_195] : memref<25x16x16xf32, #tpu.memory_space<vmem>>, vector<1x16x16xf32>
    %265 = vector.shape_cast %264 : vector<1x16x16xf32> to vector<16x16xf32>
    %cst_196 = arith.constant 5.000000e-01 : f32
    %266 = vector.broadcast %cst_196 : f32 to vector<16x16xf32>
    %267 = arith.mulf %266, %265 : vector<16x16xf32>
    %c12_197 = arith.constant 12 : index
    %c0_198 = arith.constant 0 : index
    %c0_199 = arith.constant 0 : index
    %268 = vector.load %arg4[%c12_197, %c0_198, %c0_199] : memref<25x16x16xf32, #tpu.memory_space<vmem>>, vector<1x16x16xf32>
    %269 = vector.shape_cast %268 : vector<1x16x16xf32> to vector<16x16xf32>
    %270 = arith.subf %267, %269 : vector<16x16xf32>
    %c18_200 = arith.constant 18 : index
    %c0_201 = arith.constant 0 : index
    %c0_202 = arith.constant 0 : index
    %271 = vector.load %arg4[%c18_200, %c0_201, %c0_202] : memref<25x16x16xf32, #tpu.memory_space<vmem>>, vector<1x16x16xf32>
    %272 = vector.shape_cast %271 : vector<1x16x16xf32> to vector<16x16xf32>
    %cst_203 = arith.constant 5.000000e-01 : f32
    %273 = vector.broadcast %cst_203 : f32 to vector<16x16xf32>
    %274 = arith.mulf %273, %272 : vector<16x16xf32>
    %275 = arith.addf %270, %274 : vector<16x16xf32>
    %cst_204 = arith.constant -3.000000e+00 : f32
    %cst_205 = arith.constant 3.000000e+00 : f32
    %276 = vector.broadcast %cst_204 : f32 to vector<16x16xf32>
    %277 = arith.maximumf %276, %275 : vector<16x16xf32>
    %278 = vector.broadcast %cst_205 : f32 to vector<16x16xf32>
    %279 = arith.minimumf %278, %277 : vector<16x16xf32>
    %c0_206 = arith.constant 0 : index
    %c10_207 = arith.constant 10 : index
    %c0_208 = arith.constant 0 : index
    %c0_209 = arith.constant 0 : index
    %280 = vector.load %arg3[%c0_206, %c10_207, %c0_208, %c0_209] : memref<1x30x16x16xf32, #tpu.memory_space<vmem>>, vector<1x1x16x16xf32>
    %281 = vector.shape_cast %280 : vector<1x1x16x16xf32> to vector<16x16xf32>
    %282 = vector.shape_cast %279 : vector<16x16xf32> to vector<1x1x16x16xf32>
    tpu.vector_store %arg3[%c0_206, %c10_207, %c0_208, %c0_209], %282 {strides = array<i32>} : memref<1x30x16x16xf32, #tpu.memory_space<vmem>>, vector<1x1x16x16xf32>,
    %c8_210 = arith.constant 8 : index
    %c0_211 = arith.constant 0 : index
    %c0_212 = arith.constant 0 : index
    %283 = vector.load %arg4[%c8_210, %c0_211, %c0_212] : memref<25x16x16xf32, #tpu.memory_space<vmem>>, vector<1x16x16xf32>
    %284 = vector.shape_cast %283 : vector<1x16x16xf32> to vector<16x16xf32>
    %cst_213 = arith.constant 5.000000e-01 : f32
    %285 = vector.broadcast %cst_213 : f32 to vector<16x16xf32>
    %286 = arith.mulf %285, %284 : vector<16x16xf32>
    %c12_214 = arith.constant 12 : index
    %c0_215 = arith.constant 0 : index
    %c0_216 = arith.constant 0 : index
    %287 = vector.load %arg4[%c12_214, %c0_215, %c0_216] : memref<25x16x16xf32, #tpu.memory_space<vmem>>, vector<1x16x16xf32>
    %288 = vector.shape_cast %287 : vector<1x16x16xf32> to vector<16x16xf32>
    %289 = arith.subf %286, %288 : vector<16x16xf32>
    %c16_217 = arith.constant 16 : index
    %c0_218 = arith.constant 0 : index
    %c0_219 = arith.constant 0 : index
    %290 = vector.load %arg4[%c16_217, %c0_218, %c0_219] : memref<25x16x16xf32, #tpu.memory_space<vmem>>, vector<1x16x16xf32>
    %291 = vector.shape_cast %290 : vector<1x16x16xf32> to vector<16x16xf32>
    %cst_220 = arith.constant 5.000000e-01 : f32
    %292 = vector.broadcast %cst_220 : f32 to vector<16x16xf32>
    %293 = arith.mulf %292, %291 : vector<16x16xf32>
    %294 = arith.addf %289, %293 : vector<16x16xf32>
    %cst_221 = arith.constant -3.000000e+00 : f32
    %cst_222 = arith.constant 3.000000e+00 : f32
    %295 = vector.broadcast %cst_221 : f32 to vector<16x16xf32>
    %296 = arith.maximumf %295, %294 : vector<16x16xf32>
    %297 = vector.broadcast %cst_222 : f32 to vector<16x16xf32>
    %298 = arith.minimumf %297, %296 : vector<16x16xf32>
    %c0_223 = arith.constant 0 : index
    %c11_224 = arith.constant 11 : index
    %c0_225 = arith.constant 0 : index
    %c0_226 = arith.constant 0 : index
    %299 = vector.load %arg3[%c0_223, %c11_224, %c0_225, %c0_226] : memref<1x30x16x16xf32, #tpu.memory_space<vmem>>, vector<1x1x16x16xf32>
    %300 = vector.shape_cast %299 : vector<1x1x16x16xf32> to vector<16x16xf32>
    %301 = vector.shape_cast %298 : vector<16x16xf32> to vector<1x1x16x16xf32>
    tpu.vector_store %arg3[%c0_223, %c11_224, %c0_225, %c0_226], %301 {strides = array<i32>} : memref<1x30x16x16xf32, #tpu.memory_space<vmem>>, vector<1x1x16x16xf32>,
    %c0_227 = arith.constant 0 : index
    %c0_228 = arith.constant 0 : index
    %c0_229 = arith.constant 0 : index
    %302 = vector.load %arg4[%c0_227, %c0_228, %c0_229] : memref<25x16x16xf32, #tpu.memory_space<vmem>>, vector<1x16x16xf32>
    %303 = vector.shape_cast %302 : vector<1x16x16xf32> to vector<16x16xf32>
    %cst_230 = arith.constant -0.333333343 : f32
    %304 = vector.broadcast %cst_230 : f32 to vector<16x16xf32>
    %305 = arith.mulf %304, %303 : vector<16x16xf32>
    %c6_231 = arith.constant 6 : index
    %c0_232 = arith.constant 0 : index
    %c0_233 = arith.constant 0 : index
    %306 = vector.load %arg4[%c6_231, %c0_232, %c0_233] : memref<25x16x16xf32, #tpu.memory_space<vmem>>, vector<1x16x16xf32>
    %307 = vector.shape_cast %306 : vector<1x16x16xf32> to vector<16x16xf32>
    %308 = arith.addf %305, %307 : vector<16x16xf32>
    %c12_234 = arith.constant 12 : index
    %c0_235 = arith.constant 0 : index
    %c0_236 = arith.constant 0 : index
    %309 = vector.load %arg4[%c12_234, %c0_235, %c0_236] : memref<25x16x16xf32, #tpu.memory_space<vmem>>, vector<1x16x16xf32>
    %310 = vector.shape_cast %309 : vector<1x16x16xf32> to vector<16x16xf32>
    %311 = arith.subf %308, %310 : vector<16x16xf32>
    %c18_237 = arith.constant 18 : index
    %c0_238 = arith.constant 0 : index
    %c0_239 = arith.constant 0 : index
    %312 = vector.load %arg4[%c18_237, %c0_238, %c0_239] : memref<25x16x16xf32, #tpu.memory_space<vmem>>, vector<1x16x16xf32>
    %313 = vector.shape_cast %312 : vector<1x16x16xf32> to vector<16x16xf32>
    %cst_240 = arith.constant 0.333333343 : f32
    %314 = vector.broadcast %cst_240 : f32 to vector<16x16xf32>
    %315 = arith.mulf %314, %313 : vector<16x16xf32>
    %316 = arith.addf %311, %315 : vector<16x16xf32>
    %cst_241 = arith.constant -3.000000e+00 : f32
    %cst_242 = arith.constant 3.000000e+00 : f32
    %317 = vector.broadcast %cst_241 : f32 to vector<16x16xf32>
    %318 = arith.maximumf %317, %316 : vector<16x16xf32>
    %319 = vector.broadcast %cst_242 : f32 to vector<16x16xf32>
    %320 = arith.minimumf %319, %318 : vector<16x16xf32>
    %c0_243 = arith.constant 0 : index
    %c12_244 = arith.constant 12 : index
    %c0_245 = arith.constant 0 : index
    %c0_246 = arith.constant 0 : index
    %321 = vector.load %arg3[%c0_243, %c12_244, %c0_245, %c0_246] : memref<1x30x16x16xf32, #tpu.memory_space<vmem>>, vector<1x1x16x16xf32>
    %322 = vector.shape_cast %321 : vector<1x1x16x16xf32> to vector<16x16xf32>
    %323 = vector.shape_cast %320 : vector<16x16xf32> to vector<1x1x16x16xf32>
    tpu.vector_store %arg3[%c0_243, %c12_244, %c0_245, %c0_246], %323 {strides = array<i32>} : memref<1x30x16x16xf32, #tpu.memory_space<vmem>>, vector<1x1x16x16xf32>,
    %c2_247 = arith.constant 2 : index
    %c0_248 = arith.constant 0 : index
    %c0_249 = arith.constant 0 : index
    %324 = vector.load %arg4[%c2_247, %c0_248, %c0_249] : memref<25x16x16xf32, #tpu.memory_space<vmem>>, vector<1x16x16xf32>
    %325 = vector.shape_cast %324 : vector<1x16x16xf32> to vector<16x16xf32>
    %cst_250 = arith.constant -0.333333343 : f32
    %326 = vector.broadcast %cst_250 : f32 to vector<16x16xf32>
    %327 = arith.mulf %326, %325 : vector<16x16xf32>
    %c7_251 = arith.constant 7 : index
    %c0_252 = arith.constant 0 : index
    %c0_253 = arith.constant 0 : index
    %328 = vector.load %arg4[%c7_251, %c0_252, %c0_253] : memref<25x16x16xf32, #tpu.memory_space<vmem>>, vector<1x16x16xf32>
    %329 = vector.shape_cast %328 : vector<1x16x16xf32> to vector<16x16xf32>
    %330 = arith.addf %327, %329 : vector<16x16xf32>
    %c12_254 = arith.constant 12 : index
    %c0_255 = arith.constant 0 : index
    %c0_256 = arith.constant 0 : index
    %331 = vector.load %arg4[%c12_254, %c0_255, %c0_256] : memref<25x16x16xf32, #tpu.memory_space<vmem>>, vector<1x16x16xf32>
    %332 = vector.shape_cast %331 : vector<1x16x16xf32> to vector<16x16xf32>
    %333 = arith.subf %330, %332 : vector<16x16xf32>
    %c17_257 = arith.constant 17 : index
    %c0_258 = arith.constant 0 : index
    %c0_259 = arith.constant 0 : index
    %334 = vector.load %arg4[%c17_257, %c0_258, %c0_259] : memref<25x16x16xf32, #tpu.memory_space<vmem>>, vector<1x16x16xf32>
    %335 = vector.shape_cast %334 : vector<1x16x16xf32> to vector<16x16xf32>
    %cst_260 = arith.constant 0.333333343 : f32
    %336 = vector.broadcast %cst_260 : f32 to vector<16x16xf32>
    %337 = arith.mulf %336, %335 : vector<16x16xf32>
    %338 = arith.addf %333, %337 : vector<16x16xf32>
    %cst_261 = arith.constant -3.000000e+00 : f32
    %cst_262 = arith.constant 3.000000e+00 : f32
    %339 = vector.broadcast %cst_261 : f32 to vector<16x16xf32>
    %340 = arith.maximumf %339, %338 : vector<16x16xf32>
    %341 = vector.broadcast %cst_262 : f32 to vector<16x16xf32>
    %342 = arith.minimumf %341, %340 : vector<16x16xf32>
    %c0_263 = arith.constant 0 : index
    %c13_264 = arith.constant 13 : index
    %c0_265 = arith.constant 0 : index
    %c0_266 = arith.constant 0 : index
    %343 = vector.load %arg3[%c0_263, %c13_264, %c0_265, %c0_266] : memref<1x30x16x16xf32, #tpu.memory_space<vmem>>, vector<1x1x16x16xf32>
    %344 = vector.shape_cast %343 : vector<1x1x16x16xf32> to vector<16x16xf32>
    %345 = vector.shape_cast %342 : vector<16x16xf32> to vector<1x1x16x16xf32>
    tpu.vector_store %arg3[%c0_263, %c13_264, %c0_265, %c0_266], %345 {strides = array<i32>} : memref<1x30x16x16xf32, #tpu.memory_space<vmem>>, vector<1x1x16x16xf32>,
    %c4_267 = arith.constant 4 : index
    %c0_268 = arith.constant 0 : index
    %c0_269 = arith.constant 0 : index
    %346 = vector.load %arg4[%c4_267, %c0_268, %c0_269] : memref<25x16x16xf32, #tpu.memory_space<vmem>>, vector<1x16x16xf32>
    %347 = vector.shape_cast %346 : vector<1x16x16xf32> to vector<16x16xf32>
    %cst_270 = arith.constant -0.333333343 : f32
    %348 = vector.broadcast %cst_270 : f32 to vector<16x16xf32>
    %349 = arith.mulf %348, %347 : vector<16x16xf32>
    %c8_271 = arith.constant 8 : index
    %c0_272 = arith.constant 0 : index
    %c0_273 = arith.constant 0 : index
    %350 = vector.load %arg4[%c8_271, %c0_272, %c0_273] : memref<25x16x16xf32, #tpu.memory_space<vmem>>, vector<1x16x16xf32>
    %351 = vector.shape_cast %350 : vector<1x16x16xf32> to vector<16x16xf32>
    %352 = arith.addf %349, %351 : vector<16x16xf32>
    %c12_274 = arith.constant 12 : index
    %c0_275 = arith.constant 0 : index
    %c0_276 = arith.constant 0 : index
    %353 = vector.load %arg4[%c12_274, %c0_275, %c0_276] : memref<25x16x16xf32, #tpu.memory_space<vmem>>, vector<1x16x16xf32>
    %354 = vector.shape_cast %353 : vector<1x16x16xf32> to vector<16x16xf32>
    %355 = arith.subf %352, %354 : vector<16x16xf32>
    %c16_277 = arith.constant 16 : index
    %c0_278 = arith.constant 0 : index
    %c0_279 = arith.constant 0 : index
    %356 = vector.load %arg4[%c16_277, %c0_278, %c0_279] : memref<25x16x16xf32, #tpu.memory_space<vmem>>, vector<1x16x16xf32>
    %357 = vector.shape_cast %356 : vector<1x16x16xf32> to vector<16x16xf32>
    %cst_280 = arith.constant 0.333333343 : f32
    %358 = vector.broadcast %cst_280 : f32 to vector<16x16xf32>
    %359 = arith.mulf %358, %357 : vector<16x16xf32>
    %360 = arith.addf %355, %359 : vector<16x16xf32>
    %cst_281 = arith.constant -3.000000e+00 : f32
    %cst_282 = arith.constant 3.000000e+00 : f32
    %361 = vector.broadcast %cst_281 : f32 to vector<16x16xf32>
    %362 = arith.maximumf %361, %360 : vector<16x16xf32>
    %363 = vector.broadcast %cst_282 : f32 to vector<16x16xf32>
    %364 = arith.minimumf %363, %362 : vector<16x16xf32>
    %c0_283 = arith.constant 0 : index
    %c14_284 = arith.constant 14 : index
    %c0_285 = arith.constant 0 : index
    %c0_286 = arith.constant 0 : index
    %365 = vector.load %arg3[%c0_283, %c14_284, %c0_285, %c0_286] : memref<1x30x16x16xf32, #tpu.memory_space<vmem>>, vector<1x1x16x16xf32>
    %366 = vector.shape_cast %365 : vector<1x1x16x16xf32> to vector<16x16xf32>
    %367 = vector.shape_cast %364 : vector<16x16xf32> to vector<1x1x16x16xf32>
    tpu.vector_store %arg3[%c0_283, %c14_284, %c0_285, %c0_286], %367 {strides = array<i32>} : memref<1x30x16x16xf32, #tpu.memory_space<vmem>>, vector<1x1x16x16xf32>,
    %c10_287 = arith.constant 10 : index
    %c0_288 = arith.constant 0 : index
    %c0_289 = arith.constant 0 : index
    %368 = vector.load %arg4[%c10_287, %c0_288, %c0_289] : memref<25x16x16xf32, #tpu.memory_space<vmem>>, vector<1x16x16xf32>
    %369 = vector.shape_cast %368 : vector<1x16x16xf32> to vector<16x16xf32>
    %cst_290 = arith.constant -0.333333343 : f32
    %370 = vector.broadcast %cst_290 : f32 to vector<16x16xf32>
    %371 = arith.mulf %370, %369 : vector<16x16xf32>
    %c11_291 = arith.constant 11 : index
    %c0_292 = arith.constant 0 : index
    %c0_293 = arith.constant 0 : index
    %372 = vector.load %arg4[%c11_291, %c0_292, %c0_293] : memref<25x16x16xf32, #tpu.memory_space<vmem>>, vector<1x16x16xf32>
    %373 = vector.shape_cast %372 : vector<1x16x16xf32> to vector<16x16xf32>
    %374 = arith.addf %371, %373 : vector<16x16xf32>
    %c12_294 = arith.constant 12 : index
    %c0_295 = arith.constant 0 : index
    %c0_296 = arith.constant 0 : index
    %375 = vector.load %arg4[%c12_294, %c0_295, %c0_296] : memref<25x16x16xf32, #tpu.memory_space<vmem>>, vector<1x16x16xf32>
    %376 = vector.shape_cast %375 : vector<1x16x16xf32> to vector<16x16xf32>
    %377 = arith.subf %374, %376 : vector<16x16xf32>
    %c13_297 = arith.constant 13 : index
    %c0_298 = arith.constant 0 : index
    %c0_299 = arith.constant 0 : index
    %378 = vector.load %arg4[%c13_297, %c0_298, %c0_299] : memref<25x16x16xf32, #tpu.memory_space<vmem>>, vector<1x16x16xf32>
    %379 = vector.shape_cast %378 : vector<1x16x16xf32> to vector<16x16xf32>
    %cst_300 = arith.constant 0.333333343 : f32
    %380 = vector.broadcast %cst_300 : f32 to vector<16x16xf32>
    %381 = arith.mulf %380, %379 : vector<16x16xf32>
    %382 = arith.addf %377, %381 : vector<16x16xf32>
    %cst_301 = arith.constant -3.000000e+00 : f32
    %cst_302 = arith.constant 3.000000e+00 : f32
    %383 = vector.broadcast %cst_301 : f32 to vector<16x16xf32>
    %384 = arith.maximumf %383, %382 : vector<16x16xf32>
    %385 = vector.broadcast %cst_302 : f32 to vector<16x16xf32>
    %386 = arith.minimumf %385, %384 : vector<16x16xf32>
    %c0_303 = arith.constant 0 : index
    %c15_304 = arith.constant 15 : index
    %c0_305 = arith.constant 0 : index
    %c0_306 = arith.constant 0 : index
    %387 = vector.load %arg3[%c0_303, %c15_304, %c0_305, %c0_306] : memref<1x30x16x16xf32, #tpu.memory_space<vmem>>, vector<1x1x16x16xf32>
    %388 = vector.shape_cast %387 : vector<1x1x16x16xf32> to vector<16x16xf32>
    %389 = vector.shape_cast %386 : vector<16x16xf32> to vector<1x1x16x16xf32>
    tpu.vector_store %arg3[%c0_303, %c15_304, %c0_305, %c0_306], %389 {strides = array<i32>} : memref<1x30x16x16xf32, #tpu.memory_space<vmem>>, vector<1x1x16x16xf32>,
    %c11_307 = arith.constant 11 : index
    %c0_308 = arith.constant 0 : index
    %c0_309 = arith.constant 0 : index
    %390 = vector.load %arg4[%c11_307, %c0_308, %c0_309] : memref<25x16x16xf32, #tpu.memory_space<vmem>>, vector<1x16x16xf32>
    %391 = vector.shape_cast %390 : vector<1x16x16xf32> to vector<16x16xf32>
    %cst_310 = arith.constant 0.333333343 : f32
    %392 = vector.broadcast %cst_310 : f32 to vector<16x16xf32>
    %393 = arith.mulf %392, %391 : vector<16x16xf32>
    %c12_311 = arith.constant 12 : index
    %c0_312 = arith.constant 0 : index
    %c0_313 = arith.constant 0 : index
    %394 = vector.load %arg4[%c12_311, %c0_312, %c0_313] : memref<25x16x16xf32, #tpu.memory_space<vmem>>, vector<1x16x16xf32>
    %395 = vector.shape_cast %394 : vector<1x16x16xf32> to vector<16x16xf32>
    %396 = arith.subf %393, %395 : vector<16x16xf32>
    %c13_314 = arith.constant 13 : index
    %c0_315 = arith.constant 0 : index
    %c0_316 = arith.constant 0 : index
    %397 = vector.load %arg4[%c13_314, %c0_315, %c0_316] : memref<25x16x16xf32, #tpu.memory_space<vmem>>, vector<1x16x16xf32>
    %398 = vector.shape_cast %397 : vector<1x16x16xf32> to vector<16x16xf32>
    %399 = arith.addf %396, %398 : vector<16x16xf32>
    %c14_317 = arith.constant 14 : index
    %c0_318 = arith.constant 0 : index
    %c0_319 = arith.constant 0 : index
    %400 = vector.load %arg4[%c14_317, %c0_318, %c0_319] : memref<25x16x16xf32, #tpu.memory_space<vmem>>, vector<1x16x16xf32>
    %401 = vector.shape_cast %400 : vector<1x16x16xf32> to vector<16x16xf32>
    %cst_320 = arith.constant -0.333333343 : f32
    %402 = vector.broadcast %cst_320 : f32 to vector<16x16xf32>
    %403 = arith.mulf %402, %401 : vector<16x16xf32>
    %404 = arith.addf %399, %403 : vector<16x16xf32>
    %cst_321 = arith.constant -3.000000e+00 : f32
    %cst_322 = arith.constant 3.000000e+00 : f32
    %405 = vector.broadcast %cst_321 : f32 to vector<16x16xf32>
    %406 = arith.maximumf %405, %404 : vector<16x16xf32>
    %407 = vector.broadcast %cst_322 : f32 to vector<16x16xf32>
    %408 = arith.minimumf %407, %406 : vector<16x16xf32>
    %c0_323 = arith.constant 0 : index
    %c16_324 = arith.constant 16 : index
    %c0_325 = arith.constant 0 : index
    %c0_326 = arith.constant 0 : index
    %409 = vector.load %arg3[%c0_323, %c16_324, %c0_325, %c0_326] : memref<1x30x16x16xf32, #tpu.memory_space<vmem>>, vector<1x1x16x16xf32>
    %410 = vector.shape_cast %409 : vector<1x1x16x16xf32> to vector<16x16xf32>
    %411 = vector.shape_cast %408 : vector<16x16xf32> to vector<1x1x16x16xf32>
    tpu.vector_store %arg3[%c0_323, %c16_324, %c0_325, %c0_326], %411 {strides = array<i32>} : memref<1x30x16x16xf32, #tpu.memory_space<vmem>>, vector<1x1x16x16xf32>,
    %c8_327 = arith.constant 8 : index
    %c0_328 = arith.constant 0 : index
    %c0_329 = arith.constant 0 : index
    %412 = vector.load %arg4[%c8_327, %c0_328, %c0_329] : memref<25x16x16xf32, #tpu.memory_space<vmem>>, vector<1x16x16xf32>
    %413 = vector.shape_cast %412 : vector<1x16x16xf32> to vector<16x16xf32>
    %cst_330 = arith.constant 0.333333343 : f32
    %414 = vector.broadcast %cst_330 : f32 to vector<16x16xf32>
    %415 = arith.mulf %414, %413 : vector<16x16xf32>
    %c12_331 = arith.constant 12 : index
    %c0_332 = arith.constant 0 : index
    %c0_333 = arith.constant 0 : index
    %416 = vector.load %arg4[%c12_331, %c0_332, %c0_333] : memref<25x16x16xf32, #tpu.memory_space<vmem>>, vector<1x16x16xf32>
    %417 = vector.shape_cast %416 : vector<1x16x16xf32> to vector<16x16xf32>
    %418 = arith.subf %415, %417 : vector<16x16xf32>
    %c16_334 = arith.constant 16 : index
    %c0_335 = arith.constant 0 : index
    %c0_336 = arith.constant 0 : index
    %419 = vector.load %arg4[%c16_334, %c0_335, %c0_336] : memref<25x16x16xf32, #tpu.memory_space<vmem>>, vector<1x16x16xf32>
    %420 = vector.shape_cast %419 : vector<1x16x16xf32> to vector<16x16xf32>
    %421 = arith.addf %418, %420 : vector<16x16xf32>
    %c20_337 = arith.constant 20 : index
    %c0_338 = arith.constant 0 : index
    %c0_339 = arith.constant 0 : index
    %422 = vector.load %arg4[%c20_337, %c0_338, %c0_339] : memref<25x16x16xf32, #tpu.memory_space<vmem>>, vector<1x16x16xf32>
    %423 = vector.shape_cast %422 : vector<1x16x16xf32> to vector<16x16xf32>
    %cst_340 = arith.constant -0.333333343 : f32
    %424 = vector.broadcast %cst_340 : f32 to vector<16x16xf32>
    %425 = arith.mulf %424, %423 : vector<16x16xf32>
    %426 = arith.addf %421, %425 : vector<16x16xf32>
    %cst_341 = arith.constant -3.000000e+00 : f32
    %cst_342 = arith.constant 3.000000e+00 : f32
    %427 = vector.broadcast %cst_341 : f32 to vector<16x16xf32>
    %428 = arith.maximumf %427, %426 : vector<16x16xf32>
    %429 = vector.broadcast %cst_342 : f32 to vector<16x16xf32>
    %430 = arith.minimumf %429, %428 : vector<16x16xf32>
    %c0_343 = arith.constant 0 : index
    %c17_344 = arith.constant 17 : index
    %c0_345 = arith.constant 0 : index
    %c0_346 = arith.constant 0 : index
    %431 = vector.load %arg3[%c0_343, %c17_344, %c0_345, %c0_346] : memref<1x30x16x16xf32, #tpu.memory_space<vmem>>, vector<1x1x16x16xf32>
    %432 = vector.shape_cast %431 : vector<1x1x16x16xf32> to vector<16x16xf32>
    %433 = vector.shape_cast %430 : vector<16x16xf32> to vector<1x1x16x16xf32>
    tpu.vector_store %arg3[%c0_343, %c17_344, %c0_345, %c0_346], %433 {strides = array<i32>} : memref<1x30x16x16xf32, #tpu.memory_space<vmem>>, vector<1x1x16x16xf32>,
    %c7_347 = arith.constant 7 : index
    %c0_348 = arith.constant 0 : index
    %c0_349 = arith.constant 0 : index
    %434 = vector.load %arg4[%c7_347, %c0_348, %c0_349] : memref<25x16x16xf32, #tpu.memory_space<vmem>>, vector<1x16x16xf32>
    %435 = vector.shape_cast %434 : vector<1x16x16xf32> to vector<16x16xf32>
    %cst_350 = arith.constant 0.333333343 : f32
    %436 = vector.broadcast %cst_350 : f32 to vector<16x16xf32>
    %437 = arith.mulf %436, %435 : vector<16x16xf32>
    %c12_351 = arith.constant 12 : index
    %c0_352 = arith.constant 0 : index
    %c0_353 = arith.constant 0 : index
    %438 = vector.load %arg4[%c12_351, %c0_352, %c0_353] : memref<25x16x16xf32, #tpu.memory_space<vmem>>, vector<1x16x16xf32>
    %439 = vector.shape_cast %438 : vector<1x16x16xf32> to vector<16x16xf32>
    %440 = arith.subf %437, %439 : vector<16x16xf32>
    %c17_354 = arith.constant 17 : index
    %c0_355 = arith.constant 0 : index
    %c0_356 = arith.constant 0 : index
    %441 = vector.load %arg4[%c17_354, %c0_355, %c0_356] : memref<25x16x16xf32, #tpu.memory_space<vmem>>, vector<1x16x16xf32>
    %442 = vector.shape_cast %441 : vector<1x16x16xf32> to vector<16x16xf32>
    %443 = arith.addf %440, %442 : vector<16x16xf32>
    %c22_357 = arith.constant 22 : index
    %c0_358 = arith.constant 0 : index
    %c0_359 = arith.constant 0 : index
    %444 = vector.load %arg4[%c22_357, %c0_358, %c0_359] : memref<25x16x16xf32, #tpu.memory_space<vmem>>, vector<1x16x16xf32>
    %445 = vector.shape_cast %444 : vector<1x16x16xf32> to vector<16x16xf32>
    %cst_360 = arith.constant -0.333333343 : f32
    %446 = vector.broadcast %cst_360 : f32 to vector<16x16xf32>
    %447 = arith.mulf %446, %445 : vector<16x16xf32>
    %448 = arith.addf %443, %447 : vector<16x16xf32>
    %cst_361 = arith.constant -3.000000e+00 : f32
    %cst_362 = arith.constant 3.000000e+00 : f32
    %449 = vector.broadcast %cst_361 : f32 to vector<16x16xf32>
    %450 = arith.maximumf %449, %448 : vector<16x16xf32>
    %451 = vector.broadcast %cst_362 : f32 to vector<16x16xf32>
    %452 = arith.minimumf %451, %450 : vector<16x16xf32>
    %c0_363 = arith.constant 0 : index
    %c18_364 = arith.constant 18 : index
    %c0_365 = arith.constant 0 : index
    %c0_366 = arith.constant 0 : index
    %453 = vector.load %arg3[%c0_363, %c18_364, %c0_365, %c0_366] : memref<1x30x16x16xf32, #tpu.memory_space<vmem>>, vector<1x1x16x16xf32>
    %454 = vector.shape_cast %453 : vector<1x1x16x16xf32> to vector<16x16xf32>
    %455 = vector.shape_cast %452 : vector<16x16xf32> to vector<1x1x16x16xf32>
    tpu.vector_store %arg3[%c0_363, %c18_364, %c0_365, %c0_366], %455 {strides = array<i32>} : memref<1x30x16x16xf32, #tpu.memory_space<vmem>>, vector<1x1x16x16xf32>,
    %c6_367 = arith.constant 6 : index
    %c0_368 = arith.constant 0 : index
    %c0_369 = arith.constant 0 : index
    %456 = vector.load %arg4[%c6_367, %c0_368, %c0_369] : memref<25x16x16xf32, #tpu.memory_space<vmem>>, vector<1x16x16xf32>
    %457 = vector.shape_cast %456 : vector<1x16x16xf32> to vector<16x16xf32>
    %cst_370 = arith.constant 0.333333343 : f32
    %458 = vector.broadcast %cst_370 : f32 to vector<16x16xf32>
    %459 = arith.mulf %458, %457 : vector<16x16xf32>
    %c12_371 = arith.constant 12 : index
    %c0_372 = arith.constant 0 : index
    %c0_373 = arith.constant 0 : index
    %460 = vector.load %arg4[%c12_371, %c0_372, %c0_373] : memref<25x16x16xf32, #tpu.memory_space<vmem>>, vector<1x16x16xf32>
    %461 = vector.shape_cast %460 : vector<1x16x16xf32> to vector<16x16xf32>
    %462 = arith.subf %459, %461 : vector<16x16xf32>
    %c18_374 = arith.constant 18 : index
    %c0_375 = arith.constant 0 : index
    %c0_376 = arith.constant 0 : index
    %463 = vector.load %arg4[%c18_374, %c0_375, %c0_376] : memref<25x16x16xf32, #tpu.memory_space<vmem>>, vector<1x16x16xf32>
    %464 = vector.shape_cast %463 : vector<1x16x16xf32> to vector<16x16xf32>
    %465 = arith.addf %462, %464 : vector<16x16xf32>
    %c24_377 = arith.constant 24 : index
    %c0_378 = arith.constant 0 : index
    %c0_379 = arith.constant 0 : index
    %466 = vector.load %arg4[%c24_377, %c0_378, %c0_379] : memref<25x16x16xf32, #tpu.memory_space<vmem>>, vector<1x16x16xf32>
    %467 = vector.shape_cast %466 : vector<1x16x16xf32> to vector<16x16xf32>
    %cst_380 = arith.constant -0.333333343 : f32
    %468 = vector.broadcast %cst_380 : f32 to vector<16x16xf32>
    %469 = arith.mulf %468, %467 : vector<16x16xf32>
    %470 = arith.addf %465, %469 : vector<16x16xf32>
    %cst_381 = arith.constant -3.000000e+00 : f32
    %cst_382 = arith.constant 3.000000e+00 : f32
    %471 = vector.broadcast %cst_381 : f32 to vector<16x16xf32>
    %472 = arith.maximumf %471, %470 : vector<16x16xf32>
    %473 = vector.broadcast %cst_382 : f32 to vector<16x16xf32>
    %474 = arith.minimumf %473, %472 : vector<16x16xf32>
    %c0_383 = arith.constant 0 : index
    %c19_384 = arith.constant 19 : index
    %c0_385 = arith.constant 0 : index
    %c0_386 = arith.constant 0 : index
    %475 = vector.load %arg3[%c0_383, %c19_384, %c0_385, %c0_386] : memref<1x30x16x16xf32, #tpu.memory_space<vmem>>, vector<1x1x16x16xf32>
    %476 = vector.shape_cast %475 : vector<1x1x16x16xf32> to vector<16x16xf32>
    %477 = vector.shape_cast %474 : vector<16x16xf32> to vector<1x1x16x16xf32>
    tpu.vector_store %arg3[%c0_383, %c19_384, %c0_385, %c0_386], %477 {strides = array<i32>} : memref<1x30x16x16xf32, #tpu.memory_space<vmem>>, vector<1x1x16x16xf32>,
    %c6_387 = arith.constant 6 : index
    %c0_388 = arith.constant 0 : index
    %c0_389 = arith.constant 0 : index
    %478 = vector.load %arg4[%c6_387, %c0_388, %c0_389] : memref<25x16x16xf32, #tpu.memory_space<vmem>>, vector<1x16x16xf32>
    %479 = vector.shape_cast %478 : vector<1x16x16xf32> to vector<16x16xf32>
    %cst_390 = arith.constant -2.500000e-01 : f32
    %480 = vector.broadcast %cst_390 : f32 to vector<16x16xf32>
    %481 = arith.mulf %480, %479 : vector<16x16xf32>
    %c7_391 = arith.constant 7 : index
    %c0_392 = arith.constant 0 : index
    %c0_393 = arith.constant 0 : index
    %482 = vector.load %arg4[%c7_391, %c0_392, %c0_393] : memref<25x16x16xf32, #tpu.memory_space<vmem>>, vector<1x16x16xf32>
    %483 = vector.shape_cast %482 : vector<1x16x16xf32> to vector<16x16xf32>
    %cst_394 = arith.constant 5.000000e-01 : f32
    %484 = vector.broadcast %cst_394 : f32 to vector<16x16xf32>
    %485 = arith.mulf %484, %483 : vector<16x16xf32>
    %486 = arith.addf %481, %485 : vector<16x16xf32>
    %c8_395 = arith.constant 8 : index
    %c0_396 = arith.constant 0 : index
    %c0_397 = arith.constant 0 : index
    %487 = vector.load %arg4[%c8_395, %c0_396, %c0_397] : memref<25x16x16xf32, #tpu.memory_space<vmem>>, vector<1x16x16xf32>
    %488 = vector.shape_cast %487 : vector<1x16x16xf32> to vector<16x16xf32>
    %cst_398 = arith.constant -2.500000e-01 : f32
    %489 = vector.broadcast %cst_398 : f32 to vector<16x16xf32>
    %490 = arith.mulf %489, %488 : vector<16x16xf32>
    %491 = arith.addf %486, %490 : vector<16x16xf32>
    %c11_399 = arith.constant 11 : index
    %c0_400 = arith.constant 0 : index
    %c0_401 = arith.constant 0 : index
    %492 = vector.load %arg4[%c11_399, %c0_400, %c0_401] : memref<25x16x16xf32, #tpu.memory_space<vmem>>, vector<1x16x16xf32>
    %493 = vector.shape_cast %492 : vector<1x16x16xf32> to vector<16x16xf32>
    %cst_402 = arith.constant 5.000000e-01 : f32
    %494 = vector.broadcast %cst_402 : f32 to vector<16x16xf32>
    %495 = arith.mulf %494, %493 : vector<16x16xf32>
    %496 = arith.addf %491, %495 : vector<16x16xf32>
    %c12_403 = arith.constant 12 : index
    %c0_404 = arith.constant 0 : index
    %c0_405 = arith.constant 0 : index
    %497 = vector.load %arg4[%c12_403, %c0_404, %c0_405] : memref<25x16x16xf32, #tpu.memory_space<vmem>>, vector<1x16x16xf32>
    %498 = vector.shape_cast %497 : vector<1x16x16xf32> to vector<16x16xf32>
    %499 = arith.subf %496, %498 : vector<16x16xf32>
    %c13_406 = arith.constant 13 : index
    %c0_407 = arith.constant 0 : index
    %c0_408 = arith.constant 0 : index
    %500 = vector.load %arg4[%c13_406, %c0_407, %c0_408] : memref<25x16x16xf32, #tpu.memory_space<vmem>>, vector<1x16x16xf32>
    %501 = vector.shape_cast %500 : vector<1x16x16xf32> to vector<16x16xf32>
    %cst_409 = arith.constant 5.000000e-01 : f32
    %502 = vector.broadcast %cst_409 : f32 to vector<16x16xf32>
    %503 = arith.mulf %502, %501 : vector<16x16xf32>
    %504 = arith.addf %499, %503 : vector<16x16xf32>
    %c16_410 = arith.constant 16 : index
    %c0_411 = arith.constant 0 : index
    %c0_412 = arith.constant 0 : index
    %505 = vector.load %arg4[%c16_410, %c0_411, %c0_412] : memref<25x16x16xf32, #tpu.memory_space<vmem>>, vector<1x16x16xf32>
    %506 = vector.shape_cast %505 : vector<1x16x16xf32> to vector<16x16xf32>
    %cst_413 = arith.constant -2.500000e-01 : f32
    %507 = vector.broadcast %cst_413 : f32 to vector<16x16xf32>
    %508 = arith.mulf %507, %506 : vector<16x16xf32>
    %509 = arith.addf %504, %508 : vector<16x16xf32>
    %c17_414 = arith.constant 17 : index
    %c0_415 = arith.constant 0 : index
    %c0_416 = arith.constant 0 : index
    %510 = vector.load %arg4[%c17_414, %c0_415, %c0_416] : memref<25x16x16xf32, #tpu.memory_space<vmem>>, vector<1x16x16xf32>
    %511 = vector.shape_cast %510 : vector<1x16x16xf32> to vector<16x16xf32>
    %cst_417 = arith.constant 5.000000e-01 : f32
    %512 = vector.broadcast %cst_417 : f32 to vector<16x16xf32>
    %513 = arith.mulf %512, %511 : vector<16x16xf32>
    %514 = arith.addf %509, %513 : vector<16x16xf32>
    %c18_418 = arith.constant 18 : index
    %c0_419 = arith.constant 0 : index
    %c0_420 = arith.constant 0 : index
    %515 = vector.load %arg4[%c18_418, %c0_419, %c0_420] : memref<25x16x16xf32, #tpu.memory_space<vmem>>, vector<1x16x16xf32>
    %516 = vector.shape_cast %515 : vector<1x16x16xf32> to vector<16x16xf32>
    %cst_421 = arith.constant -2.500000e-01 : f32
    %517 = vector.broadcast %cst_421 : f32 to vector<16x16xf32>
    %518 = arith.mulf %517, %516 : vector<16x16xf32>
    %519 = arith.addf %514, %518 : vector<16x16xf32>
    %cst_422 = arith.constant -3.000000e+00 : f32
    %cst_423 = arith.constant 3.000000e+00 : f32
    %520 = vector.broadcast %cst_422 : f32 to vector<16x16xf32>
    %521 = arith.maximumf %520, %519 : vector<16x16xf32>
    %522 = vector.broadcast %cst_423 : f32 to vector<16x16xf32>
    %523 = arith.minimumf %522, %521 : vector<16x16xf32>
    %c0_424 = arith.constant 0 : index
    %c20_425 = arith.constant 20 : index
    %c0_426 = arith.constant 0 : index
    %c0_427 = arith.constant 0 : index
    %524 = vector.load %arg3[%c0_424, %c20_425, %c0_426, %c0_427] : memref<1x30x16x16xf32, #tpu.memory_space<vmem>>, vector<1x1x16x16xf32>
    %525 = vector.shape_cast %524 : vector<1x1x16x16xf32> to vector<16x16xf32>
    %526 = vector.shape_cast %523 : vector<16x16xf32> to vector<1x1x16x16xf32>
    tpu.vector_store %arg3[%c0_424, %c20_425, %c0_426, %c0_427], %526 {strides = array<i32>} : memref<1x30x16x16xf32, #tpu.memory_space<vmem>>, vector<1x1x16x16xf32>,
    %c0_428 = arith.constant 0 : index
    %c0_429 = arith.constant 0 : index
    %c0_430 = arith.constant 0 : index
    %527 = vector.load %arg4[%c0_428, %c0_429, %c0_430] : memref<25x16x16xf32, #tpu.memory_space<vmem>>, vector<1x16x16xf32>
    %528 = vector.shape_cast %527 : vector<1x16x16xf32> to vector<16x16xf32>
    %cst_431 = arith.constant -0.0833333358 : f32
    %529 = vector.broadcast %cst_431 : f32 to vector<16x16xf32>
    %530 = arith.mulf %529, %528 : vector<16x16xf32>
    %c1_432 = arith.constant 1 : index
    %c0_433 = arith.constant 0 : index
    %c0_434 = arith.constant 0 : index
    %531 = vector.load %arg4[%c1_432, %c0_433, %c0_434] : memref<25x16x16xf32, #tpu.memory_space<vmem>>, vector<1x16x16xf32>
    %532 = vector.shape_cast %531 : vector<1x16x16xf32> to vector<16x16xf32>
    %cst_435 = arith.constant 0.166666672 : f32
    %533 = vector.broadcast %cst_435 : f32 to vector<16x16xf32>
    %534 = arith.mulf %533, %532 : vector<16x16xf32>
    %535 = arith.addf %530, %534 : vector<16x16xf32>
    %c2_436 = arith.constant 2 : index
    %c0_437 = arith.constant 0 : index
    %c0_438 = arith.constant 0 : index
    %536 = vector.load %arg4[%c2_436, %c0_437, %c0_438] : memref<25x16x16xf32, #tpu.memory_space<vmem>>, vector<1x16x16xf32>
    %537 = vector.shape_cast %536 : vector<1x16x16xf32> to vector<16x16xf32>
    %cst_439 = arith.constant -0.166666672 : f32
    %538 = vector.broadcast %cst_439 : f32 to vector<16x16xf32>
    %539 = arith.mulf %538, %537 : vector<16x16xf32>
    %540 = arith.addf %535, %539 : vector<16x16xf32>
    %c3_440 = arith.constant 3 : index
    %c0_441 = arith.constant 0 : index
    %c0_442 = arith.constant 0 : index
    %541 = vector.load %arg4[%c3_440, %c0_441, %c0_442] : memref<25x16x16xf32, #tpu.memory_space<vmem>>, vector<1x16x16xf32>
    %542 = vector.shape_cast %541 : vector<1x16x16xf32> to vector<16x16xf32>
    %cst_443 = arith.constant 0.166666672 : f32
    %543 = vector.broadcast %cst_443 : f32 to vector<16x16xf32>
    %544 = arith.mulf %543, %542 : vector<16x16xf32>
    %545 = arith.addf %540, %544 : vector<16x16xf32>
    %c4_444 = arith.constant 4 : index
    %c0_445 = arith.constant 0 : index
    %c0_446 = arith.constant 0 : index
    %546 = vector.load %arg4[%c4_444, %c0_445, %c0_446] : memref<25x16x16xf32, #tpu.memory_space<vmem>>, vector<1x16x16xf32>
    %547 = vector.shape_cast %546 : vector<1x16x16xf32> to vector<16x16xf32>
    %cst_447 = arith.constant -0.0833333358 : f32
    %548 = vector.broadcast %cst_447 : f32 to vector<16x16xf32>
    %549 = arith.mulf %548, %547 : vector<16x16xf32>
    %550 = arith.addf %545, %549 : vector<16x16xf32>
    %c5_448 = arith.constant 5 : index
    %c0_449 = arith.constant 0 : index
    %c0_450 = arith.constant 0 : index
    %551 = vector.load %arg4[%c5_448, %c0_449, %c0_450] : memref<25x16x16xf32, #tpu.memory_space<vmem>>, vector<1x16x16xf32>
    %552 = vector.shape_cast %551 : vector<1x16x16xf32> to vector<16x16xf32>
    %cst_451 = arith.constant 0.166666672 : f32
    %553 = vector.broadcast %cst_451 : f32 to vector<16x16xf32>
    %554 = arith.mulf %553, %552 : vector<16x16xf32>
    %555 = arith.addf %550, %554 : vector<16x16xf32>
    %c6_452 = arith.constant 6 : index
    %c0_453 = arith.constant 0 : index
    %c0_454 = arith.constant 0 : index
    %556 = vector.load %arg4[%c6_452, %c0_453, %c0_454] : memref<25x16x16xf32, #tpu.memory_space<vmem>>, vector<1x16x16xf32>
    %557 = vector.shape_cast %556 : vector<1x16x16xf32> to vector<16x16xf32>
    %cst_455 = arith.constant -5.000000e-01 : f32
    %558 = vector.broadcast %cst_455 : f32 to vector<16x16xf32>
    %559 = arith.mulf %558, %557 : vector<16x16xf32>
    %560 = arith.addf %555, %559 : vector<16x16xf32>
    %c7_456 = arith.constant 7 : index
    %c0_457 = arith.constant 0 : index
    %c0_458 = arith.constant 0 : index
    %561 = vector.load %arg4[%c7_456, %c0_457, %c0_458] : memref<25x16x16xf32, #tpu.memory_space<vmem>>, vector<1x16x16xf32>
    %562 = vector.shape_cast %561 : vector<1x16x16xf32> to vector<16x16xf32>
    %cst_459 = arith.constant 0.666666686 : f32
    %563 = vector.broadcast %cst_459 : f32 to vector<16x16xf32>
    %564 = arith.mulf %563, %562 : vector<16x16xf32>
    %565 = arith.addf %560, %564 : vector<16x16xf32>
    %c8_460 = arith.constant 8 : index
    %c0_461 = arith.constant 0 : index
    %c0_462 = arith.constant 0 : index
    %566 = vector.load %arg4[%c8_460, %c0_461, %c0_462] : memref<25x16x16xf32, #tpu.memory_space<vmem>>, vector<1x16x16xf32>
    %567 = vector.shape_cast %566 : vector<1x16x16xf32> to vector<16x16xf32>
    %cst_463 = arith.constant -5.000000e-01 : f32
    %568 = vector.broadcast %cst_463 : f32 to vector<16x16xf32>
    %569 = arith.mulf %568, %567 : vector<16x16xf32>
    %570 = arith.addf %565, %569 : vector<16x16xf32>
    %c9_464 = arith.constant 9 : index
    %c0_465 = arith.constant 0 : index
    %c0_466 = arith.constant 0 : index
    %571 = vector.load %arg4[%c9_464, %c0_465, %c0_466] : memref<25x16x16xf32, #tpu.memory_space<vmem>>, vector<1x16x16xf32>
    %572 = vector.shape_cast %571 : vector<1x16x16xf32> to vector<16x16xf32>
    %cst_467 = arith.constant 0.166666672 : f32
    %573 = vector.broadcast %cst_467 : f32 to vector<16x16xf32>
    %574 = arith.mulf %573, %572 : vector<16x16xf32>
    %575 = arith.addf %570, %574 : vector<16x16xf32>
    %c10_468 = arith.constant 10 : index
    %c0_469 = arith.constant 0 : index
    %c0_470 = arith.constant 0 : index
    %576 = vector.load %arg4[%c10_468, %c0_469, %c0_470] : memref<25x16x16xf32, #tpu.memory_space<vmem>>, vector<1x16x16xf32>
    %577 = vector.shape_cast %576 : vector<1x16x16xf32> to vector<16x16xf32>
    %cst_471 = arith.constant -0.166666672 : f32
    %578 = vector.broadcast %cst_471 : f32 to vector<16x16xf32>
    %579 = arith.mulf %578, %577 : vector<16x16xf32>
    %580 = arith.addf %575, %579 : vector<16x16xf32>
    %c11_472 = arith.constant 11 : index
    %c0_473 = arith.constant 0 : index
    %c0_474 = arith.constant 0 : index
    %581 = vector.load %arg4[%c11_472, %c0_473, %c0_474] : memref<25x16x16xf32, #tpu.memory_space<vmem>>, vector<1x16x16xf32>
    %582 = vector.shape_cast %581 : vector<1x16x16xf32> to vector<16x16xf32>
    %cst_475 = arith.constant 0.666666686 : f32
    %583 = vector.broadcast %cst_475 : f32 to vector<16x16xf32>
    %584 = arith.mulf %583, %582 : vector<16x16xf32>
    %585 = arith.addf %580, %584 : vector<16x16xf32>
    %c12_476 = arith.constant 12 : index
    %c0_477 = arith.constant 0 : index
    %c0_478 = arith.constant 0 : index
    %586 = vector.load %arg4[%c12_476, %c0_477, %c0_478] : memref<25x16x16xf32, #tpu.memory_space<vmem>>, vector<1x16x16xf32>
    %587 = vector.shape_cast %586 : vector<1x16x16xf32> to vector<16x16xf32>
    %588 = arith.subf %585, %587 : vector<16x16xf32>
    %c13_479 = arith.constant 13 : index
    %c0_480 = arith.constant 0 : index
    %c0_481 = arith.constant 0 : index
    %589 = vector.load %arg4[%c13_479, %c0_480, %c0_481] : memref<25x16x16xf32, #tpu.memory_space<vmem>>, vector<1x16x16xf32>
    %590 = vector.shape_cast %589 : vector<1x16x16xf32> to vector<16x16xf32>
    %cst_482 = arith.constant 0.666666686 : f32
    %591 = vector.broadcast %cst_482 : f32 to vector<16x16xf32>
    %592 = arith.mulf %591, %590 : vector<16x16xf32>
    %593 = arith.addf %588, %592 : vector<16x16xf32>
    %c14_483 = arith.constant 14 : index
    %c0_484 = arith.constant 0 : index
    %c0_485 = arith.constant 0 : index
    %594 = vector.load %arg4[%c14_483, %c0_484, %c0_485] : memref<25x16x16xf32, #tpu.memory_space<vmem>>, vector<1x16x16xf32>
    %595 = vector.shape_cast %594 : vector<1x16x16xf32> to vector<16x16xf32>
    %cst_486 = arith.constant -0.166666672 : f32
    %596 = vector.broadcast %cst_486 : f32 to vector<16x16xf32>
    %597 = arith.mulf %596, %595 : vector<16x16xf32>
    %598 = arith.addf %593, %597 : vector<16x16xf32>
    %c15_487 = arith.constant 15 : index
    %c0_488 = arith.constant 0 : index
    %c0_489 = arith.constant 0 : index
    %599 = vector.load %arg4[%c15_487, %c0_488, %c0_489] : memref<25x16x16xf32, #tpu.memory_space<vmem>>, vector<1x16x16xf32>
    %600 = vector.shape_cast %599 : vector<1x16x16xf32> to vector<16x16xf32>
    %cst_490 = arith.constant 0.166666672 : f32
    %601 = vector.broadcast %cst_490 : f32 to vector<16x16xf32>
    %602 = arith.mulf %601, %600 : vector<16x16xf32>
    %603 = arith.addf %598, %602 : vector<16x16xf32>
    %c16_491 = arith.constant 16 : index
    %c0_492 = arith.constant 0 : index
    %c0_493 = arith.constant 0 : index
    %604 = vector.load %arg4[%c16_491, %c0_492, %c0_493] : memref<25x16x16xf32, #tpu.memory_space<vmem>>, vector<1x16x16xf32>
    %605 = vector.shape_cast %604 : vector<1x16x16xf32> to vector<16x16xf32>
    %cst_494 = arith.constant -5.000000e-01 : f32
    %606 = vector.broadcast %cst_494 : f32 to vector<16x16xf32>
    %607 = arith.mulf %606, %605 : vector<16x16xf32>
    %608 = arith.addf %603, %607 : vector<16x16xf32>
    %c17_495 = arith.constant 17 : index
    %c0_496 = arith.constant 0 : index
    %c0_497 = arith.constant 0 : index
    %609 = vector.load %arg4[%c17_495, %c0_496, %c0_497] : memref<25x16x16xf32, #tpu.memory_space<vmem>>, vector<1x16x16xf32>
    %610 = vector.shape_cast %609 : vector<1x16x16xf32> to vector<16x16xf32>
    %cst_498 = arith.constant 0.666666686 : f32
    %611 = vector.broadcast %cst_498 : f32 to vector<16x16xf32>
    %612 = arith.mulf %611, %610 : vector<16x16xf32>
    %613 = arith.addf %608, %612 : vector<16x16xf32>
    %c18_499 = arith.constant 18 : index
    %c0_500 = arith.constant 0 : index
    %c0_501 = arith.constant 0 : index
    %614 = vector.load %arg4[%c18_499, %c0_500, %c0_501] : memref<25x16x16xf32, #tpu.memory_space<vmem>>, vector<1x16x16xf32>
    %615 = vector.shape_cast %614 : vector<1x16x16xf32> to vector<16x16xf32>
    %cst_502 = arith.constant -5.000000e-01 : f32
    %616 = vector.broadcast %cst_502 : f32 to vector<16x16xf32>
    %617 = arith.mulf %616, %615 : vector<16x16xf32>
    %618 = arith.addf %613, %617 : vector<16x16xf32>
    %c19_503 = arith.constant 19 : index
    %c0_504 = arith.constant 0 : index
    %c0_505 = arith.constant 0 : index
    %619 = vector.load %arg4[%c19_503, %c0_504, %c0_505] : memref<25x16x16xf32, #tpu.memory_space<vmem>>, vector<1x16x16xf32>
    %620 = vector.shape_cast %619 : vector<1x16x16xf32> to vector<16x16xf32>
    %cst_506 = arith.constant 0.166666672 : f32
    %621 = vector.broadcast %cst_506 : f32 to vector<16x16xf32>
    %622 = arith.mulf %621, %620 : vector<16x16xf32>
    %623 = arith.addf %618, %622 : vector<16x16xf32>
    %c20_507 = arith.constant 20 : index
    %c0_508 = arith.constant 0 : index
    %c0_509 = arith.constant 0 : index
    %624 = vector.load %arg4[%c20_507, %c0_508, %c0_509] : memref<25x16x16xf32, #tpu.memory_space<vmem>>, vector<1x16x16xf32>
    %625 = vector.shape_cast %624 : vector<1x16x16xf32> to vector<16x16xf32>
    %cst_510 = arith.constant -0.0833333358 : f32
    %626 = vector.broadcast %cst_510 : f32 to vector<16x16xf32>
    %627 = arith.mulf %626, %625 : vector<16x16xf32>
    %628 = arith.addf %623, %627 : vector<16x16xf32>
    %c21_511 = arith.constant 21 : index
    %c0_512 = arith.constant 0 : index
    %c0_513 = arith.constant 0 : index
    %629 = vector.load %arg4[%c21_511, %c0_512, %c0_513] : memref<25x16x16xf32, #tpu.memory_space<vmem>>, vector<1x16x16xf32>
    %630 = vector.shape_cast %629 : vector<1x16x16xf32> to vector<16x16xf32>
    %cst_514 = arith.constant 0.166666672 : f32
    %631 = vector.broadcast %cst_514 : f32 to vector<16x16xf32>
    %632 = arith.mulf %631, %630 : vector<16x16xf32>
    %633 = arith.addf %628, %632 : vector<16x16xf32>
    %c22_515 = arith.constant 22 : index
    %c0_516 = arith.constant 0 : index
    %c0_517 = arith.constant 0 : index
    %634 = vector.load %arg4[%c22_515, %c0_516, %c0_517] : memref<25x16x16xf32, #tpu.memory_space<vmem>>, vector<1x16x16xf32>
    %635 = vector.shape_cast %634 : vector<1x16x16xf32> to vector<16x16xf32>
    %cst_518 = arith.constant -0.166666672 : f32
    %636 = vector.broadcast %cst_518 : f32 to vector<16x16xf32>
    %637 = arith.mulf %636, %635 : vector<16x16xf32>
    %638 = arith.addf %633, %637 : vector<16x16xf32>
    %c23_519 = arith.constant 23 : index
    %c0_520 = arith.constant 0 : index
    %c0_521 = arith.constant 0 : index
    %639 = vector.load %arg4[%c23_519, %c0_520, %c0_521] : memref<25x16x16xf32, #tpu.memory_space<vmem>>, vector<1x16x16xf32>
    %640 = vector.shape_cast %639 : vector<1x16x16xf32> to vector<16x16xf32>
    %cst_522 = arith.constant 0.166666672 : f32
    %641 = vector.broadcast %cst_522 : f32 to vector<16x16xf32>
    %642 = arith.mulf %641, %640 : vector<16x16xf32>
    %643 = arith.addf %638, %642 : vector<16x16xf32>
    %c24_523 = arith.constant 24 : index
    %c0_524 = arith.constant 0 : index
    %c0_525 = arith.constant 0 : index
    %644 = vector.load %arg4[%c24_523, %c0_524, %c0_525] : memref<25x16x16xf32, #tpu.memory_space<vmem>>, vector<1x16x16xf32>
    %645 = vector.shape_cast %644 : vector<1x16x16xf32> to vector<16x16xf32>
    %cst_526 = arith.constant -0.0833333358 : f32
    %646 = vector.broadcast %cst_526 : f32 to vector<16x16xf32>
    %647 = arith.mulf %646, %645 : vector<16x16xf32>
    %648 = arith.addf %643, %647 : vector<16x16xf32>
    %cst_527 = arith.constant -3.000000e+00 : f32
    %cst_528 = arith.constant 3.000000e+00 : f32
    %649 = vector.broadcast %cst_527 : f32 to vector<16x16xf32>
    %650 = arith.maximumf %649, %648 : vector<16x16xf32>
    %651 = vector.broadcast %cst_528 : f32 to vector<16x16xf32>
    %652 = arith.minimumf %651, %650 : vector<16x16xf32>
    %c0_529 = arith.constant 0 : index
    %c21_530 = arith.constant 21 : index
    %c0_531 = arith.constant 0 : index
    %c0_532 = arith.constant 0 : index
    %653 = vector.load %arg3[%c0_529, %c21_530, %c0_531, %c0_532] : memref<1x30x16x16xf32, #tpu.memory_space<vmem>>, vector<1x1x16x16xf32>
    %654 = vector.shape_cast %653 : vector<1x1x16x16xf32> to vector<16x16xf32>
    %655 = vector.shape_cast %652 : vector<16x16xf32> to vector<1x1x16x16xf32>
    tpu.vector_store %arg3[%c0_529, %c21_530, %c0_531, %c0_532], %655 {strides = array<i32>} : memref<1x30x16x16xf32, #tpu.memory_space<vmem>>, vector<1x1x16x16xf32>,
    %c6_533 = arith.constant 6 : index
    %c0_534 = arith.constant 0 : index
    %c0_535 = arith.constant 0 : index
    %656 = vector.load %arg4[%c6_533, %c0_534, %c0_535] : memref<25x16x16xf32, #tpu.memory_space<vmem>>, vector<1x16x16xf32>
    %657 = vector.shape_cast %656 : vector<1x16x16xf32> to vector<16x16xf32>
    %cst_536 = arith.constant -2.500000e-01 : f32
    %658 = vector.broadcast %cst_536 : f32 to vector<16x16xf32>
    %659 = arith.mulf %658, %657 : vector<16x16xf32>
    %c7_537 = arith.constant 7 : index
    %c0_538 = arith.constant 0 : index
    %c0_539 = arith.constant 0 : index
    %660 = vector.load %arg4[%c7_537, %c0_538, %c0_539] : memref<25x16x16xf32, #tpu.memory_space<vmem>>, vector<1x16x16xf32>
    %661 = vector.shape_cast %660 : vector<1x16x16xf32> to vector<16x16xf32>
    %cst_540 = arith.constant 5.000000e-01 : f32
    %662 = vector.broadcast %cst_540 : f32 to vector<16x16xf32>
    %663 = arith.mulf %662, %661 : vector<16x16xf32>
    %664 = arith.addf %659, %663 : vector<16x16xf32>
    %c8_541 = arith.constant 8 : index
    %c0_542 = arith.constant 0 : index
    %c0_543 = arith.constant 0 : index
    %665 = vector.load %arg4[%c8_541, %c0_542, %c0_543] : memref<25x16x16xf32, #tpu.memory_space<vmem>>, vector<1x16x16xf32>
    %666 = vector.shape_cast %665 : vector<1x16x16xf32> to vector<16x16xf32>
    %cst_544 = arith.constant -2.500000e-01 : f32
    %667 = vector.broadcast %cst_544 : f32 to vector<16x16xf32>
    %668 = arith.mulf %667, %666 : vector<16x16xf32>
    %669 = arith.addf %664, %668 : vector<16x16xf32>
    %c11_545 = arith.constant 11 : index
    %c0_546 = arith.constant 0 : index
    %c0_547 = arith.constant 0 : index
    %670 = vector.load %arg4[%c11_545, %c0_546, %c0_547] : memref<25x16x16xf32, #tpu.memory_space<vmem>>, vector<1x16x16xf32>
    %671 = vector.shape_cast %670 : vector<1x16x16xf32> to vector<16x16xf32>
    %cst_548 = arith.constant 5.000000e-01 : f32
    %672 = vector.broadcast %cst_548 : f32 to vector<16x16xf32>
    %673 = arith.mulf %672, %671 : vector<16x16xf32>
    %674 = arith.addf %669, %673 : vector<16x16xf32>
    %c12_549 = arith.constant 12 : index
    %c0_550 = arith.constant 0 : index
    %c0_551 = arith.constant 0 : index
    %675 = vector.load %arg4[%c12_549, %c0_550, %c0_551] : memref<25x16x16xf32, #tpu.memory_space<vmem>>, vector<1x16x16xf32>
    %676 = vector.shape_cast %675 : vector<1x16x16xf32> to vector<16x16xf32>
    %677 = arith.subf %674, %676 : vector<16x16xf32>
    %c13_552 = arith.constant 13 : index
    %c0_553 = arith.constant 0 : index
    %c0_554 = arith.constant 0 : index
    %678 = vector.load %arg4[%c13_552, %c0_553, %c0_554] : memref<25x16x16xf32, #tpu.memory_space<vmem>>, vector<1x16x16xf32>
    %679 = vector.shape_cast %678 : vector<1x16x16xf32> to vector<16x16xf32>
    %cst_555 = arith.constant 5.000000e-01 : f32
    %680 = vector.broadcast %cst_555 : f32 to vector<16x16xf32>
    %681 = arith.mulf %680, %679 : vector<16x16xf32>
    %682 = arith.addf %677, %681 : vector<16x16xf32>
    %cst_556 = arith.constant -3.000000e+00 : f32
    %cst_557 = arith.constant 3.000000e+00 : f32
    %683 = vector.broadcast %cst_556 : f32 to vector<16x16xf32>
    %684 = arith.maximumf %683, %682 : vector<16x16xf32>
    %685 = vector.broadcast %cst_557 : f32 to vector<16x16xf32>
    %686 = arith.minimumf %685, %684 : vector<16x16xf32>
    %c0_558 = arith.constant 0 : index
    %c22_559 = arith.constant 22 : index
    %c0_560 = arith.constant 0 : index
    %c0_561 = arith.constant 0 : index
    %687 = vector.load %arg3[%c0_558, %c22_559, %c0_560, %c0_561] : memref<1x30x16x16xf32, #tpu.memory_space<vmem>>, vector<1x1x16x16xf32>
    %688 = vector.shape_cast %687 : vector<1x1x16x16xf32> to vector<16x16xf32>
    %689 = vector.shape_cast %686 : vector<16x16xf32> to vector<1x1x16x16xf32>
    tpu.vector_store %arg3[%c0_558, %c22_559, %c0_560, %c0_561], %689 {strides = array<i32>} : memref<1x30x16x16xf32, #tpu.memory_space<vmem>>, vector<1x1x16x16xf32>,
    %c6_562 = arith.constant 6 : index
    %c0_563 = arith.constant 0 : index
    %c0_564 = arith.constant 0 : index
    %690 = vector.load %arg4[%c6_562, %c0_563, %c0_564] : memref<25x16x16xf32, #tpu.memory_space<vmem>>, vector<1x16x16xf32>
    %691 = vector.shape_cast %690 : vector<1x16x16xf32> to vector<16x16xf32>
    %cst_565 = arith.constant -2.500000e-01 : f32
    %692 = vector.broadcast %cst_565 : f32 to vector<16x16xf32>
    %693 = arith.mulf %692, %691 : vector<16x16xf32>
    %c7_566 = arith.constant 7 : index
    %c0_567 = arith.constant 0 : index
    %c0_568 = arith.constant 0 : index
    %694 = vector.load %arg4[%c7_566, %c0_567, %c0_568] : memref<25x16x16xf32, #tpu.memory_space<vmem>>, vector<1x16x16xf32>
    %695 = vector.shape_cast %694 : vector<1x16x16xf32> to vector<16x16xf32>
    %cst_569 = arith.constant 5.000000e-01 : f32
    %696 = vector.broadcast %cst_569 : f32 to vector<16x16xf32>
    %697 = arith.mulf %696, %695 : vector<16x16xf32>
    %698 = arith.addf %693, %697 : vector<16x16xf32>
    %c11_570 = arith.constant 11 : index
    %c0_571 = arith.constant 0 : index
    %c0_572 = arith.constant 0 : index
    %699 = vector.load %arg4[%c11_570, %c0_571, %c0_572] : memref<25x16x16xf32, #tpu.memory_space<vmem>>, vector<1x16x16xf32>
    %700 = vector.shape_cast %699 : vector<1x16x16xf32> to vector<16x16xf32>
    %cst_573 = arith.constant 5.000000e-01 : f32
    %701 = vector.broadcast %cst_573 : f32 to vector<16x16xf32>
    %702 = arith.mulf %701, %700 : vector<16x16xf32>
    %703 = arith.addf %698, %702 : vector<16x16xf32>
    %c12_574 = arith.constant 12 : index
    %c0_575 = arith.constant 0 : index
    %c0_576 = arith.constant 0 : index
    %704 = vector.load %arg4[%c12_574, %c0_575, %c0_576] : memref<25x16x16xf32, #tpu.memory_space<vmem>>, vector<1x16x16xf32>
    %705 = vector.shape_cast %704 : vector<1x16x16xf32> to vector<16x16xf32>
    %706 = arith.subf %703, %705 : vector<16x16xf32>
    %c16_577 = arith.constant 16 : index
    %c0_578 = arith.constant 0 : index
    %c0_579 = arith.constant 0 : index
    %707 = vector.load %arg4[%c16_577, %c0_578, %c0_579] : memref<25x16x16xf32, #tpu.memory_space<vmem>>, vector<1x16x16xf32>
    %708 = vector.shape_cast %707 : vector<1x16x16xf32> to vector<16x16xf32>
    %cst_580 = arith.constant -2.500000e-01 : f32
    %709 = vector.broadcast %cst_580 : f32 to vector<16x16xf32>
    %710 = arith.mulf %709, %708 : vector<16x16xf32>
    %711 = arith.addf %706, %710 : vector<16x16xf32>
    %c17_581 = arith.constant 17 : index
    %c0_582 = arith.constant 0 : index
    %c0_583 = arith.constant 0 : index
    %712 = vector.load %arg4[%c17_581, %c0_582, %c0_583] : memref<25x16x16xf32, #tpu.memory_space<vmem>>, vector<1x16x16xf32>
    %713 = vector.shape_cast %712 : vector<1x16x16xf32> to vector<16x16xf32>
    %cst_584 = arith.constant 5.000000e-01 : f32
    %714 = vector.broadcast %cst_584 : f32 to vector<16x16xf32>
    %715 = arith.mulf %714, %713 : vector<16x16xf32>
    %716 = arith.addf %711, %715 : vector<16x16xf32>
    %cst_585 = arith.constant -3.000000e+00 : f32
    %cst_586 = arith.constant 3.000000e+00 : f32
    %717 = vector.broadcast %cst_585 : f32 to vector<16x16xf32>
    %718 = arith.maximumf %717, %716 : vector<16x16xf32>
    %719 = vector.broadcast %cst_586 : f32 to vector<16x16xf32>
    %720 = arith.minimumf %719, %718 : vector<16x16xf32>
    %c0_587 = arith.constant 0 : index
    %c23_588 = arith.constant 23 : index
    %c0_589 = arith.constant 0 : index
    %c0_590 = arith.constant 0 : index
    %721 = vector.load %arg3[%c0_587, %c23_588, %c0_589, %c0_590] : memref<1x30x16x16xf32, #tpu.memory_space<vmem>>, vector<1x1x16x16xf32>
    %722 = vector.shape_cast %721 : vector<1x1x16x16xf32> to vector<16x16xf32>
    %723 = vector.shape_cast %720 : vector<16x16xf32> to vector<1x1x16x16xf32>
    tpu.vector_store %arg3[%c0_587, %c23_588, %c0_589, %c0_590], %723 {strides = array<i32>} : memref<1x30x16x16xf32, #tpu.memory_space<vmem>>, vector<1x1x16x16xf32>,
    %c11_591 = arith.constant 11 : index
    %c0_592 = arith.constant 0 : index
    %c0_593 = arith.constant 0 : index
    %724 = vector.load %arg4[%c11_591, %c0_592, %c0_593] : memref<25x16x16xf32, #tpu.memory_space<vmem>>, vector<1x16x16xf32>
    %725 = vector.shape_cast %724 : vector<1x16x16xf32> to vector<16x16xf32>
    %cst_594 = arith.constant 5.000000e-01 : f32
    %726 = vector.broadcast %cst_594 : f32 to vector<16x16xf32>
    %727 = arith.mulf %726, %725 : vector<16x16xf32>
    %c12_595 = arith.constant 12 : index
    %c0_596 = arith.constant 0 : index
    %c0_597 = arith.constant 0 : index
    %728 = vector.load %arg4[%c12_595, %c0_596, %c0_597] : memref<25x16x16xf32, #tpu.memory_space<vmem>>, vector<1x16x16xf32>
    %729 = vector.shape_cast %728 : vector<1x16x16xf32> to vector<16x16xf32>
    %730 = arith.subf %727, %729 : vector<16x16xf32>
    %c13_598 = arith.constant 13 : index
    %c0_599 = arith.constant 0 : index
    %c0_600 = arith.constant 0 : index
    %731 = vector.load %arg4[%c13_598, %c0_599, %c0_600] : memref<25x16x16xf32, #tpu.memory_space<vmem>>, vector<1x16x16xf32>
    %732 = vector.shape_cast %731 : vector<1x16x16xf32> to vector<16x16xf32>
    %cst_601 = arith.constant 5.000000e-01 : f32
    %733 = vector.broadcast %cst_601 : f32 to vector<16x16xf32>
    %734 = arith.mulf %733, %732 : vector<16x16xf32>
    %735 = arith.addf %730, %734 : vector<16x16xf32>
    %c16_602 = arith.constant 16 : index
    %c0_603 = arith.constant 0 : index
    %c0_604 = arith.constant 0 : index
    %736 = vector.load %arg4[%c16_602, %c0_603, %c0_604] : memref<25x16x16xf32, #tpu.memory_space<vmem>>, vector<1x16x16xf32>
    %737 = vector.shape_cast %736 : vector<1x16x16xf32> to vector<16x16xf32>
    %cst_605 = arith.constant -2.500000e-01 : f32
    %738 = vector.broadcast %cst_605 : f32 to vector<16x16xf32>
    %739 = arith.mulf %738, %737 : vector<16x16xf32>
    %740 = arith.addf %735, %739 : vector<16x16xf32>
    %c17_606 = arith.constant 17 : index
    %c0_607 = arith.constant 0 : index
    %c0_608 = arith.constant 0 : index
    %741 = vector.load %arg4[%c17_606, %c0_607, %c0_608] : memref<25x16x16xf32, #tpu.memory_space<vmem>>, vector<1x16x16xf32>
    %742 = vector.shape_cast %741 : vector<1x16x16xf32> to vector<16x16xf32>
    %cst_609 = arith.constant 5.000000e-01 : f32
    %743 = vector.broadcast %cst_609 : f32 to vector<16x16xf32>
    %744 = arith.mulf %743, %742 : vector<16x16xf32>
    %745 = arith.addf %740, %744 : vector<16x16xf32>
    %c18_610 = arith.constant 18 : index
    %c0_611 = arith.constant 0 : index
    %c0_612 = arith.constant 0 : index
    %746 = vector.load %arg4[%c18_610, %c0_611, %c0_612] : memref<25x16x16xf32, #tpu.memory_space<vmem>>, vector<1x16x16xf32>
    %747 = vector.shape_cast %746 : vector<1x16x16xf32> to vector<16x16xf32>
    %cst_613 = arith.constant -2.500000e-01 : f32
    %748 = vector.broadcast %cst_613 : f32 to vector<16x16xf32>
    %749 = arith.mulf %748, %747 : vector<16x16xf32>
    %750 = arith.addf %745, %749 : vector<16x16xf32>
    %cst_614 = arith.constant -3.000000e+00 : f32
    %cst_615 = arith.constant 3.000000e+00 : f32
    %751 = vector.broadcast %cst_614 : f32 to vector<16x16xf32>
    %752 = arith.maximumf %751, %750 : vector<16x16xf32>
    %753 = vector.broadcast %cst_615 : f32 to vector<16x16xf32>
    %754 = arith.minimumf %753, %752 : vector<16x16xf32>
    %c0_616 = arith.constant 0 : index
    %c24_617 = arith.constant 24 : index
    %c0_618 = arith.constant 0 : index
    %c0_619 = arith.constant 0 : index
    %755 = vector.load %arg3[%c0_616, %c24_617, %c0_618, %c0_619] : memref<1x30x16x16xf32, #tpu.memory_space<vmem>>, vector<1x1x16x16xf32>
    %756 = vector.shape_cast %755 : vector<1x1x16x16xf32> to vector<16x16xf32>
    %757 = vector.shape_cast %754 : vector<16x16xf32> to vector<1x1x16x16xf32>
    tpu.vector_store %arg3[%c0_616, %c24_617, %c0_618, %c0_619], %757 {strides = array<i32>} : memref<1x30x16x16xf32, #tpu.memory_space<vmem>>, vector<1x1x16x16xf32>,
    %c7_620 = arith.constant 7 : index
    %c0_621 = arith.constant 0 : index
    %c0_622 = arith.constant 0 : index
    %758 = vector.load %arg4[%c7_620, %c0_621, %c0_622] : memref<25x16x16xf32, #tpu.memory_space<vmem>>, vector<1x16x16xf32>
    %759 = vector.shape_cast %758 : vector<1x16x16xf32> to vector<16x16xf32>
    %cst_623 = arith.constant 5.000000e-01 : f32
    %760 = vector.broadcast %cst_623 : f32 to vector<16x16xf32>
    %761 = arith.mulf %760, %759 : vector<16x16xf32>
    %c8_624 = arith.constant 8 : index
    %c0_625 = arith.constant 0 : index
    %c0_626 = arith.constant 0 : index
    %762 = vector.load %arg4[%c8_624, %c0_625, %c0_626] : memref<25x16x16xf32, #tpu.memory_space<vmem>>, vector<1x16x16xf32>
    %763 = vector.shape_cast %762 : vector<1x16x16xf32> to vector<16x16xf32>
    %cst_627 = arith.constant -2.500000e-01 : f32
    %764 = vector.broadcast %cst_627 : f32 to vector<16x16xf32>
    %765 = arith.mulf %764, %763 : vector<16x16xf32>
    %766 = arith.addf %761, %765 : vector<16x16xf32>
    %c12_628 = arith.constant 12 : index
    %c0_629 = arith.constant 0 : index
    %c0_630 = arith.constant 0 : index
    %767 = vector.load %arg4[%c12_628, %c0_629, %c0_630] : memref<25x16x16xf32, #tpu.memory_space<vmem>>, vector<1x16x16xf32>
    %768 = vector.shape_cast %767 : vector<1x16x16xf32> to vector<16x16xf32>
    %769 = arith.subf %766, %768 : vector<16x16xf32>
    %c13_631 = arith.constant 13 : index
    %c0_632 = arith.constant 0 : index
    %c0_633 = arith.constant 0 : index
    %770 = vector.load %arg4[%c13_631, %c0_632, %c0_633] : memref<25x16x16xf32, #tpu.memory_space<vmem>>, vector<1x16x16xf32>
    %771 = vector.shape_cast %770 : vector<1x16x16xf32> to vector<16x16xf32>
    %cst_634 = arith.constant 5.000000e-01 : f32
    %772 = vector.broadcast %cst_634 : f32 to vector<16x16xf32>
    %773 = arith.mulf %772, %771 : vector<16x16xf32>
    %774 = arith.addf %769, %773 : vector<16x16xf32>
    %c17_635 = arith.constant 17 : index
    %c0_636 = arith.constant 0 : index
    %c0_637 = arith.constant 0 : index
    %775 = vector.load %arg4[%c17_635, %c0_636, %c0_637] : memref<25x16x16xf32, #tpu.memory_space<vmem>>, vector<1x16x16xf32>
    %776 = vector.shape_cast %775 : vector<1x16x16xf32> to vector<16x16xf32>
    %cst_638 = arith.constant 5.000000e-01 : f32
    %777 = vector.broadcast %cst_638 : f32 to vector<16x16xf32>
    %778 = arith.mulf %777, %776 : vector<16x16xf32>
    %779 = arith.addf %774, %778 : vector<16x16xf32>
    %c18_639 = arith.constant 18 : index
    %c0_640 = arith.constant 0 : index
    %c0_641 = arith.constant 0 : index
    %780 = vector.load %arg4[%c18_639, %c0_640, %c0_641] : memref<25x16x16xf32, #tpu.memory_space<vmem>>, vector<1x16x16xf32>
    %781 = vector.shape_cast %780 : vector<1x16x16xf32> to vector<16x16xf32>
    %cst_642 = arith.constant -2.500000e-01 : f32
    %782 = vector.broadcast %cst_642 : f32 to vector<16x16xf32>
    %783 = arith.mulf %782, %781 : vector<16x16xf32>
    %784 = arith.addf %779, %783 : vector<16x16xf32>
    %cst_643 = arith.constant -3.000000e+00 : f32
    %cst_644 = arith.constant 3.000000e+00 : f32
    %785 = vector.broadcast %cst_643 : f32 to vector<16x16xf32>
    %786 = arith.maximumf %785, %784 : vector<16x16xf32>
    %787 = vector.broadcast %cst_644 : f32 to vector<16x16xf32>
    %788 = arith.minimumf %787, %786 : vector<16x16xf32>
    %c0_645 = arith.constant 0 : index
    %c25 = arith.constant 25 : index
    %c0_646 = arith.constant 0 : index
    %c0_647 = arith.constant 0 : index
    %789 = vector.load %arg3[%c0_645, %c25, %c0_646, %c0_647] : memref<1x30x16x16xf32, #tpu.memory_space<vmem>>, vector<1x1x16x16xf32>
    %790 = vector.shape_cast %789 : vector<1x1x16x16xf32> to vector<16x16xf32>
    %791 = vector.shape_cast %788 : vector<16x16xf32> to vector<1x1x16x16xf32>
    tpu.vector_store %arg3[%c0_645, %c25, %c0_646, %c0_647], %791 {strides = array<i32>} : memref<1x30x16x16xf32, #tpu.memory_space<vmem>>, vector<1x1x16x16xf32>,
    %c0_648 = arith.constant 0 : index
    %c0_649 = arith.constant 0 : index
    %c0_650 = arith.constant 0 : index
    %792 = vector.load %arg4[%c0_648, %c0_649, %c0_650] : memref<25x16x16xf32, #tpu.memory_space<vmem>>, vector<1x16x16xf32>
    %793 = vector.shape_cast %792 : vector<1x16x16xf32> to vector<16x16xf32>
    %cst_651 = arith.constant -0.0833333358 : f32
    %794 = vector.broadcast %cst_651 : f32 to vector<16x16xf32>
    %795 = arith.mulf %794, %793 : vector<16x16xf32>
    %c1_652 = arith.constant 1 : index
    %c0_653 = arith.constant 0 : index
    %c0_654 = arith.constant 0 : index
    %796 = vector.load %arg4[%c1_652, %c0_653, %c0_654] : memref<25x16x16xf32, #tpu.memory_space<vmem>>, vector<1x16x16xf32>
    %797 = vector.shape_cast %796 : vector<1x16x16xf32> to vector<16x16xf32>
    %cst_655 = arith.constant 0.166666672 : f32
    %798 = vector.broadcast %cst_655 : f32 to vector<16x16xf32>
    %799 = arith.mulf %798, %797 : vector<16x16xf32>
    %800 = arith.addf %795, %799 : vector<16x16xf32>
    %c2_656 = arith.constant 2 : index
    %c0_657 = arith.constant 0 : index
    %c0_658 = arith.constant 0 : index
    %801 = vector.load %arg4[%c2_656, %c0_657, %c0_658] : memref<25x16x16xf32, #tpu.memory_space<vmem>>, vector<1x16x16xf32>
    %802 = vector.shape_cast %801 : vector<1x16x16xf32> to vector<16x16xf32>
    %cst_659 = arith.constant -0.166666672 : f32
    %803 = vector.broadcast %cst_659 : f32 to vector<16x16xf32>
    %804 = arith.mulf %803, %802 : vector<16x16xf32>
    %805 = arith.addf %800, %804 : vector<16x16xf32>
    %c3_660 = arith.constant 3 : index
    %c0_661 = arith.constant 0 : index
    %c0_662 = arith.constant 0 : index
    %806 = vector.load %arg4[%c3_660, %c0_661, %c0_662] : memref<25x16x16xf32, #tpu.memory_space<vmem>>, vector<1x16x16xf32>
    %807 = vector.shape_cast %806 : vector<1x16x16xf32> to vector<16x16xf32>
    %cst_663 = arith.constant 0.166666672 : f32
    %808 = vector.broadcast %cst_663 : f32 to vector<16x16xf32>
    %809 = arith.mulf %808, %807 : vector<16x16xf32>
    %810 = arith.addf %805, %809 : vector<16x16xf32>
    %c4_664 = arith.constant 4 : index
    %c0_665 = arith.constant 0 : index
    %c0_666 = arith.constant 0 : index
    %811 = vector.load %arg4[%c4_664, %c0_665, %c0_666] : memref<25x16x16xf32, #tpu.memory_space<vmem>>, vector<1x16x16xf32>
    %812 = vector.shape_cast %811 : vector<1x16x16xf32> to vector<16x16xf32>
    %cst_667 = arith.constant -0.0833333358 : f32
    %813 = vector.broadcast %cst_667 : f32 to vector<16x16xf32>
    %814 = arith.mulf %813, %812 : vector<16x16xf32>
    %815 = arith.addf %810, %814 : vector<16x16xf32>
    %c5_668 = arith.constant 5 : index
    %c0_669 = arith.constant 0 : index
    %c0_670 = arith.constant 0 : index
    %816 = vector.load %arg4[%c5_668, %c0_669, %c0_670] : memref<25x16x16xf32, #tpu.memory_space<vmem>>, vector<1x16x16xf32>
    %817 = vector.shape_cast %816 : vector<1x16x16xf32> to vector<16x16xf32>
    %cst_671 = arith.constant 0.166666672 : f32
    %818 = vector.broadcast %cst_671 : f32 to vector<16x16xf32>
    %819 = arith.mulf %818, %817 : vector<16x16xf32>
    %820 = arith.addf %815, %819 : vector<16x16xf32>
    %c6_672 = arith.constant 6 : index
    %c0_673 = arith.constant 0 : index
    %c0_674 = arith.constant 0 : index
    %821 = vector.load %arg4[%c6_672, %c0_673, %c0_674] : memref<25x16x16xf32, #tpu.memory_space<vmem>>, vector<1x16x16xf32>
    %822 = vector.shape_cast %821 : vector<1x16x16xf32> to vector<16x16xf32>
    %cst_675 = arith.constant -5.000000e-01 : f32
    %823 = vector.broadcast %cst_675 : f32 to vector<16x16xf32>
    %824 = arith.mulf %823, %822 : vector<16x16xf32>
    %825 = arith.addf %820, %824 : vector<16x16xf32>
    %c7_676 = arith.constant 7 : index
    %c0_677 = arith.constant 0 : index
    %c0_678 = arith.constant 0 : index
    %826 = vector.load %arg4[%c7_676, %c0_677, %c0_678] : memref<25x16x16xf32, #tpu.memory_space<vmem>>, vector<1x16x16xf32>
    %827 = vector.shape_cast %826 : vector<1x16x16xf32> to vector<16x16xf32>
    %cst_679 = arith.constant 0.666666686 : f32
    %828 = vector.broadcast %cst_679 : f32 to vector<16x16xf32>
    %829 = arith.mulf %828, %827 : vector<16x16xf32>
    %830 = arith.addf %825, %829 : vector<16x16xf32>
    %c8_680 = arith.constant 8 : index
    %c0_681 = arith.constant 0 : index
    %c0_682 = arith.constant 0 : index
    %831 = vector.load %arg4[%c8_680, %c0_681, %c0_682] : memref<25x16x16xf32, #tpu.memory_space<vmem>>, vector<1x16x16xf32>
    %832 = vector.shape_cast %831 : vector<1x16x16xf32> to vector<16x16xf32>
    %cst_683 = arith.constant -5.000000e-01 : f32
    %833 = vector.broadcast %cst_683 : f32 to vector<16x16xf32>
    %834 = arith.mulf %833, %832 : vector<16x16xf32>
    %835 = arith.addf %830, %834 : vector<16x16xf32>
    %c9_684 = arith.constant 9 : index
    %c0_685 = arith.constant 0 : index
    %c0_686 = arith.constant 0 : index
    %836 = vector.load %arg4[%c9_684, %c0_685, %c0_686] : memref<25x16x16xf32, #tpu.memory_space<vmem>>, vector<1x16x16xf32>
    %837 = vector.shape_cast %836 : vector<1x16x16xf32> to vector<16x16xf32>
    %cst_687 = arith.constant 0.166666672 : f32
    %838 = vector.broadcast %cst_687 : f32 to vector<16x16xf32>
    %839 = arith.mulf %838, %837 : vector<16x16xf32>
    %840 = arith.addf %835, %839 : vector<16x16xf32>
    %c10_688 = arith.constant 10 : index
    %c0_689 = arith.constant 0 : index
    %c0_690 = arith.constant 0 : index
    %841 = vector.load %arg4[%c10_688, %c0_689, %c0_690] : memref<25x16x16xf32, #tpu.memory_space<vmem>>, vector<1x16x16xf32>
    %842 = vector.shape_cast %841 : vector<1x16x16xf32> to vector<16x16xf32>
    %cst_691 = arith.constant -0.166666672 : f32
    %843 = vector.broadcast %cst_691 : f32 to vector<16x16xf32>
    %844 = arith.mulf %843, %842 : vector<16x16xf32>
    %845 = arith.addf %840, %844 : vector<16x16xf32>
    %c11_692 = arith.constant 11 : index
    %c0_693 = arith.constant 0 : index
    %c0_694 = arith.constant 0 : index
    %846 = vector.load %arg4[%c11_692, %c0_693, %c0_694] : memref<25x16x16xf32, #tpu.memory_space<vmem>>, vector<1x16x16xf32>
    %847 = vector.shape_cast %846 : vector<1x16x16xf32> to vector<16x16xf32>
    %cst_695 = arith.constant 0.666666686 : f32
    %848 = vector.broadcast %cst_695 : f32 to vector<16x16xf32>
    %849 = arith.mulf %848, %847 : vector<16x16xf32>
    %850 = arith.addf %845, %849 : vector<16x16xf32>
    %c12_696 = arith.constant 12 : index
    %c0_697 = arith.constant 0 : index
    %c0_698 = arith.constant 0 : index
    %851 = vector.load %arg4[%c12_696, %c0_697, %c0_698] : memref<25x16x16xf32, #tpu.memory_space<vmem>>, vector<1x16x16xf32>
    %852 = vector.shape_cast %851 : vector<1x16x16xf32> to vector<16x16xf32>
    %853 = arith.subf %850, %852 : vector<16x16xf32>
    %c13_699 = arith.constant 13 : index
    %c0_700 = arith.constant 0 : index
    %c0_701 = arith.constant 0 : index
    %854 = vector.load %arg4[%c13_699, %c0_700, %c0_701] : memref<25x16x16xf32, #tpu.memory_space<vmem>>, vector<1x16x16xf32>
    %855 = vector.shape_cast %854 : vector<1x16x16xf32> to vector<16x16xf32>
    %cst_702 = arith.constant 0.666666686 : f32
    %856 = vector.broadcast %cst_702 : f32 to vector<16x16xf32>
    %857 = arith.mulf %856, %855 : vector<16x16xf32>
    %858 = arith.addf %853, %857 : vector<16x16xf32>
    %c14_703 = arith.constant 14 : index
    %c0_704 = arith.constant 0 : index
    %c0_705 = arith.constant 0 : index
    %859 = vector.load %arg4[%c14_703, %c0_704, %c0_705] : memref<25x16x16xf32, #tpu.memory_space<vmem>>, vector<1x16x16xf32>
    %860 = vector.shape_cast %859 : vector<1x16x16xf32> to vector<16x16xf32>
    %cst_706 = arith.constant -0.166666672 : f32
    %861 = vector.broadcast %cst_706 : f32 to vector<16x16xf32>
    %862 = arith.mulf %861, %860 : vector<16x16xf32>
    %863 = arith.addf %858, %862 : vector<16x16xf32>
    %cst_707 = arith.constant -3.000000e+00 : f32
    %cst_708 = arith.constant 3.000000e+00 : f32
    %864 = vector.broadcast %cst_707 : f32 to vector<16x16xf32>
    %865 = arith.maximumf %864, %863 : vector<16x16xf32>
    %866 = vector.broadcast %cst_708 : f32 to vector<16x16xf32>
    %867 = arith.minimumf %866, %865 : vector<16x16xf32>
    %c0_709 = arith.constant 0 : index
    %c26 = arith.constant 26 : index
    %c0_710 = arith.constant 0 : index
    %c0_711 = arith.constant 0 : index
    %868 = vector.load %arg3[%c0_709, %c26, %c0_710, %c0_711] : memref<1x30x16x16xf32, #tpu.memory_space<vmem>>, vector<1x1x16x16xf32>
    %869 = vector.shape_cast %868 : vector<1x1x16x16xf32> to vector<16x16xf32>
    %870 = vector.shape_cast %867 : vector<16x16xf32> to vector<1x1x16x16xf32>
    tpu.vector_store %arg3[%c0_709, %c26, %c0_710, %c0_711], %870 {strides = array<i32>} : memref<1x30x16x16xf32, #tpu.memory_space<vmem>>, vector<1x1x16x16xf32>,
    %c0_712 = arith.constant 0 : index
    %c0_713 = arith.constant 0 : index
    %c0_714 = arith.constant 0 : index
    %871 = vector.load %arg4[%c0_712, %c0_713, %c0_714] : memref<25x16x16xf32, #tpu.memory_space<vmem>>, vector<1x16x16xf32>
    %872 = vector.shape_cast %871 : vector<1x16x16xf32> to vector<16x16xf32>
    %cst_715 = arith.constant -0.0833333358 : f32
    %873 = vector.broadcast %cst_715 : f32 to vector<16x16xf32>
    %874 = arith.mulf %873, %872 : vector<16x16xf32>
    %c1_716 = arith.constant 1 : index
    %c0_717 = arith.constant 0 : index
    %c0_718 = arith.constant 0 : index
    %875 = vector.load %arg4[%c1_716, %c0_717, %c0_718] : memref<25x16x16xf32, #tpu.memory_space<vmem>>, vector<1x16x16xf32>
    %876 = vector.shape_cast %875 : vector<1x16x16xf32> to vector<16x16xf32>
    %cst_719 = arith.constant 0.166666672 : f32
    %877 = vector.broadcast %cst_719 : f32 to vector<16x16xf32>
    %878 = arith.mulf %877, %876 : vector<16x16xf32>
    %879 = arith.addf %874, %878 : vector<16x16xf32>
    %c2_720 = arith.constant 2 : index
    %c0_721 = arith.constant 0 : index
    %c0_722 = arith.constant 0 : index
    %880 = vector.load %arg4[%c2_720, %c0_721, %c0_722] : memref<25x16x16xf32, #tpu.memory_space<vmem>>, vector<1x16x16xf32>
    %881 = vector.shape_cast %880 : vector<1x16x16xf32> to vector<16x16xf32>
    %cst_723 = arith.constant -0.166666672 : f32
    %882 = vector.broadcast %cst_723 : f32 to vector<16x16xf32>
    %883 = arith.mulf %882, %881 : vector<16x16xf32>
    %884 = arith.addf %879, %883 : vector<16x16xf32>
    %c5_724 = arith.constant 5 : index
    %c0_725 = arith.constant 0 : index
    %c0_726 = arith.constant 0 : index
    %885 = vector.load %arg4[%c5_724, %c0_725, %c0_726] : memref<25x16x16xf32, #tpu.memory_space<vmem>>, vector<1x16x16xf32>
    %886 = vector.shape_cast %885 : vector<1x16x16xf32> to vector<16x16xf32>
    %cst_727 = arith.constant 0.166666672 : f32
    %887 = vector.broadcast %cst_727 : f32 to vector<16x16xf32>
    %888 = arith.mulf %887, %886 : vector<16x16xf32>
    %889 = arith.addf %884, %888 : vector<16x16xf32>
    %c6_728 = arith.constant 6 : index
    %c0_729 = arith.constant 0 : index
    %c0_730 = arith.constant 0 : index
    %890 = vector.load %arg4[%c6_728, %c0_729, %c0_730] : memref<25x16x16xf32, #tpu.memory_space<vmem>>, vector<1x16x16xf32>
    %891 = vector.shape_cast %890 : vector<1x16x16xf32> to vector<16x16xf32>
    %cst_731 = arith.constant -5.000000e-01 : f32
    %892 = vector.broadcast %cst_731 : f32 to vector<16x16xf32>
    %893 = arith.mulf %892, %891 : vector<16x16xf32>
    %894 = arith.addf %889, %893 : vector<16x16xf32>
    %c7_732 = arith.constant 7 : index
    %c0_733 = arith.constant 0 : index
    %c0_734 = arith.constant 0 : index
    %895 = vector.load %arg4[%c7_732, %c0_733, %c0_734] : memref<25x16x16xf32, #tpu.memory_space<vmem>>, vector<1x16x16xf32>
    %896 = vector.shape_cast %895 : vector<1x16x16xf32> to vector<16x16xf32>
    %cst_735 = arith.constant 0.666666686 : f32
    %897 = vector.broadcast %cst_735 : f32 to vector<16x16xf32>
    %898 = arith.mulf %897, %896 : vector<16x16xf32>
    %899 = arith.addf %894, %898 : vector<16x16xf32>
    %c10_736 = arith.constant 10 : index
    %c0_737 = arith.constant 0 : index
    %c0_738 = arith.constant 0 : index
    %900 = vector.load %arg4[%c10_736, %c0_737, %c0_738] : memref<25x16x16xf32, #tpu.memory_space<vmem>>, vector<1x16x16xf32>
    %901 = vector.shape_cast %900 : vector<1x16x16xf32> to vector<16x16xf32>
    %cst_739 = arith.constant -0.166666672 : f32
    %902 = vector.broadcast %cst_739 : f32 to vector<16x16xf32>
    %903 = arith.mulf %902, %901 : vector<16x16xf32>
    %904 = arith.addf %899, %903 : vector<16x16xf32>
    %c11_740 = arith.constant 11 : index
    %c0_741 = arith.constant 0 : index
    %c0_742 = arith.constant 0 : index
    %905 = vector.load %arg4[%c11_740, %c0_741, %c0_742] : memref<25x16x16xf32, #tpu.memory_space<vmem>>, vector<1x16x16xf32>
    %906 = vector.shape_cast %905 : vector<1x16x16xf32> to vector<16x16xf32>
    %cst_743 = arith.constant 0.666666686 : f32
    %907 = vector.broadcast %cst_743 : f32 to vector<16x16xf32>
    %908 = arith.mulf %907, %906 : vector<16x16xf32>
    %909 = arith.addf %904, %908 : vector<16x16xf32>
    %c12_744 = arith.constant 12 : index
    %c0_745 = arith.constant 0 : index
    %c0_746 = arith.constant 0 : index
    %910 = vector.load %arg4[%c12_744, %c0_745, %c0_746] : memref<25x16x16xf32, #tpu.memory_space<vmem>>, vector<1x16x16xf32>
    %911 = vector.shape_cast %910 : vector<1x16x16xf32> to vector<16x16xf32>
    %912 = arith.subf %909, %911 : vector<16x16xf32>
    %c15_747 = arith.constant 15 : index
    %c0_748 = arith.constant 0 : index
    %c0_749 = arith.constant 0 : index
    %913 = vector.load %arg4[%c15_747, %c0_748, %c0_749] : memref<25x16x16xf32, #tpu.memory_space<vmem>>, vector<1x16x16xf32>
    %914 = vector.shape_cast %913 : vector<1x16x16xf32> to vector<16x16xf32>
    %cst_750 = arith.constant 0.166666672 : f32
    %915 = vector.broadcast %cst_750 : f32 to vector<16x16xf32>
    %916 = arith.mulf %915, %914 : vector<16x16xf32>
    %917 = arith.addf %912, %916 : vector<16x16xf32>
    %c16_751 = arith.constant 16 : index
    %c0_752 = arith.constant 0 : index
    %c0_753 = arith.constant 0 : index
    %918 = vector.load %arg4[%c16_751, %c0_752, %c0_753] : memref<25x16x16xf32, #tpu.memory_space<vmem>>, vector<1x16x16xf32>
    %919 = vector.shape_cast %918 : vector<1x16x16xf32> to vector<16x16xf32>
    %cst_754 = arith.constant -5.000000e-01 : f32
    %920 = vector.broadcast %cst_754 : f32 to vector<16x16xf32>
    %921 = arith.mulf %920, %919 : vector<16x16xf32>
    %922 = arith.addf %917, %921 : vector<16x16xf32>
    %c17_755 = arith.constant 17 : index
    %c0_756 = arith.constant 0 : index
    %c0_757 = arith.constant 0 : index
    %923 = vector.load %arg4[%c17_755, %c0_756, %c0_757] : memref<25x16x16xf32, #tpu.memory_space<vmem>>, vector<1x16x16xf32>
    %924 = vector.shape_cast %923 : vector<1x16x16xf32> to vector<16x16xf32>
    %cst_758 = arith.constant 0.666666686 : f32
    %925 = vector.broadcast %cst_758 : f32 to vector<16x16xf32>
    %926 = arith.mulf %925, %924 : vector<16x16xf32>
    %927 = arith.addf %922, %926 : vector<16x16xf32>
    %c20_759 = arith.constant 20 : index
    %c0_760 = arith.constant 0 : index
    %c0_761 = arith.constant 0 : index
    %928 = vector.load %arg4[%c20_759, %c0_760, %c0_761] : memref<25x16x16xf32, #tpu.memory_space<vmem>>, vector<1x16x16xf32>
    %929 = vector.shape_cast %928 : vector<1x16x16xf32> to vector<16x16xf32>
    %cst_762 = arith.constant -0.0833333358 : f32
    %930 = vector.broadcast %cst_762 : f32 to vector<16x16xf32>
    %931 = arith.mulf %930, %929 : vector<16x16xf32>
    %932 = arith.addf %927, %931 : vector<16x16xf32>
    %c21_763 = arith.constant 21 : index
    %c0_764 = arith.constant 0 : index
    %c0_765 = arith.constant 0 : index
    %933 = vector.load %arg4[%c21_763, %c0_764, %c0_765] : memref<25x16x16xf32, #tpu.memory_space<vmem>>, vector<1x16x16xf32>
    %934 = vector.shape_cast %933 : vector<1x16x16xf32> to vector<16x16xf32>
    %cst_766 = arith.constant 0.166666672 : f32
    %935 = vector.broadcast %cst_766 : f32 to vector<16x16xf32>
    %936 = arith.mulf %935, %934 : vector<16x16xf32>
    %937 = arith.addf %932, %936 : vector<16x16xf32>
    %c22_767 = arith.constant 22 : index
    %c0_768 = arith.constant 0 : index
    %c0_769 = arith.constant 0 : index
    %938 = vector.load %arg4[%c22_767, %c0_768, %c0_769] : memref<25x16x16xf32, #tpu.memory_space<vmem>>, vector<1x16x16xf32>
    %939 = vector.shape_cast %938 : vector<1x16x16xf32> to vector<16x16xf32>
    %cst_770 = arith.constant -0.166666672 : f32
    %940 = vector.broadcast %cst_770 : f32 to vector<16x16xf32>
    %941 = arith.mulf %940, %939 : vector<16x16xf32>
    %942 = arith.addf %937, %941 : vector<16x16xf32>
    %cst_771 = arith.constant -3.000000e+00 : f32
    %cst_772 = arith.constant 3.000000e+00 : f32
    %943 = vector.broadcast %cst_771 : f32 to vector<16x16xf32>
    %944 = arith.maximumf %943, %942 : vector<16x16xf32>
    %945 = vector.broadcast %cst_772 : f32 to vector<16x16xf32>
    %946 = arith.minimumf %945, %944 : vector<16x16xf32>
    %c0_773 = arith.constant 0 : index
    %c27 = arith.constant 27 : index
    %c0_774 = arith.constant 0 : index
    %c0_775 = arith.constant 0 : index
    %947 = vector.load %arg3[%c0_773, %c27, %c0_774, %c0_775] : memref<1x30x16x16xf32, #tpu.memory_space<vmem>>, vector<1x1x16x16xf32>
    %948 = vector.shape_cast %947 : vector<1x1x16x16xf32> to vector<16x16xf32>
    %949 = vector.shape_cast %946 : vector<16x16xf32> to vector<1x1x16x16xf32>
    tpu.vector_store %arg3[%c0_773, %c27, %c0_774, %c0_775], %949 {strides = array<i32>} : memref<1x30x16x16xf32, #tpu.memory_space<vmem>>, vector<1x1x16x16xf32>,
    %c10_776 = arith.constant 10 : index
    %c0_777 = arith.constant 0 : index
    %c0_778 = arith.constant 0 : index
    %950 = vector.load %arg4[%c10_776, %c0_777, %c0_778] : memref<25x16x16xf32, #tpu.memory_space<vmem>>, vector<1x16x16xf32>
    %951 = vector.shape_cast %950 : vector<1x16x16xf32> to vector<16x16xf32>
    %cst_779 = arith.constant -0.166666672 : f32
    %952 = vector.broadcast %cst_779 : f32 to vector<16x16xf32>
    %953 = arith.mulf %952, %951 : vector<16x16xf32>
    %c11_780 = arith.constant 11 : index
    %c0_781 = arith.constant 0 : index
    %c0_782 = arith.constant 0 : index
    %954 = vector.load %arg4[%c11_780, %c0_781, %c0_782] : memref<25x16x16xf32, #tpu.memory_space<vmem>>, vector<1x16x16xf32>
    %955 = vector.shape_cast %954 : vector<1x16x16xf32> to vector<16x16xf32>
    %cst_783 = arith.constant 0.666666686 : f32
    %956 = vector.broadcast %cst_783 : f32 to vector<16x16xf32>
    %957 = arith.mulf %956, %955 : vector<16x16xf32>
    %958 = arith.addf %953, %957 : vector<16x16xf32>
    %c12_784 = arith.constant 12 : index
    %c0_785 = arith.constant 0 : index
    %c0_786 = arith.constant 0 : index
    %959 = vector.load %arg4[%c12_784, %c0_785, %c0_786] : memref<25x16x16xf32, #tpu.memory_space<vmem>>, vector<1x16x16xf32>
    %960 = vector.shape_cast %959 : vector<1x16x16xf32> to vector<16x16xf32>
    %961 = arith.subf %958, %960 : vector<16x16xf32>
    %c13_787 = arith.constant 13 : index
    %c0_788 = arith.constant 0 : index
    %c0_789 = arith.constant 0 : index
    %962 = vector.load %arg4[%c13_787, %c0_788, %c0_789] : memref<25x16x16xf32, #tpu.memory_space<vmem>>, vector<1x16x16xf32>
    %963 = vector.shape_cast %962 : vector<1x16x16xf32> to vector<16x16xf32>
    %cst_790 = arith.constant 0.666666686 : f32
    %964 = vector.broadcast %cst_790 : f32 to vector<16x16xf32>
    %965 = arith.mulf %964, %963 : vector<16x16xf32>
    %966 = arith.addf %961, %965 : vector<16x16xf32>
    %c14_791 = arith.constant 14 : index
    %c0_792 = arith.constant 0 : index
    %c0_793 = arith.constant 0 : index
    %967 = vector.load %arg4[%c14_791, %c0_792, %c0_793] : memref<25x16x16xf32, #tpu.memory_space<vmem>>, vector<1x16x16xf32>
    %968 = vector.shape_cast %967 : vector<1x16x16xf32> to vector<16x16xf32>
    %cst_794 = arith.constant -0.166666672 : f32
    %969 = vector.broadcast %cst_794 : f32 to vector<16x16xf32>
    %970 = arith.mulf %969, %968 : vector<16x16xf32>
    %971 = arith.addf %966, %970 : vector<16x16xf32>
    %c15_795 = arith.constant 15 : index
    %c0_796 = arith.constant 0 : index
    %c0_797 = arith.constant 0 : index
    %972 = vector.load %arg4[%c15_795, %c0_796, %c0_797] : memref<25x16x16xf32, #tpu.memory_space<vmem>>, vector<1x16x16xf32>
    %973 = vector.shape_cast %972 : vector<1x16x16xf32> to vector<16x16xf32>
    %cst_798 = arith.constant 0.166666672 : f32
    %974 = vector.broadcast %cst_798 : f32 to vector<16x16xf32>
    %975 = arith.mulf %974, %973 : vector<16x16xf32>
    %976 = arith.addf %971, %975 : vector<16x16xf32>
    %c16_799 = arith.constant 16 : index
    %c0_800 = arith.constant 0 : index
    %c0_801 = arith.constant 0 : index
    %977 = vector.load %arg4[%c16_799, %c0_800, %c0_801] : memref<25x16x16xf32, #tpu.memory_space<vmem>>, vector<1x16x16xf32>
    %978 = vector.shape_cast %977 : vector<1x16x16xf32> to vector<16x16xf32>
    %cst_802 = arith.constant -5.000000e-01 : f32
    %979 = vector.broadcast %cst_802 : f32 to vector<16x16xf32>
    %980 = arith.mulf %979, %978 : vector<16x16xf32>
    %981 = arith.addf %976, %980 : vector<16x16xf32>
    %c17_803 = arith.constant 17 : index
    %c0_804 = arith.constant 0 : index
    %c0_805 = arith.constant 0 : index
    %982 = vector.load %arg4[%c17_803, %c0_804, %c0_805] : memref<25x16x16xf32, #tpu.memory_space<vmem>>, vector<1x16x16xf32>
    %983 = vector.shape_cast %982 : vector<1x16x16xf32> to vector<16x16xf32>
    %cst_806 = arith.constant 0.666666686 : f32
    %984 = vector.broadcast %cst_806 : f32 to vector<16x16xf32>
    %985 = arith.mulf %984, %983 : vector<16x16xf32>
    %986 = arith.addf %981, %985 : vector<16x16xf32>
    %c18_807 = arith.constant 18 : index
    %c0_808 = arith.constant 0 : index
    %c0_809 = arith.constant 0 : index
    %987 = vector.load %arg4[%c18_807, %c0_808, %c0_809] : memref<25x16x16xf32, #tpu.memory_space<vmem>>, vector<1x16x16xf32>
    %988 = vector.shape_cast %987 : vector<1x16x16xf32> to vector<16x16xf32>
    %cst_810 = arith.constant -5.000000e-01 : f32
    %989 = vector.broadcast %cst_810 : f32 to vector<16x16xf32>
    %990 = arith.mulf %989, %988 : vector<16x16xf32>
    %991 = arith.addf %986, %990 : vector<16x16xf32>
    %c19_811 = arith.constant 19 : index
    %c0_812 = arith.constant 0 : index
    %c0_813 = arith.constant 0 : index
    %992 = vector.load %arg4[%c19_811, %c0_812, %c0_813] : memref<25x16x16xf32, #tpu.memory_space<vmem>>, vector<1x16x16xf32>
    %993 = vector.shape_cast %992 : vector<1x16x16xf32> to vector<16x16xf32>
    %cst_814 = arith.constant 0.166666672 : f32
    %994 = vector.broadcast %cst_814 : f32 to vector<16x16xf32>
    %995 = arith.mulf %994, %993 : vector<16x16xf32>
    %996 = arith.addf %991, %995 : vector<16x16xf32>
    %c20_815 = arith.constant 20 : index
    %c0_816 = arith.constant 0 : index
    %c0_817 = arith.constant 0 : index
    %997 = vector.load %arg4[%c20_815, %c0_816, %c0_817] : memref<25x16x16xf32, #tpu.memory_space<vmem>>, vector<1x16x16xf32>
    %998 = vector.shape_cast %997 : vector<1x16x16xf32> to vector<16x16xf32>
    %cst_818 = arith.constant -0.0833333358 : f32
    %999 = vector.broadcast %cst_818 : f32 to vector<16x16xf32>
    %1000 = arith.mulf %999, %998 : vector<16x16xf32>
    %1001 = arith.addf %996, %1000 : vector<16x16xf32>
    %c21_819 = arith.constant 21 : index
    %c0_820 = arith.constant 0 : index
    %c0_821 = arith.constant 0 : index
    %1002 = vector.load %arg4[%c21_819, %c0_820, %c0_821] : memref<25x16x16xf32, #tpu.memory_space<vmem>>, vector<1x16x16xf32>
    %1003 = vector.shape_cast %1002 : vector<1x16x16xf32> to vector<16x16xf32>
    %cst_822 = arith.constant 0.166666672 : f32
    %1004 = vector.broadcast %cst_822 : f32 to vector<16x16xf32>
    %1005 = arith.mulf %1004, %1003 : vector<16x16xf32>
    %1006 = arith.addf %1001, %1005 : vector<16x16xf32>
    %c22_823 = arith.constant 22 : index
    %c0_824 = arith.constant 0 : index
    %c0_825 = arith.constant 0 : index
    %1007 = vector.load %arg4[%c22_823, %c0_824, %c0_825] : memref<25x16x16xf32, #tpu.memory_space<vmem>>, vector<1x16x16xf32>
    %1008 = vector.shape_cast %1007 : vector<1x16x16xf32> to vector<16x16xf32>
    %cst_826 = arith.constant -0.166666672 : f32
    %1009 = vector.broadcast %cst_826 : f32 to vector<16x16xf32>
    %1010 = arith.mulf %1009, %1008 : vector<16x16xf32>
    %1011 = arith.addf %1006, %1010 : vector<16x16xf32>
    %c23_827 = arith.constant 23 : index
    %c0_828 = arith.constant 0 : index
    %c0_829 = arith.constant 0 : index
    %1012 = vector.load %arg4[%c23_827, %c0_828, %c0_829] : memref<25x16x16xf32, #tpu.memory_space<vmem>>, vector<1x16x16xf32>
    %1013 = vector.shape_cast %1012 : vector<1x16x16xf32> to vector<16x16xf32>
    %cst_830 = arith.constant 0.166666672 : f32
    %1014 = vector.broadcast %cst_830 : f32 to vector<16x16xf32>
    %1015 = arith.mulf %1014, %1013 : vector<16x16xf32>
    %1016 = arith.addf %1011, %1015 : vector<16x16xf32>
    %c24_831 = arith.constant 24 : index
    %c0_832 = arith.constant 0 : index
    %c0_833 = arith.constant 0 : index
    %1017 = vector.load %arg4[%c24_831, %c0_832, %c0_833] : memref<25x16x16xf32, #tpu.memory_space<vmem>>, vector<1x16x16xf32>
    %1018 = vector.shape_cast %1017 : vector<1x16x16xf32> to vector<16x16xf32>
    %cst_834 = arith.constant -0.0833333358 : f32
    %1019 = vector.broadcast %cst_834 : f32 to vector<16x16xf32>
    %1020 = arith.mulf %1019, %1018 : vector<16x16xf32>
    %1021 = arith.addf %1016, %1020 : vector<16x16xf32>
    %cst_835 = arith.constant -3.000000e+00 : f32
    %cst_836 = arith.constant 3.000000e+00 : f32
    %1022 = vector.broadcast %cst_835 : f32 to vector<16x16xf32>
    %1023 = arith.maximumf %1022, %1021 : vector<16x16xf32>
    %1024 = vector.broadcast %cst_836 : f32 to vector<16x16xf32>
    %1025 = arith.minimumf %1024, %1023 : vector<16x16xf32>
    %c0_837 = arith.constant 0 : index
    %c28 = arith.constant 28 : index
    %c0_838 = arith.constant 0 : index
    %c0_839 = arith.constant 0 : index
    %1026 = vector.load %arg3[%c0_837, %c28, %c0_838, %c0_839] : memref<1x30x16x16xf32, #tpu.memory_space<vmem>>, vector<1x1x16x16xf32>
    %1027 = vector.shape_cast %1026 : vector<1x1x16x16xf32> to vector<16x16xf32>
    %1028 = vector.shape_cast %1025 : vector<16x16xf32> to vector<1x1x16x16xf32>
    tpu.vector_store %arg3[%c0_837, %c28, %c0_838, %c0_839], %1028 {strides = array<i32>} : memref<1x30x16x16xf32, #tpu.memory_space<vmem>>, vector<1x1x16x16xf32>,
    %c2_840 = arith.constant 2 : index
    %c0_841 = arith.constant 0 : index
    %c0_842 = arith.constant 0 : index
    %1029 = vector.load %arg4[%c2_840, %c0_841, %c0_842] : memref<25x16x16xf32, #tpu.memory_space<vmem>>, vector<1x16x16xf32>
    %1030 = vector.shape_cast %1029 : vector<1x16x16xf32> to vector<16x16xf32>
    %cst_843 = arith.constant -0.166666672 : f32
    %1031 = vector.broadcast %cst_843 : f32 to vector<16x16xf32>
    %1032 = arith.mulf %1031, %1030 : vector<16x16xf32>
    %c3_844 = arith.constant 3 : index
    %c0_845 = arith.constant 0 : index
    %c0_846 = arith.constant 0 : index
    %1033 = vector.load %arg4[%c3_844, %c0_845, %c0_846] : memref<25x16x16xf32, #tpu.memory_space<vmem>>, vector<1x16x16xf32>
    %1034 = vector.shape_cast %1033 : vector<1x16x16xf32> to vector<16x16xf32>
    %cst_847 = arith.constant 0.166666672 : f32
    %1035 = vector.broadcast %cst_847 : f32 to vector<16x16xf32>
    %1036 = arith.mulf %1035, %1034 : vector<16x16xf32>
    %1037 = arith.addf %1032, %1036 : vector<16x16xf32>
    %c4_848 = arith.constant 4 : index
    %c0_849 = arith.constant 0 : index
    %c0_850 = arith.constant 0 : index
    %1038 = vector.load %arg4[%c4_848, %c0_849, %c0_850] : memref<25x16x16xf32, #tpu.memory_space<vmem>>, vector<1x16x16xf32>
    %1039 = vector.shape_cast %1038 : vector<1x16x16xf32> to vector<16x16xf32>
    %cst_851 = arith.constant -0.0833333358 : f32
    %1040 = vector.broadcast %cst_851 : f32 to vector<16x16xf32>
    %1041 = arith.mulf %1040, %1039 : vector<16x16xf32>
    %1042 = arith.addf %1037, %1041 : vector<16x16xf32>
    %c7_852 = arith.constant 7 : index
    %c0_853 = arith.constant 0 : index
    %c0_854 = arith.constant 0 : index
    %1043 = vector.load %arg4[%c7_852, %c0_853, %c0_854] : memref<25x16x16xf32, #tpu.memory_space<vmem>>, vector<1x16x16xf32>
    %1044 = vector.shape_cast %1043 : vector<1x16x16xf32> to vector<16x16xf32>
    %cst_855 = arith.constant 0.666666686 : f32
    %1045 = vector.broadcast %cst_855 : f32 to vector<16x16xf32>
    %1046 = arith.mulf %1045, %1044 : vector<16x16xf32>
    %1047 = arith.addf %1042, %1046 : vector<16x16xf32>
    %c8_856 = arith.constant 8 : index
    %c0_857 = arith.constant 0 : index
    %c0_858 = arith.constant 0 : index
    %1048 = vector.load %arg4[%c8_856, %c0_857, %c0_858] : memref<25x16x16xf32, #tpu.memory_space<vmem>>, vector<1x16x16xf32>
    %1049 = vector.shape_cast %1048 : vector<1x16x16xf32> to vector<16x16xf32>
    %cst_859 = arith.constant -5.000000e-01 : f32
    %1050 = vector.broadcast %cst_859 : f32 to vector<16x16xf32>
    %1051 = arith.mulf %1050, %1049 : vector<16x16xf32>
    %1052 = arith.addf %1047, %1051 : vector<16x16xf32>
    %c9_860 = arith.constant 9 : index
    %c0_861 = arith.constant 0 : index
    %c0_862 = arith.constant 0 : index
    %1053 = vector.load %arg4[%c9_860, %c0_861, %c0_862] : memref<25x16x16xf32, #tpu.memory_space<vmem>>, vector<1x16x16xf32>
    %1054 = vector.shape_cast %1053 : vector<1x16x16xf32> to vector<16x16xf32>
    %cst_863 = arith.constant 0.166666672 : f32
    %1055 = vector.broadcast %cst_863 : f32 to vector<16x16xf32>
    %1056 = arith.mulf %1055, %1054 : vector<16x16xf32>
    %1057 = arith.addf %1052, %1056 : vector<16x16xf32>
    %c12_864 = arith.constant 12 : index
    %c0_865 = arith.constant 0 : index
    %c0_866 = arith.constant 0 : index
    %1058 = vector.load %arg4[%c12_864, %c0_865, %c0_866] : memref<25x16x16xf32, #tpu.memory_space<vmem>>, vector<1x16x16xf32>
    %1059 = vector.shape_cast %1058 : vector<1x16x16xf32> to vector<16x16xf32>
    %1060 = arith.subf %1057, %1059 : vector<16x16xf32>
    %c13_867 = arith.constant 13 : index
    %c0_868 = arith.constant 0 : index
    %c0_869 = arith.constant 0 : index
    %1061 = vector.load %arg4[%c13_867, %c0_868, %c0_869] : memref<25x16x16xf32, #tpu.memory_space<vmem>>, vector<1x16x16xf32>
    %1062 = vector.shape_cast %1061 : vector<1x16x16xf32> to vector<16x16xf32>
    %cst_870 = arith.constant 0.666666686 : f32
    %1063 = vector.broadcast %cst_870 : f32 to vector<16x16xf32>
    %1064 = arith.mulf %1063, %1062 : vector<16x16xf32>
    %1065 = arith.addf %1060, %1064 : vector<16x16xf32>
    %c14_871 = arith.constant 14 : index
    %c0_872 = arith.constant 0 : index
    %c0_873 = arith.constant 0 : index
    %1066 = vector.load %arg4[%c14_871, %c0_872, %c0_873] : memref<25x16x16xf32, #tpu.memory_space<vmem>>, vector<1x16x16xf32>
    %1067 = vector.shape_cast %1066 : vector<1x16x16xf32> to vector<16x16xf32>
    %cst_874 = arith.constant -0.166666672 : f32
    %1068 = vector.broadcast %cst_874 : f32 to vector<16x16xf32>
    %1069 = arith.mulf %1068, %1067 : vector<16x16xf32>
    %1070 = arith.addf %1065, %1069 : vector<16x16xf32>
    %c17_875 = arith.constant 17 : index
    %c0_876 = arith.constant 0 : index
    %c0_877 = arith.constant 0 : index
    %1071 = vector.load %arg4[%c17_875, %c0_876, %c0_877] : memref<25x16x16xf32, #tpu.memory_space<vmem>>, vector<1x16x16xf32>
    %1072 = vector.shape_cast %1071 : vector<1x16x16xf32> to vector<16x16xf32>
    %cst_878 = arith.constant 0.666666686 : f32
    %1073 = vector.broadcast %cst_878 : f32 to vector<16x16xf32>
    %1074 = arith.mulf %1073, %1072 : vector<16x16xf32>
    %1075 = arith.addf %1070, %1074 : vector<16x16xf32>
    %c18_879 = arith.constant 18 : index
    %c0_880 = arith.constant 0 : index
    %c0_881 = arith.constant 0 : index
    %1076 = vector.load %arg4[%c18_879, %c0_880, %c0_881] : memref<25x16x16xf32, #tpu.memory_space<vmem>>, vector<1x16x16xf32>
    %1077 = vector.shape_cast %1076 : vector<1x16x16xf32> to vector<16x16xf32>
    %cst_882 = arith.constant -5.000000e-01 : f32
    %1078 = vector.broadcast %cst_882 : f32 to vector<16x16xf32>
    %1079 = arith.mulf %1078, %1077 : vector<16x16xf32>
    %1080 = arith.addf %1075, %1079 : vector<16x16xf32>
    %c19_883 = arith.constant 19 : index
    %c0_884 = arith.constant 0 : index
    %c0_885 = arith.constant 0 : index
    %1081 = vector.load %arg4[%c19_883, %c0_884, %c0_885] : memref<25x16x16xf32, #tpu.memory_space<vmem>>, vector<1x16x16xf32>
    %1082 = vector.shape_cast %1081 : vector<1x16x16xf32> to vector<16x16xf32>
    %cst_886 = arith.constant 0.166666672 : f32
    %1083 = vector.broadcast %cst_886 : f32 to vector<16x16xf32>
    %1084 = arith.mulf %1083, %1082 : vector<16x16xf32>
    %1085 = arith.addf %1080, %1084 : vector<16x16xf32>
    %c22_887 = arith.constant 22 : index
    %c0_888 = arith.constant 0 : index
    %c0_889 = arith.constant 0 : index
    %1086 = vector.load %arg4[%c22_887, %c0_888, %c0_889] : memref<25x16x16xf32, #tpu.memory_space<vmem>>, vector<1x16x16xf32>
    %1087 = vector.shape_cast %1086 : vector<1x16x16xf32> to vector<16x16xf32>
    %cst_890 = arith.constant -0.166666672 : f32
    %1088 = vector.broadcast %cst_890 : f32 to vector<16x16xf32>
    %1089 = arith.mulf %1088, %1087 : vector<16x16xf32>
    %1090 = arith.addf %1085, %1089 : vector<16x16xf32>
    %c23_891 = arith.constant 23 : index
    %c0_892 = arith.constant 0 : index
    %c0_893 = arith.constant 0 : index
    %1091 = vector.load %arg4[%c23_891, %c0_892, %c0_893] : memref<25x16x16xf32, #tpu.memory_space<vmem>>, vector<1x16x16xf32>
    %1092 = vector.shape_cast %1091 : vector<1x16x16xf32> to vector<16x16xf32>
    %cst_894 = arith.constant 0.166666672 : f32
    %1093 = vector.broadcast %cst_894 : f32 to vector<16x16xf32>
    %1094 = arith.mulf %1093, %1092 : vector<16x16xf32>
    %1095 = arith.addf %1090, %1094 : vector<16x16xf32>
    %c24_895 = arith.constant 24 : index
    %c0_896 = arith.constant 0 : index
    %c0_897 = arith.constant 0 : index
    %1096 = vector.load %arg4[%c24_895, %c0_896, %c0_897] : memref<25x16x16xf32, #tpu.memory_space<vmem>>, vector<1x16x16xf32>
    %1097 = vector.shape_cast %1096 : vector<1x16x16xf32> to vector<16x16xf32>
    %cst_898 = arith.constant -0.0833333358 : f32
    %1098 = vector.broadcast %cst_898 : f32 to vector<16x16xf32>
    %1099 = arith.mulf %1098, %1097 : vector<16x16xf32>
    %1100 = arith.addf %1095, %1099 : vector<16x16xf32>
    %cst_899 = arith.constant -3.000000e+00 : f32
    %cst_900 = arith.constant 3.000000e+00 : f32
    %1101 = vector.broadcast %cst_899 : f32 to vector<16x16xf32>
    %1102 = arith.maximumf %1101, %1100 : vector<16x16xf32>
    %1103 = vector.broadcast %cst_900 : f32 to vector<16x16xf32>
    %1104 = arith.minimumf %1103, %1102 : vector<16x16xf32>
    %c0_901 = arith.constant 0 : index
    %c29 = arith.constant 29 : index
    %c0_902 = arith.constant 0 : index
    %c0_903 = arith.constant 0 : index
    %1105 = vector.load %arg3[%c0_901, %c29, %c0_902, %c0_903] : memref<1x30x16x16xf32, #tpu.memory_space<vmem>>, vector<1x1x16x16xf32>
    %1106 = vector.shape_cast %1105 : vector<1x1x16x16xf32> to vector<16x16xf32>
    %1107 = vector.shape_cast %1104 : vector<16x16xf32> to vector<1x1x16x16xf32>
    tpu.vector_store %arg3[%c0_901, %c29, %c0_902, %c0_903], %1107 {strides = array<i32>} : memref<1x30x16x16xf32, #tpu.memory_space<vmem>>, vector<1x1x16x16xf32>,
    return
  }
  func.func @transform_0(%arg0: i32, %arg1: i32) -> (i32, i32, i32) {
    %c0_i32 = arith.constant 0 : i32
    %c0_i32_0 = arith.constant 0 : i32
    %c0_i32_1 = arith.constant 0 : i32
    return %arg0, %c0_i32, %c0_i32_0 : i32, i32, i32
  }
  func.func @transform_1(%arg0: i32, %arg1: i32) -> (i32, i32, i32, i32) {
    %c0_i32 = arith.constant 0 : i32
    %c0_i32_0 = arith.constant 0 : i32
    %c0_i32_1 = arith.constant 0 : i32
    return %arg0, %c0_i32, %arg1, %c0_i32_0 : i32, i32, i32, i32
  }
}

</mosaic_0001>

<llo_original>
// kernel: tpu_custom_call.1
$region0: #{tpu_custom_call.1}
  #allocation0 [shape = 'u32[]', space=smem, size = 0x4, offset = 0x4, fixed_abs, tag = 'smem constant byte address 0x4 - core index']
  #allocation1 [shape = 'u32[144,128]{1,0:T(1,128)}', space=vmem, size = 0x12000, scoped, tag = 'internal scratch']
  #allocation2 [shape = 'f32[25,16,16]{2,1,0:T(8,128)}', space=vmem, size = 0x32000, scoped, tag = 'scratch operand']
  %s0 = inlined_call_operand.vmem [shape: f32[2,20,20], index: 0, kind: input, shape index: {}]
  %s1 = inlined_call_operand.vmem [shape: f32[2,30,16,16], index: 1, kind: output, shape index: {}]
  %s2 = sld [smem:[#allocation0]]
  $region37: #{tpu_custom_call.1} parent=0
    _
  %s4 = ssub.s32 1, %s2
  %s5 = scalar_select 0, %s4, %s2
  loop: start=0, step=1, limit=4
  $region2: #{tpu_custom_call.1} parent=0 // loop_pre_header
    _
  $region3: #{tpu_custom_call.1} parent=0 // loop_header
    %s7 = sphi 0, %s11
    %p8 = scmp.ge.s32.totalorder %s7, 4
    %s14 = sphi 0, %s26
    %s15 = sphi 0, %s22
    %s16 = sphi 0, %s14
    %s17 = sphi 0, %s15
    %s18 = sphi 0, %s16
    %s19 = sphi 0, %s17
    %s29 = sphi 0, %s31
    %s32 = sphi 0, %s29
    %s33 = sphi 0, %s32
    %s49 = sphi 0, %s33
    %s57 = sphi 0, %s59
    %s60 = sphi 0, %s57
    %s61 = sphi 0, %s60
    %s77 = sphi 0, %s61
  $region4: #{tpu_custom_call.1} parent=0 // loop_header_branch
    %10 = sbr.rel (%p8) target = $region8
  $region5: #{tpu_custom_call.1} parent=0 // loop_body
    %s12 = ssub.s32 %s7, 1
    %s13 = ssub.s32 %s7, 2
    %s20 = sadd.s32 1, %s15
    %p21 = scmp.ge.s32.totalorder %s20, 1
    %s22 = scalar_select %p21, 0, %s20
    %s23 = sadd.s32 1, %s14
    %s24 = scalar_select %p21, %s23, %s14
    %p25 = scmp.ge.s32.totalorder %s24, 2
    %s26 = scalar_select %p25, 0, %s24
    %s27 = ssub.s32 %s14, %s26
    %p28 = scmp.eq.s32.totalorder %s27, 0
    %s30 = sadd.s32 %s29, 1
    %s31 = scalar_select %p28, %s29, %s30
    %p34 = pneg %p28
    %p35 = scmp.eq.s32.totalorder %s7, 1
    %p36 = por %p34, %p35
    %p37 = scmp.ne.s32.totalorder %s29, %s32
    %p38 = scmp.eq.s32.totalorder %s7, 0
    %p39 = por %p37, %p38
    %p40 = scmp.ne.s32.totalorder %s29, %s32
    %p41 = scmp.eq.s32.totalorder %s12, 1
    %p42 = por %p40, %p41
    %p43 = scmp.ne.s32.totalorder %s32, %s33
    %p44 = scmp.eq.s32.totalorder %s12, 0
    %p45 = por %p43, %p44
    %p46 = scmp.ne.s32.totalorder %s32, %s33
    %p47 = scmp.eq.s32.totalorder %s13, 1
    %p48 = por %p46, %p47
    %p50 = scmp.ne.s32.totalorder %s33, %s49
    %p51 = scmp.eq.s32.totalorder %s13, 0
    %p52 = por %p50, %p51
    %s53 = ssub.s32 %s14, %s26
    %s54 = ssub.s32 %s15, %s22
    %s55 = sor.u32 %s53, %s54
    %p56 = scmp.eq.s32.totalorder %s55, 0
    %s58 = sadd.s32 %s57, 1
    %s59 = scalar_select %p56, %s57, %s58
    %p62 = pneg %p56
    %p63 = scmp.eq.s32.totalorder %s7, 1
    %p64 = por %p62, %p63
    %p65 = scmp.ne.s32.totalorder %s57, %s60
    %p66 = scmp.eq.s32.totalorder %s7, 0
    %p67 = por %p65, %p66
    %p68 = scmp.ne.s32.totalorder %s57, %s60
    %p69 = scmp.eq.s32.totalorder %s12, 1
    %p70 = por %p68, %p69
    %p71 = scmp.ne.s32.totalorder %s60, %s61
    %p72 = scmp.eq.s32.totalorder %s12, 0
    %p73 = por %p71, %p72
    %p74 = scmp.ne.s32.totalorder %s60, %s61
    %p75 = scmp.eq.s32.totalorder %s13, 1
    %p76 = por %p74, %p75
    %p78 = scmp.ne.s32.totalorder %s61, %s77
    %p79 = scmp.eq.s32.totalorder %s13, 0
    %p80 = por %p78, %p79
    %p81 = scmp.le.s32.totalorder 1, %s7
    %p82 = scmp.lt.s32.totalorder %s7, 3
    %p83 = pnand %p81, %p82
    %p84 = pneg %p83
    // Predicated region
    $region9: #{tpu_custom_call.1} parent=5 // pred_check
      _
    $region10: #{tpu_custom_call.1} parent=5 // pred_check_branch
      %86 = sbr.rel (%p83) target = $region12
    $region11: #{tpu_custom_call.1} parent=5 // pred_region
      %s87 = ssub.s32 %s7, 1
    $region12: #{tpu_custom_call.1} parent=5 // pred_fallthru
      _
    %p88 = scmp.lt.s32.totalorder %s7, 2
    // Predicated region
    $region13: #{tpu_custom_call.1} parent=5 // pred_check
      %p89 = pneg %p88
    $region14: #{tpu_custom_call.1} parent=5 // pred_check_branch
      %91 = sbr.rel (%p89) target = $region16
    $region15: #{tpu_custom_call.1} parent=5 // pred_region
      // Predicated region
      $region17: #{tpu_custom_call.1} parent=15 // pred_check
        %p92 = pneg %p39
      $region18: #{tpu_custom_call.1} parent=15 // pred_check_branch
        %94 = sbr.rel (%p92) target = $region20
      $region19: #{tpu_custom_call.1} parent=15 // pred_region
        %p95 = scmp.lt.s32.totalorder %s14, 1
        %s96 = scalar_select %p95, %s14, 1
        %s97 = smul.addr %s96, 3
        %s98 = smul.addr %s97, 8
        %s99 = scalar_lea.vmem %s0, %s98
      $region20: #{tpu_custom_call.1} parent=15 // pred_fallthru
        _
    $region16: #{tpu_custom_call.1} parent=5 // pred_fallthru
      _
    %p100 = scmp.le.s32.totalorder 1, %s7
    %p101 = scmp.lt.s32.totalorder %s7, 3
    %p102 = pnand %p100, %p101
    %p103 = pneg %p102
    // Predicated region
    $region21: #{tpu_custom_call.1} parent=5 // pred_check
      _
    $region22: #{tpu_custom_call.1} parent=5 // pred_check_branch
      %105 = sbr.rel (%p102) target = $region24
    $region23: #{tpu_custom_call.1} parent=5 // pred_region
      %s106 = ssub.s32 %s7, 1
      %p107 = scmp.lt.s32.totalorder %s16, 1
      %s108 = scalar_select %p107, %s16, 1
      %s109 = smul.addr %s108, 3
      %s110 = smul.addr %s109, 8
      %s111 = scalar_lea.vmem %s0, %s110
      %p112 = pneg %p45
      %p113 = pneg %p42
      %p114 = pneg %p73
      %p115 = pneg %p70
      %s116 = smul.u32 2, %s17
      %p117 = scmp.lt.s32.totalorder %s16, 1
      %s118 = scalar_select %p117, %s16, 1
      %p119 = scmp.lt.s32.totalorder %s116, 1
      %s120 = scalar_select %p119, %s116, 1
      %s121 = smul.addr %s118, 60
      %s122 = sadd.s32 %s120, %s121
      %s123 = smul.addr %s122, 8
      %s124 = scalar_lea.vmem %s1, %s123
      %p125 = scmp.lt.s32.totalorder %s16, 1
      %s126 = scalar_select %p125, %s16, 1
      %s127 = smul.addr %s126, 3
      %s128 = smul.addr %s127, 8
      %s129 = scalar_lea.vmem %s0, %s128
      %s130 = smul.u32 2, %s17
      %p131 = scmp.lt.s32.totalorder %s16, 1
      %s132 = scalar_select %p131, %s16, 1
      %p133 = scmp.lt.s32.totalorder %s130, 1
      %s134 = scalar_select %p133, %s130, 1
      %s135 = smul.addr %s132, 60
      %s136 = sadd.s32 %s134, %s135
      %s137 = smul.addr %s136, 8
      %s138 = scalar_lea.vmem %s1, %s137
      %s139 = smul.u32 2, %s17
      %s140 = smul.u32 %s17, 16
      %s141 = scalar_lea.vmem %s129, %s140
      %v142 = vld [vmem:[%s141] sm:$0xff]
      %v143 = vld [vmem:[%s141 + $0x8] sm:$0xff]
      %vm144 = vcmask 130048
      %145 = vst.msk [vmem:[#allocation2] sm:$0xff] %vm144, %v142
      %146 = vst.msk [vmem:[#allocation2 + $0x8] sm:$0xff] %vm144, %v143
      %149 = vrot.lane.b32.xlu0 %v142, 127
      %v150 = vpop.permute.xlu0 %149
      %151 = vrot.lane.b32.xlu0 %v143, 127
      %v152 = vpop.permute.xlu0 %151
      %s155 = scalar_lea.vmem [#allocation2], 16
      %156 = vst.msk [vmem:[%s155] sm:$0xff] %vm144, %v150
      %157 = vst.msk [vmem:[%s155 + $0x8] sm:$0xff] %vm144, %v152
      %158 = vrot.lane.b32.xlu0 %v142, 126
      %v159 = vpop.permute.xlu0 %158
      %160 = vrot.lane.b32.xlu0 %v143, 126
      %v161 = vpop.permute.xlu0 %160
      %s164 = scalar_lea.vmem [#allocation2], 32
      %165 = vst.msk [vmem:[%s164] sm:$0xff] %vm144, %v159
      %166 = vst.msk [vmem:[%s164 + $0x8] sm:$0xff] %vm144, %v161
      %167 = vrot.lane.b32.xlu0 %v142, 125
      %v168 = vpop.permute.xlu0 %167
      %169 = vrot.lane.b32.xlu0 %v143, 125
      %v170 = vpop.permute.xlu0 %169
      %s173 = scalar_lea.vmem [#allocation2], 48
      %174 = vst.msk [vmem:[%s173] sm:$0xff] %vm144, %v168
      %175 = vst.msk [vmem:[%s173 + $0x8] sm:$0xff] %vm144, %v170
      %176 = vrot.lane.b32.xlu0 %v142, 124
      %v177 = vpop.permute.xlu0 %176
      %178 = vrot.lane.b32.xlu0 %v143, 124
      %v179 = vpop.permute.xlu0 %178
      %s182 = scalar_lea.vmem [#allocation2], 64
      %183 = vst.msk [vmem:[%s182] sm:$0xff] %vm144, %v177
      %184 = vst.msk [vmem:[%s182 + $0x8] sm:$0xff] %vm144, %v179
      %s185 = sadd.s32 %s140, 1
      %s186 = scalar_lea.vmem %s129, %s185
      %v187 = vld [vmem:[%s186] sm:$0xff]
      %v188 = vld [vmem:[%s186 + $0x8] sm:$0xff]
      %s189 = scalar_lea.vmem [#allocation2], 80
      %190 = vst.msk [vmem:[%s189] sm:$0xff] %vm144, %v187
      %191 = vst.msk [vmem:[%s189 + $0x8] sm:$0xff] %vm144, %v188
      %194 = vrot.lane.b32.xlu0 %v187, 127
      %v195 = vpop.permute.xlu0 %194
      %196 = vrot.lane.b32.xlu0 %v188, 127
      %v197 = vpop.permute.xlu0 %196
      %s200 = scalar_lea.vmem [#allocation2], 96
      %201 = vst.msk [vmem:[%s200] sm:$0xff] %vm144, %v195
      %202 = vst.msk [vmem:[%s200 + $0x8] sm:$0xff] %vm144, %v197
      %203 = vrot.lane.b32.xlu0 %v187, 126
      %v204 = vpop.permute.xlu0 %203
      %205 = vrot.lane.b32.xlu0 %v188, 126
      %v206 = vpop.permute.xlu0 %205
      %s209 = scalar_lea.vmem [#allocation2], 112
      %210 = vst.msk [vmem:[%s209] sm:$0xff] %vm144, %v204
      %211 = vst.msk [vmem:[%s209 + $0x8] sm:$0xff] %vm144, %v206
      %212 = vrot.lane.b32.xlu0 %v187, 125
      %v213 = vpop.permute.xlu0 %212
      %214 = vrot.lane.b32.xlu0 %v188, 125
      %v215 = vpop.permute.xlu0 %214
      %s218 = scalar_lea.vmem [#allocation2], 128
      %219 = vst.msk [vmem:[%s218] sm:$0xff] %vm144, %v213
      %220 = vst.msk [vmem:[%s218 + $0x8] sm:$0xff] %vm144, %v215
      %221 = vrot.lane.b32.xlu0 %v187, 124
      %v222 = vpop.permute.xlu0 %221
      %223 = vrot.lane.b32.xlu0 %v188, 124
      %v224 = vpop.permute.xlu0 %223
      %s227 = scalar_lea.vmem [#allocation2], 144
      %228 = vst.msk [vmem:[%s227] sm:$0xff] %vm144, %v222
      %229 = vst.msk [vmem:[%s227 + $0x8] sm:$0xff] %vm144, %v224
      %s230 = sadd.s32 %s140, 2
      %s231 = scalar_lea.vmem %s129, %s230
      %v232 = vld [vmem:[%s231] sm:$0xff]
      %v233 = vld [vmem:[%s231 + $0x8] sm:$0xff]
      %s234 = scalar_lea.vmem [#allocation2], 160
      %235 = vst.msk [vmem:[%s234] sm:$0xff] %vm144, %v232
      %236 = vst.msk [vmem:[%s234 + $0x8] sm:$0xff] %vm144, %v233
      %239 = vrot.lane.b32.xlu0 %v232, 127
      %v240 = vpop.permute.xlu0 %239
      %241 = vrot.lane.b32.xlu0 %v233, 127
      %v242 = vpop.permute.xlu0 %241
      %s245 = scalar_lea.vmem [#allocation2], 176
      %246 = vst.msk [vmem:[%s245] sm:$0xff] %vm144, %v240
      %247 = vst.msk [vmem:[%s245 + $0x8] sm:$0xff] %vm144, %v242
      %248 = vrot.lane.b32.xlu0 %v232, 126
      %v249 = vpop.permute.xlu0 %248
      %250 = vrot.lane.b32.xlu0 %v233, 126
      %v251 = vpop.permute.xlu0 %250
      %s254 = scalar_lea.vmem [#allocation2], 192
      %255 = vst.msk [vmem:[%s254] sm:$0xff] %vm144, %v249
      %256 = vst.msk [vmem:[%s254 + $0x8] sm:$0xff] %vm144, %v251
      %257 = vrot.lane.b32.xlu0 %v232, 125
      %v258 = vpop.permute.xlu0 %257
      %259 = vrot.lane.b32.xlu0 %v233, 125
      %v260 = vpop.permute.xlu0 %259
      %s263 = scalar_lea.vmem [#allocation2], 208
      %264 = vst.msk [vmem:[%s263] sm:$0xff] %vm144, %v258
      %265 = vst.msk [vmem:[%s263 + $0x8] sm:$0xff] %vm144, %v260
      %266 = vrot.lane.b32.xlu0 %v232, 124
      %v267 = vpop.permute.xlu0 %266
      %268 = vrot.lane.b32.xlu0 %v233, 124
      %v269 = vpop.permute.xlu0 %268
      %s272 = scalar_lea.vmem [#allocation2], 224
      %273 = vst.msk [vmem:[%s272] sm:$0xff] %vm144, %v267
      %274 = vst.msk [vmem:[%s272 + $0x8] sm:$0xff] %vm144, %v269
      %s275 = sadd.s32 %s140, 3
      %s276 = scalar_lea.vmem %s129, %s275
      %v277 = vld [vmem:[%s276] sm:$0xff]
      %v278 = vld [vmem:[%s276 + $0x8] sm:$0xff]
      %s279 = scalar_lea.vmem [#allocation2], 240
      %280 = vst.msk [vmem:[%s279] sm:$0xff] %vm144, %v277
      %281 = vst.msk [vmem:[%s279 + $0x8] sm:$0xff] %vm144, %v278
      %284 = vrot.lane.b32.xlu0 %v277, 127
      %v285 = vpop.permute.xlu0 %284
      %286 = vrot.lane.b32.xlu0 %v278, 127
      %v287 = vpop.permute.xlu0 %286
      %s290 = scalar_lea.vmem [#allocation2], 256
      %291 = vst.msk [vmem:[%s290] sm:$0xff] %vm144, %v285
      %292 = vst.msk [vmem:[%s290 + $0x8] sm:$0xff] %vm144, %v287
      %293 = vrot.lane.b32.xlu0 %v277, 126
      %v294 = vpop.permute.xlu0 %293
      %295 = vrot.lane.b32.xlu0 %v278, 126
      %v296 = vpop.permute.xlu0 %295
      %s299 = scalar_lea.vmem [#allocation2], 272
      %300 = vst.msk [vmem:[%s299] sm:$0xff] %vm144, %v294
      %301 = vst.msk [vmem:[%s299 + $0x8] sm:$0xff] %vm144, %v296
      %302 = vrot.lane.b32.xlu0 %v277, 125
      %v303 = vpop.permute.xlu0 %302
      %304 = vrot.lane.b32.xlu0 %v278, 125
      %v305 = vpop.permute.xlu0 %304
      %s308 = scalar_lea.vmem [#allocation2], 288
      %309 = vst.msk [vmem:[%s308] sm:$0xff] %vm144, %v303
      %310 = vst.msk [vmem:[%s308 + $0x8] sm:$0xff] %vm144, %v305
      %311 = vrot.lane.b32.xlu0 %v277, 124
      %v312 = vpop.permute.xlu0 %311
      %313 = vrot.lane.b32.xlu0 %v278, 124
      %v314 = vpop.permute.xlu0 %313
      %s317 = scalar_lea.vmem [#allocation2], 304
      %318 = vst.msk [vmem:[%s317] sm:$0xff] %vm144, %v312
      %319 = vst.msk [vmem:[%s317 + $0x8] sm:$0xff] %vm144, %v314
      %s320 = sadd.s32 %s140, 4
      %s321 = scalar_lea.vmem %s129, %s320
      %v322 = vld [vmem:[%s321] sm:$0xff]
      %v323 = vld [vmem:[%s321 + $0x8] sm:$0xff]
      %s324 = scalar_lea.vmem [#allocation2], 320
      %325 = vst.msk [vmem:[%s324] sm:$0xff] %vm144, %v322
      %326 = vst.msk [vmem:[%s324 + $0x8] sm:$0xff] %vm144, %v323
      %329 = vrot.lane.b32.xlu0 %v322, 127
      %v330 = vpop.permute.xlu0 %329
      %331 = vrot.lane.b32.xlu0 %v323, 127
      %v332 = vpop.permute.xlu0 %331
      %s335 = scalar_lea.vmem [#allocation2], 336
      %336 = vst.msk [vmem:[%s335] sm:$0xff] %vm144, %v330
      %337 = vst.msk [vmem:[%s335 + $0x8] sm:$0xff] %vm144, %v332
      %338 = vrot.lane.b32.xlu0 %v322, 126
      %v339 = vpop.permute.xlu0 %338
      %340 = vrot.lane.b32.xlu0 %v323, 126
      %v341 = vpop.permute.xlu0 %340
      %s344 = scalar_lea.vmem [#allocation2], 352
      %345 = vst.msk [vmem:[%s344] sm:$0xff] %vm144, %v339
      %346 = vst.msk [vmem:[%s344 + $0x8] sm:$0xff] %vm144, %v341
      %347 = vrot.lane.b32.xlu0 %v322, 125
      %v348 = vpop.permute.xlu0 %347
      %349 = vrot.lane.b32.xlu0 %v323, 125
      %v350 = vpop.permute.xlu0 %349
      %s353 = scalar_lea.vmem [#allocation2], 368
      %354 = vst.msk [vmem:[%s353] sm:$0xff] %vm144, %v348
      %355 = vst.msk [vmem:[%s353 + $0x8] sm:$0xff] %vm144, %v350
      %356 = vrot.lane.b32.xlu0 %v322, 124
      %v357 = vpop.permute.xlu0 %356
      %358 = vrot.lane.b32.xlu0 %v323, 124
      %v359 = vpop.permute.xlu0 %358
      %s362 = scalar_lea.vmem [#allocation2], 384
      %363 = vst.msk [vmem:[%s362] sm:$0xff] %vm144, %v357
      %364 = vst.msk [vmem:[%s362 + $0x8] sm:$0xff] %vm144, %v359
      %v365 = vld [vmem:[%s200] sm:$0xff]
      %v366 = vld [vmem:[%s200 + $0x8] sm:$0xff]
      %v367 = vld [vmem:[%s254] sm:$0xff]
      %v368 = vld [vmem:[%s254 + $0x8] sm:$0xff]
      %v369 = vsub.f32 %v365, %v367
      %v370 = vsub.f32 %v366, %v368
      %v371 = vmax.f32 %v369, -3.0
      %v372 = vmax.f32 %v370, -3.0
      %v373 = vmin.f32 %v371, 3.0
      %v374 = vmin.f32 %v372, 3.0
      %375 = vst.msk [vmem:[%s138] sm:$0xff] %vm144, %v373
      %376 = vst.msk [vmem:[%s138 + $0x8] sm:$0xff] %vm144, %v374
      %v377 = vld [vmem:[%s209] sm:$0xff]
      %v378 = vld [vmem:[%s209 + $0x8] sm:$0xff]
      %v379 = vld [vmem:[%s254] sm:$0xff]
      %v380 = vld [vmem:[%s254 + $0x8] sm:$0xff]
      %v381 = vsub.f32 %v377, %v379
      %v382 = vsub.f32 %v378, %v380
      %v383 = vmax.f32 %v381, -3.0
      %v384 = vmax.f32 %v382, -3.0
      %v385 = vmin.f32 %v383, 3.0
      %v386 = vmin.f32 %v384, 3.0
      %s387 = scalar_lea.vmem %s138, 16
      %388 = vst.msk [vmem:[%s387] sm:$0xff] %vm144, %v385
      %389 = vst.msk [vmem:[%s387 + $0x8] sm:$0xff] %vm144, %v386
      %v390 = vld [vmem:[%s218] sm:$0xff]
      %v391 = vld [vmem:[%s218 + $0x8] sm:$0xff]
      %v392 = vld [vmem:[%s254] sm:$0xff]
      %v393 = vld [vmem:[%s254 + $0x8] sm:$0xff]
      %v394 = vsub.f32 %v390, %v392
      %v395 = vsub.f32 %v391, %v393
      %v396 = vmax.f32 %v394, -3.0
      %v397 = vmax.f32 %v395, -3.0
      %v398 = vmin.f32 %v396, 3.0
      %v399 = vmin.f32 %v397, 3.0
      %s400 = scalar_lea.vmem %s138, 32
      %401 = vst.msk [vmem:[%s400] sm:$0xff] %vm144, %v398
      %402 = vst.msk [vmem:[%s400 + $0x8] sm:$0xff] %vm144, %v399
      %v403 = vld [vmem:[%s245] sm:$0xff]
      %v404 = vld [vmem:[%s245 + $0x8] sm:$0xff]
      %v405 = vld [vmem:[%s254] sm:$0xff]
      %v406 = vld [vmem:[%s254 + $0x8] sm:$0xff]
      %v407 = vsub.f32 %v403, %v405
      %v408 = vsub.f32 %v404, %v406
      %v409 = vmax.f32 %v407, -3.0
      %v410 = vmax.f32 %v408, -3.0
      %v411 = vmin.f32 %v409, 3.0
      %v412 = vmin.f32 %v410, 3.0
      %s413 = scalar_lea.vmem %s138, 48
      %414 = vst.msk [vmem:[%s413] sm:$0xff] %vm144, %v411
      %415 = vst.msk [vmem:[%s413 + $0x8] sm:$0xff] %vm144, %v412
      %v416 = vld [vmem:[%s254] sm:$0xff]
      %v417 = vld [vmem:[%s254 + $0x8] sm:$0xff]
      %v418 = vsub.f32 0.0, %v416
      %v419 = vsub.f32 0.0, %v417
      %v420 = vld [vmem:[%s263] sm:$0xff]
      %v421 = vld [vmem:[%s263 + $0x8] sm:$0xff]
      %v422 = vadd.f32 %v418, %v420
      %v423 = vadd.f32 %v419, %v421
      %v424 = vmax.f32 %v422, -3.0
      %v425 = vmax.f32 %v423, -3.0
      %v426 = vmin.f32 %v424, 3.0
      %v427 = vmin.f32 %v425, 3.0
      %s428 = scalar_lea.vmem %s138, 64
      %429 = vst.msk [vmem:[%s428] sm:$0xff] %vm144, %v426
      %430 = vst.msk [vmem:[%s428 + $0x8] sm:$0xff] %vm144, %v427
      %v431 = vld [vmem:[%s254] sm:$0xff]
      %v432 = vld [vmem:[%s254 + $0x8] sm:$0xff]
      %v433 = vsub.f32 0.0, %v431
      %v434 = vsub.f32 0.0, %v432
      %v435 = vld [vmem:[%s290] sm:$0xff]
      %v436 = vld [vmem:[%s290 + $0x8] sm:$0xff]
      %v437 = vadd.f32 %v433, %v435
      %v438 = vadd.f32 %v434, %v436
      %v439 = vmax.f32 %v437, -3.0
      %v440 = vmax.f32 %v438, -3.0
      %v441 = vmin.f32 %v439, 3.0
      %v442 = vmin.f32 %v440, 3.0
      %s443 = scalar_lea.vmem %s138, 80
      %444 = vst.msk [vmem:[%s443] sm:$0xff] %vm144, %v441
      %445 = vst.msk [vmem:[%s443 + $0x8] sm:$0xff] %vm144, %v442
      %v446 = vld [vmem:[%s254] sm:$0xff]
      %v447 = vld [vmem:[%s254 + $0x8] sm:$0xff]
      %v448 = vsub.f32 0.0, %v446
      %v449 = vsub.f32 0.0, %v447
      %v450 = vld [vmem:[%s299] sm:$0xff]
      %v451 = vld [vmem:[%s299 + $0x8] sm:$0xff]
      %v452 = vadd.f32 %v448, %v450
      %v453 = vadd.f32 %v449, %v451
      %v454 = vmax.f32 %v452, -3.0
      %v455 = vmax.f32 %v453, -3.0
      %v456 = vmin.f32 %v454, 3.0
      %v457 = vmin.f32 %v455, 3.0
      %s458 = scalar_lea.vmem %s138, 96
      %459 = vst.msk [vmem:[%s458] sm:$0xff] %vm144, %v456
      %460 = vst.msk [vmem:[%s458 + $0x8] sm:$0xff] %vm144, %v457
      %v461 = vld [vmem:[%s254] sm:$0xff]
      %v462 = vld [vmem:[%s254 + $0x8] sm:$0xff]
      %v463 = vsub.f32 0.0, %v461
      %v464 = vsub.f32 0.0, %v462
      %v465 = vld [vmem:[%s308] sm:$0xff]
      %v466 = vld [vmem:[%s308 + $0x8] sm:$0xff]
      %v467 = vadd.f32 %v463, %v465
      %v468 = vadd.f32 %v464, %v466
      %v469 = vmax.f32 %v467, -3.0
      %v470 = vmax.f32 %v468, -3.0
      %v471 = vmin.f32 %v469, 3.0
      %v472 = vmin.f32 %v470, 3.0
      %s473 = scalar_lea.vmem %s138, 112
      %474 = vst.msk [vmem:[%s473] sm:$0xff] %vm144, %v471
      %475 = vst.msk [vmem:[%s473 + $0x8] sm:$0xff] %vm144, %v472
      %v476 = vld [vmem:[%s245] sm:$0xff]
      %v477 = vld [vmem:[%s245 + $0x8] sm:$0xff]
      %v478 = vmul.f32 %v476, 0.5
      %v479 = vmul.f32 %v477, 0.5
      %v480 = vld [vmem:[%s254] sm:$0xff]
      %v481 = vld [vmem:[%s254 + $0x8] sm:$0xff]
      %v482 = vsub.f32 %v478, %v480
      %v483 = vsub.f32 %v479, %v481
      %v484 = vld [vmem:[%s263] sm:$0xff]
      %v485 = vld [vmem:[%s263 + $0x8] sm:$0xff]
      %v486 = vmul.f32 %v484, 0.5
      %v487 = vmul.f32 %v485, 0.5
      %v488 = vadd.f32 %v482, %v486
      %v489 = vadd.f32 %v483, %v487
      %v490 = vmax.f32 %v488, -3.0
      %v491 = vmax.f32 %v489, -3.0
      %v492 = vmin.f32 %v490, 3.0
      %v493 = vmin.f32 %v491, 3.0
      %s494 = scalar_lea.vmem %s138, 128
      %495 = vst.msk [vmem:[%s494] sm:$0xff] %vm144, %v492
      %496 = vst.msk [vmem:[%s494 + $0x8] sm:$0xff] %vm144, %v493
      %v497 = vld [vmem:[%s209] sm:$0xff]
      %v498 = vld [vmem:[%s209 + $0x8] sm:$0xff]
      %v499 = vmul.f32 %v497, 0.5
      %v500 = vmul.f32 %v498, 0.5
      %v501 = vld [vmem:[%s254] sm:$0xff]
      %v502 = vld [vmem:[%s254 + $0x8] sm:$0xff]
      %v503 = vsub.f32 %v499, %v501
      %v504 = vsub.f32 %v500, %v502
      %v505 = vld [vmem:[%s299] sm:$0xff]
      %v506 = vld [vmem:[%s299 + $0x8] sm:$0xff]
      %v507 = vmul.f32 %v505, 0.5
      %v508 = vmul.f32 %v506, 0.5
      %v509 = vadd.f32 %v503, %v507
      %v510 = vadd.f32 %v504, %v508
      %v511 = vmax.f32 %v509, -3.0
      %v512 = vmax.f32 %v510, -3.0
      %v513 = vmin.f32 %v511, 3.0
      %v514 = vmin.f32 %v512, 3.0
      %s515 = scalar_lea.vmem %s138, 144
      %516 = vst.msk [vmem:[%s515] sm:$0xff] %vm144, %v513
      %517 = vst.msk [vmem:[%s515 + $0x8] sm:$0xff] %vm144, %v514
      %v518 = vld [vmem:[%s200] sm:$0xff]
      %v519 = vld [vmem:[%s200 + $0x8] sm:$0xff]
      %v520 = vmul.f32 %v518, 0.5
      %v521 = vmul.f32 %v519, 0.5
      %v522 = vld [vmem:[%s254] sm:$0xff]
      %v523 = vld [vmem:[%s254 + $0x8] sm:$0xff]
      %v524 = vsub.f32 %v520, %v522
      %v525 = vsub.f32 %v521, %v523
      %v526 = vld [vmem:[%s308] sm:$0xff]
      %v527 = vld [vmem:[%s308 + $0x8] sm:$0xff]
      %v528 = vmul.f32 %v526, 0.5
      %v529 = vmul.f32 %v527, 0.5
      %v530 = vadd.f32 %v524, %v528
      %v531 = vadd.f32 %v525, %v529
      %v532 = vmax.f32 %v530, -3.0
      %v533 = vmax.f32 %v531, -3.0
      %v534 = vmin.f32 %v532, 3.0
      %v535 = vmin.f32 %v533, 3.0
      %s536 = scalar_lea.vmem %s138, 160
      %537 = vst.msk [vmem:[%s536] sm:$0xff] %vm144, %v534
      %538 = vst.msk [vmem:[%s536 + $0x8] sm:$0xff] %vm144, %v535
      %v539 = vld [vmem:[%s218] sm:$0xff]
      %v540 = vld [vmem:[%s218 + $0x8] sm:$0xff]
      %v541 = vmul.f32 %v539, 0.5
      %v542 = vmul.f32 %v540, 0.5
      %v543 = vld [vmem:[%s254] sm:$0xff]
      %v544 = vld [vmem:[%s254 + $0x8] sm:$0xff]
      %v545 = vsub.f32 %v541, %v543
      %v546 = vsub.f32 %v542, %v544
      %v547 = vld [vmem:[%s290] sm:$0xff]
      %v548 = vld [vmem:[%s290 + $0x8] sm:$0xff]
      %v549 = vmul.f32 %v547, 0.5
      %v550 = vmul.f32 %v548, 0.5
      %v551 = vadd.f32 %v545, %v549
      %v552 = vadd.f32 %v546, %v550
      %v553 = vmax.f32 %v551, -3.0
      %v554 = vmax.f32 %v552, -3.0
      %v555 = vmin.f32 %v553, 3.0
      %v556 = vmin.f32 %v554, 3.0
      %s557 = scalar_lea.vmem %s138, 176
      %558 = vst.msk [vmem:[%s557] sm:$0xff] %vm144, %v555
      %559 = vst.msk [vmem:[%s557 + $0x8] sm:$0xff] %vm144, %v556
      %v560 = vld [vmem:[#allocation2] sm:$0xff]
      %v561 = vld [vmem:[#allocation2 + $0x8] sm:$0xff]
      %v562 = vmul.f32 %v560, -0.33333334
      %v563 = vmul.f32 %v561, -0.33333334
      %v564 = vld [vmem:[%s200] sm:$0xff]
      %v565 = vld [vmem:[%s200 + $0x8] sm:$0xff]
      %v566 = vadd.f32 %v562, %v564
      %v567 = vadd.f32 %v563, %v565
      %v568 = vld [vmem:[%s254] sm:$0xff]
      %v569 = vld [vmem:[%s254 + $0x8] sm:$0xff]
      %v570 = vsub.f32 %v566, %v568
      %v571 = vsub.f32 %v567, %v569
      %v572 = vld [vmem:[%s308] sm:$0xff]
      %v573 = vld [vmem:[%s308 + $0x8] sm:$0xff]
      %v574 = vmul.f32 %v572, 0.33333334
      %v575 = vmul.f32 %v573, 0.33333334
      %v576 = vadd.f32 %v570, %v574
      %v577 = vadd.f32 %v571, %v575
      %v578 = vmax.f32 %v576, -3.0
      %v579 = vmax.f32 %v577, -3.0
      %v580 = vmin.f32 %v578, 3.0
      %v581 = vmin.f32 %v579, 3.0
      %s582 = scalar_lea.vmem %s138, 192
      %583 = vst.msk [vmem:[%s582] sm:$0xff] %vm144, %v580
      %584 = vst.msk [vmem:[%s582 + $0x8] sm:$0xff] %vm144, %v581
      %v585 = vld [vmem:[%s164] sm:$0xff]
      %v586 = vld [vmem:[%s164 + $0x8] sm:$0xff]
      %v587 = vmul.f32 %v585, -0.33333334
      %v588 = vmul.f32 %v586, -0.33333334
      %v589 = vld [vmem:[%s209] sm:$0xff]
      %v590 = vld [vmem:[%s209 + $0x8] sm:$0xff]
      %v591 = vadd.f32 %v587, %v589
      %v592 = vadd.f32 %v588, %v590
      %v593 = vld [vmem:[%s254] sm:$0xff]
      %v594 = vld [vmem:[%s254 + $0x8] sm:$0xff]
      %v595 = vsub.f32 %v591, %v593
      %v596 = vsub.f32 %v592, %v594
      %v597 = vld [vmem:[%s299] sm:$0xff]
      %v598 = vld [vmem:[%s299 + $0x8] sm:$0xff]
      %v599 = vmul.f32 %v597, 0.33333334
      %v600 = vmul.f32 %v598, 0.33333334
      %v601 = vadd.f32 %v595, %v599
      %v602 = vadd.f32 %v596, %v600
      %v603 = vmax.f32 %v601, -3.0
      %v604 = vmax.f32 %v602, -3.0
      %v605 = vmin.f32 %v603, 3.0
      %v606 = vmin.f32 %v604, 3.0
      %s607 = scalar_lea.vmem %s138, 208
      %608 = vst.msk [vmem:[%s607] sm:$0xff] %vm144, %v605
      %609 = vst.msk [vmem:[%s607 + $0x8] sm:$0xff] %vm144, %v606
      %v610 = vld [vmem:[%s182] sm:$0xff]
      %v611 = vld [vmem:[%s182 + $0x8] sm:$0xff]
      %v612 = vmul.f32 %v610, -0.33333334
      %v613 = vmul.f32 %v611, -0.33333334
      %v614 = vld [vmem:[%s218] sm:$0xff]
      %v615 = vld [vmem:[%s218 + $0x8] sm:$0xff]
      %v616 = vadd.f32 %v612, %v614
      %v617 = vadd.f32 %v613, %v615
      %v618 = vld [vmem:[%s254] sm:$0xff]
      %v619 = vld [vmem:[%s254 + $0x8] sm:$0xff]
      %v620 = vsub.f32 %v616, %v618
      %v621 = vsub.f32 %v617, %v619
      %v622 = vld [vmem:[%s290] sm:$0xff]
      %v623 = vld [vmem:[%s290 + $0x8] sm:$0xff]
      %v624 = vmul.f32 %v622, 0.33333334
      %v625 = vmul.f32 %v623, 0.33333334
      %v626 = vadd.f32 %v620, %v624
      %v627 = vadd.f32 %v621, %v625
      %v628 = vmax.f32 %v626, -3.0
      %v629 = vmax.f32 %v627, -3.0
      %v630 = vmin.f32 %v628, 3.0
      %v631 = vmin.f32 %v629, 3.0
      %s632 = scalar_lea.vmem %s138, 224
      %633 = vst.msk [vmem:[%s632] sm:$0xff] %vm144, %v630
      %634 = vst.msk [vmem:[%s632 + $0x8] sm:$0xff] %vm144, %v631
      %v635 = vld [vmem:[%s234] sm:$0xff]
      %v636 = vld [vmem:[%s234 + $0x8] sm:$0xff]
      %v637 = vmul.f32 %v635, -0.33333334
      %v638 = vmul.f32 %v636, -0.33333334
      %v639 = vld [vmem:[%s245] sm:$0xff]
      %v640 = vld [vmem:[%s245 + $0x8] sm:$0xff]
      %v641 = vadd.f32 %v637, %v639
      %v642 = vadd.f32 %v638, %v640
      %v643 = vld [vmem:[%s254] sm:$0xff]
      %v644 = vld [vmem:[%s254 + $0x8] sm:$0xff]
      %v645 = vsub.f32 %v641, %v643
      %v646 = vsub.f32 %v642, %v644
      %v647 = vld [vmem:[%s263] sm:$0xff]
      %v648 = vld [vmem:[%s263 + $0x8] sm:$0xff]
      %v649 = vmul.f32 %v647, 0.33333334
      %v650 = vmul.f32 %v648, 0.33333334
      %v651 = vadd.f32 %v645, %v649
      %v652 = vadd.f32 %v646, %v650
      %v653 = vmax.f32 %v651, -3.0
      %v654 = vmax.f32 %v652, -3.0
      %v655 = vmin.f32 %v653, 3.0
      %v656 = vmin.f32 %v654, 3.0
      %s657 = scalar_lea.vmem %s138, 240
      %658 = vst.msk [vmem:[%s657] sm:$0xff] %vm144, %v655
      %659 = vst.msk [vmem:[%s657 + $0x8] sm:$0xff] %vm144, %v656
      %v660 = vld [vmem:[%s245] sm:$0xff]
      %v661 = vld [vmem:[%s245 + $0x8] sm:$0xff]
      %v662 = vmul.f32 %v660, 0.33333334
      %v663 = vmul.f32 %v661, 0.33333334
      %v664 = vld [vmem:[%s254] sm:$0xff]
      %v665 = vld [vmem:[%s254 + $0x8] sm:$0xff]
      %v666 = vsub.f32 %v662, %v664
      %v667 = vsub.f32 %v663, %v665
      %v668 = vld [vmem:[%s263] sm:$0xff]
      %v669 = vld [vmem:[%s263 + $0x8] sm:$0xff]
      %v670 = vadd.f32 %v666, %v668
      %v671 = vadd.f32 %v667, %v669
      %v672 = vld [vmem:[%s272] sm:$0xff]
      %v673 = vld [vmem:[%s272 + $0x8] sm:$0xff]
      %v674 = vmul.f32 %v672, -0.33333334
      %v675 = vmul.f32 %v673, -0.33333334
      %v676 = vadd.f32 %v670, %v674
      %v677 = vadd.f32 %v671, %v675
      %v678 = vmax.f32 %v676, -3.0
      %v679 = vmax.f32 %v677, -3.0
      %v680 = vmin.f32 %v678, 3.0
      %v681 = vmin.f32 %v679, 3.0
      %s682 = scalar_lea.vmem %s138, 256
      %683 = vst.msk [vmem:[%s682] sm:$0xff] %vm144, %v680
      %684 = vst.msk [vmem:[%s682 + $0x8] sm:$0xff] %vm144, %v681
      %v685 = vld [vmem:[%s218] sm:$0xff]
      %v686 = vld [vmem:[%s218 + $0x8] sm:$0xff]
      %v687 = vmul.f32 %v685, 0.33333334
      %v688 = vmul.f32 %v686, 0.33333334
      %v689 = vld [vmem:[%s254] sm:$0xff]
      %v690 = vld [vmem:[%s254 + $0x8] sm:$0xff]
      %v691 = vsub.f32 %v687, %v689
      %v692 = vsub.f32 %v688, %v690
      %v693 = vld [vmem:[%s290] sm:$0xff]
      %v694 = vld [vmem:[%s290 + $0x8] sm:$0xff]
      %v695 = vadd.f32 %v691, %v693
      %v696 = vadd.f32 %v692, %v694
      %v697 = vld [vmem:[%s324] sm:$0xff]
      %v698 = vld [vmem:[%s324 + $0x8] sm:$0xff]
      %v699 = vmul.f32 %v697, -0.33333334
      %v700 = vmul.f32 %v698, -0.33333334
      %v701 = vadd.f32 %v695, %v699
      %v702 = vadd.f32 %v696, %v700
      %v703 = vmax.f32 %v701, -3.0
      %v704 = vmax.f32 %v702, -3.0
      %v705 = vmin.f32 %v703, 3.0
      %v706 = vmin.f32 %v704, 3.0
      %s707 = scalar_lea.vmem %s138, 272
      %708 = vst.msk [vmem:[%s707] sm:$0xff] %vm144, %v705
      %709 = vst.msk [vmem:[%s707 + $0x8] sm:$0xff] %vm144, %v706
      %v710 = vld [vmem:[%s209] sm:$0xff]
      %v711 = vld [vmem:[%s209 + $0x8] sm:$0xff]
      %v712 = vmul.f32 %v710, 0.33333334
      %v713 = vmul.f32 %v711, 0.33333334
      %v714 = vld [vmem:[%s254] sm:$0xff]
      %v715 = vld [vmem:[%s254 + $0x8] sm:$0xff]
      %v716 = vsub.f32 %v712, %v714
      %v717 = vsub.f32 %v713, %v715
      %v718 = vld [vmem:[%s299] sm:$0xff]
      %v719 = vld [vmem:[%s299 + $0x8] sm:$0xff]
      %v720 = vadd.f32 %v716, %v718
      %v721 = vadd.f32 %v717, %v719
      %v722 = vld [vmem:[%s344] sm:$0xff]
      %v723 = vld [vmem:[%s344 + $0x8] sm:$0xff]
      %v724 = vmul.f32 %v722, -0.33333334
      %v725 = vmul.f32 %v723, -0.33333334
      %v726 = vadd.f32 %v720, %v724
      %v727 = vadd.f32 %v721, %v725
      %v728 = vmax.f32 %v726, -3.0
      %v729 = vmax.f32 %v727, -3.0
      %v730 = vmin.f32 %v728, 3.0
      %v731 = vmin.f32 %v729, 3.0
      %s732 = scalar_lea.vmem %s138, 288
      %733 = vst.msk [vmem:[%s732] sm:$0xff] %vm144, %v730
      %734 = vst.msk [vmem:[%s732 + $0x8] sm:$0xff] %vm144, %v731
      %v735 = vld [vmem:[%s200] sm:$0xff]
      %v736 = vld [vmem:[%s200 + $0x8] sm:$0xff]
      %v737 = vmul.f32 %v735, 0.33333334
      %v738 = vmul.f32 %v736, 0.33333334
      %v739 = vld [vmem:[%s254] sm:$0xff]
      %v740 = vld [vmem:[%s254 + $0x8] sm:$0xff]
      %v741 = vsub.f32 %v737, %v739
      %v742 = vsub.f32 %v738, %v740
      %v743 = vld [vmem:[%s308] sm:$0xff]
      %v744 = vld [vmem:[%s308 + $0x8] sm:$0xff]
      %v745 = vadd.f32 %v741, %v743
      %v746 = vadd.f32 %v742, %v744
      %v747 = vld [vmem:[%s362] sm:$0xff]
      %v748 = vld [vmem:[%s362 + $0x8] sm:$0xff]
      %v749 = vmul.f32 %v747, -0.33333334
      %v750 = vmul.f32 %v748, -0.33333334
      %v751 = vadd.f32 %v745, %v749
      %v752 = vadd.f32 %v746, %v750
      %v753 = vmax.f32 %v751, -3.0
      %v754 = vmax.f32 %v752, -3.0
      %v755 = vmin.f32 %v753, 3.0
      %v756 = vmin.f32 %v754, 3.0
      %s757 = scalar_lea.vmem %s138, 304
      %758 = vst.msk [vmem:[%s757] sm:$0xff] %vm144, %v755
      %759 = vst.msk [vmem:[%s757 + $0x8] sm:$0xff] %vm144, %v756
      %v760 = vld [vmem:[%s200] sm:$0xff]
      %v761 = vld [vmem:[%s200 + $0x8] sm:$0xff]
      %v762 = vmul.f32 %v760, -0.25
      %v763 = vmul.f32 %v761, -0.25
      %v764 = vld [vmem:[%s209] sm:$0xff]
      %v765 = vld [vmem:[%s209 + $0x8] sm:$0xff]
      %v766 = vmul.f32 %v764, 0.5
      %v767 = vmul.f32 %v765, 0.5
      %v768 = vadd.f32 %v762, %v766
      %v769 = vadd.f32 %v763, %v767
      %v770 = vld [vmem:[%s218] sm:$0xff]
      %v771 = vld [vmem:[%s218 + $0x8] sm:$0xff]
      %v772 = vmul.f32 %v770, -0.25
      %v773 = vmul.f32 %v771, -0.25
      %v774 = vadd.f32 %v768, %v772
      %v775 = vadd.f32 %v769, %v773
      %v776 = vld [vmem:[%s245] sm:$0xff]
      %v777 = vld [vmem:[%s245 + $0x8] sm:$0xff]
      %v778 = vmul.f32 %v776, 0.5
      %v779 = vmul.f32 %v777, 0.5
      %v780 = vadd.f32 %v774, %v778
      %v781 = vadd.f32 %v775, %v779
      %v782 = vld [vmem:[%s254] sm:$0xff]
      %v783 = vld [vmem:[%s254 + $0x8] sm:$0xff]
      %v784 = vsub.f32 %v780, %v782
      %v785 = vsub.f32 %v781, %v783
      %v786 = vld [vmem:[%s263] sm:$0xff]
      %v787 = vld [vmem:[%s263 + $0x8] sm:$0xff]
      %v788 = vmul.f32 %v786, 0.5
      %v789 = vmul.f32 %v787, 0.5
      %v790 = vadd.f32 %v784, %v788
      %v791 = vadd.f32 %v785, %v789
      %v792 = vld [vmem:[%s290] sm:$0xff]
      %v793 = vld [vmem:[%s290 + $0x8] sm:$0xff]
      %v794 = vmul.f32 %v792, -0.25
      %v795 = vmul.f32 %v793, -0.25
      %v796 = vadd.f32 %v790, %v794
      %v797 = vadd.f32 %v791, %v795
      %v798 = vld [vmem:[%s299] sm:$0xff]
      %v799 = vld [vmem:[%s299 + $0x8] sm:$0xff]
      %v800 = vmul.f32 %v798, 0.5
      %v801 = vmul.f32 %v799, 0.5
      %v802 = vadd.f32 %v796, %v800
      %v803 = vadd.f32 %v797, %v801
      %v804 = vld [vmem:[%s308] sm:$0xff]
      %v805 = vld [vmem:[%s308 + $0x8] sm:$0xff]
      %v806 = vmul.f32 %v804, -0.25
      %v807 = vmul.f32 %v805, -0.25
      %v808 = vadd.f32 %v802, %v806
      %v809 = vadd.f32 %v803, %v807
      %v810 = vmax.f32 %v808, -3.0
      %v811 = vmax.f32 %v809, -3.0
      %v812 = vmin.f32 %v810, 3.0
      %v813 = vmin.f32 %v811, 3.0
      %s814 = scalar_lea.vmem %s138, 320
      %815 = vst.msk [vmem:[%s814] sm:$0xff] %vm144, %v812
      %816 = vst.msk [vmem:[%s814 + $0x8] sm:$0xff] %vm144, %v813
      %v817 = vld [vmem:[#allocation2] sm:$0xff]
      %v818 = vld [vmem:[#allocation2 + $0x8] sm:$0xff]
      %v819 = vmul.f32 %v817, -0.083333336
      %v820 = vmul.f32 %v818, -0.083333336
      %v821 = vld [vmem:[%s155] sm:$0xff]
      %v822 = vld [vmem:[%s155 + $0x8] sm:$0xff]
      %v823 = vmul.f32 %v821, 0.16666667
      %v824 = vmul.f32 %v822, 0.16666667
      %v825 = vadd.f32 %v819, %v823
      %v826 = vadd.f32 %v820, %v824
      %v827 = vld [vmem:[%s164] sm:$0xff]
      %v828 = vld [vmem:[%s164 + $0x8] sm:$0xff]
      %v829 = vmul.f32 %v827, -0.16666667
      %v830 = vmul.f32 %v828, -0.16666667
      %v831 = vadd.f32 %v825, %v829
      %v832 = vadd.f32 %v826, %v830
      %v833 = vld [vmem:[%s173] sm:$0xff]
      %v834 = vld [vmem:[%s173 + $0x8] sm:$0xff]
      %v835 = vmul.f32 %v833, 0.16666667
      %v836 = vmul.f32 %v834, 0.16666667
      %v837 = vadd.f32 %v831, %v835
      %v838 = vadd.f32 %v832, %v836
      %v839 = vld [vmem:[%s182] sm:$0xff]
      %v840 = vld [vmem:[%s182 + $0x8] sm:$0xff]
      %v841 = vmul.f32 %v839, -0.083333336
      %v842 = vmul.f32 %v840, -0.083333336
      %v843 = vadd.f32 %v837, %v841
      %v844 = vadd.f32 %v838, %v842
      %v845 = vld [vmem:[%s189] sm:$0xff]
      %v846 = vld [vmem:[%s189 + $0x8] sm:$0xff]
      %v847 = vmul.f32 %v845, 0.16666667
      %v848 = vmul.f32 %v846, 0.16666667
      %v849 = vadd.f32 %v843, %v847
      %v850 = vadd.f32 %v844, %v848
      %v851 = vld [vmem:[%s200] sm:$0xff]
      %v852 = vld [vmem:[%s200 + $0x8] sm:$0xff]
      %v853 = vmul.f32 %v851, -0.5
      %v854 = vmul.f32 %v852, -0.5
      %v855 = vadd.f32 %v849, %v853
      %v856 = vadd.f32 %v850, %v854
      %v857 = vld [vmem:[%s209] sm:$0xff]
      %v858 = vld [vmem:[%s209 + $0x8] sm:$0xff]
      %v859 = vmul.f32 %v857, 0.6666667
      %v860 = vmul.f32 %v858, 0.6666667
      %v861 = vadd.f32 %v855, %v859
      %v862 = vadd.f32 %v856, %v860
      %v863 = vld [vmem:[%s218] sm:$0xff]
      %v864 = vld [vmem:[%s218 + $0x8] sm:$0xff]
      %v865 = vmul.f32 %v863, -0.5
      %v866 = vmul.f32 %v864, -0.5
      %v867 = vadd.f32 %v861, %v865
      %v868 = vadd.f32 %v862, %v866
      %v869 = vld [vmem:[%s227] sm:$0xff]
      %v870 = vld [vmem:[%s227 + $0x8] sm:$0xff]
      %v871 = vmul.f32 %v869, 0.16666667
      %v872 = vmul.f32 %v870, 0.16666667
      %v873 = vadd.f32 %v867, %v871
      %v874 = vadd.f32 %v868, %v872
      %v875 = vld [vmem:[%s234] sm:$0xff]
      %v876 = vld [vmem:[%s234 + $0x8] sm:$0xff]
      %v877 = vmul.f32 %v875, -0.16666667
      %v878 = vmul.f32 %v876, -0.16666667
      %v879 = vadd.f32 %v873, %v877
      %v880 = vadd.f32 %v874, %v878
      %v881 = vld [vmem:[%s245] sm:$0xff]
      %v882 = vld [vmem:[%s245 + $0x8] sm:$0xff]
      %v883 = vmul.f32 %v881, 0.6666667
      %v884 = vmul.f32 %v882, 0.6666667
      %v885 = vadd.f32 %v879, %v883
      %v886 = vadd.f32 %v880, %v884
      %v887 = vld [vmem:[%s254] sm:$0xff]
      %v888 = vld [vmem:[%s254 + $0x8] sm:$0xff]
      %v889 = vsub.f32 %v885, %v887
      %v890 = vsub.f32 %v886, %v888
      %v891 = vld [vmem:[%s263] sm:$0xff]
      %v892 = vld [vmem:[%s263 + $0x8] sm:$0xff]
      %v893 = vmul.f32 %v891, 0.6666667
      %v894 = vmul.f32 %v892, 0.6666667
      %v895 = vadd.f32 %v889, %v893
      %v896 = vadd.f32 %v890, %v894
      %v897 = vld [vmem:[%s272] sm:$0xff]
      %v898 = vld [vmem:[%s272 + $0x8] sm:$0xff]
      %v899 = vmul.f32 %v897, -0.16666667
      %v900 = vmul.f32 %v898, -0.16666667
      %v901 = vadd.f32 %v895, %v899
      %v902 = vadd.f32 %v896, %v900
      %v903 = vld [vmem:[%s279] sm:$0xff]
      %v904 = vld [vmem:[%s279 + $0x8] sm:$0xff]
      %v905 = vmul.f32 %v903, 0.16666667
      %v906 = vmul.f32 %v904, 0.16666667
      %v907 = vadd.f32 %v901, %v905
      %v908 = vadd.f32 %v902, %v906
      %v909 = vld [vmem:[%s290] sm:$0xff]
      %v910 = vld [vmem:[%s290 + $0x8] sm:$0xff]
      %v911 = vmul.f32 %v909, -0.5
      %v912 = vmul.f32 %v910, -0.5
      %v913 = vadd.f32 %v907, %v911
      %v914 = vadd.f32 %v908, %v912
      %v915 = vld [vmem:[%s299] sm:$0xff]
      %v916 = vld [vmem:[%s299 + $0x8] sm:$0xff]
      %v917 = vmul.f32 %v915, 0.6666667
      %v918 = vmul.f32 %v916, 0.6666667
      %v919 = vadd.f32 %v913, %v917
      %v920 = vadd.f32 %v914, %v918
      %v921 = vld [vmem:[%s308] sm:$0xff]
      %v922 = vld [vmem:[%s308 + $0x8] sm:$0xff]
      %v923 = vmul.f32 %v921, -0.5
      %v924 = vmul.f32 %v922, -0.5
      %v925 = vadd.f32 %v919, %v923
      %v926 = vadd.f32 %v920, %v924
      %v927 = vld [vmem:[%s317] sm:$0xff]
      %v928 = vld [vmem:[%s317 + $0x8] sm:$0xff]
      %v929 = vmul.f32 %v927, 0.16666667
      %v930 = vmul.f32 %v928, 0.16666667
      %v931 = vadd.f32 %v925, %v929
      %v932 = vadd.f32 %v926, %v930
      %v933 = vld [vmem:[%s324] sm:$0xff]
      %v934 = vld [vmem:[%s324 + $0x8] sm:$0xff]
      %v935 = vmul.f32 %v933, -0.083333336
      %v936 = vmul.f32 %v934, -0.083333336
      %v937 = vadd.f32 %v931, %v935
      %v938 = vadd.f32 %v932, %v936
      %v939 = vld [vmem:[%s335] sm:$0xff]
      %v940 = vld [vmem:[%s335 + $0x8] sm:$0xff]
      %v941 = vmul.f32 %v939, 0.16666667
      %v942 = vmul.f32 %v940, 0.16666667
      %v943 = vadd.f32 %v937, %v941
      %v944 = vadd.f32 %v938, %v942
      %v945 = vld [vmem:[%s344] sm:$0xff]
      %v946 = vld [vmem:[%s344 + $0x8] sm:$0xff]
      %v947 = vmul.f32 %v945, -0.16666667
      %v948 = vmul.f32 %v946, -0.16666667
      %v949 = vadd.f32 %v943, %v947
      %v950 = vadd.f32 %v944, %v948
      %v951 = vld [vmem:[%s353] sm:$0xff]
      %v952 = vld [vmem:[%s353 + $0x8] sm:$0xff]
      %v953 = vmul.f32 %v951, 0.16666667
      %v954 = vmul.f32 %v952, 0.16666667
      %v955 = vadd.f32 %v949, %v953
      %v956 = vadd.f32 %v950, %v954
      %v957 = vld [vmem:[%s362] sm:$0xff]
      %v958 = vld [vmem:[%s362 + $0x8] sm:$0xff]
      %v959 = vmul.f32 %v957, -0.083333336
      %v960 = vmul.f32 %v958, -0.083333336
      %v961 = vadd.f32 %v955, %v959
      %v962 = vadd.f32 %v956, %v960
      %v963 = vmax.f32 %v961, -3.0
      %v964 = vmax.f32 %v962, -3.0
      %v965 = vmin.f32 %v963, 3.0
      %v966 = vmin.f32 %v964, 3.0
      %s967 = scalar_lea.vmem %s138, 336
      %968 = vst.msk [vmem:[%s967] sm:$0xff] %vm144, %v965
      %969 = vst.msk [vmem:[%s967 + $0x8] sm:$0xff] %vm144, %v966
      %v970 = vld [vmem:[%s200] sm:$0xff]
      %v971 = vld [vmem:[%s200 + $0x8] sm:$0xff]
      %v972 = vmul.f32 %v970, -0.25
      %v973 = vmul.f32 %v971, -0.25
      %v974 = vld [vmem:[%s209] sm:$0xff]
      %v975 = vld [vmem:[%s209 + $0x8] sm:$0xff]
      %v976 = vmul.f32 %v974, 0.5
      %v977 = vmul.f32 %v975, 0.5
      %v978 = vadd.f32 %v972, %v976
      %v979 = vadd.f32 %v973, %v977
      %v980 = vld [vmem:[%s218] sm:$0xff]
      %v981 = vld [vmem:[%s218 + $0x8] sm:$0xff]
      %v982 = vmul.f32 %v980, -0.25
      %v983 = vmul.f32 %v981, -0.25
      %v984 = vadd.f32 %v978, %v982
      %v985 = vadd.f32 %v979, %v983
      %v986 = vld [vmem:[%s245] sm:$0xff]
      %v987 = vld [vmem:[%s245 + $0x8] sm:$0xff]
      %v988 = vmul.f32 %v986, 0.5
      %v989 = vmul.f32 %v987, 0.5
      %v990 = vadd.f32 %v984, %v988
      %v991 = vadd.f32 %v985, %v989
      %v992 = vld [vmem:[%s254] sm:$0xff]
      %v993 = vld [vmem:[%s254 + $0x8] sm:$0xff]
      %v994 = vsub.f32 %v990, %v992
      %v995 = vsub.f32 %v991, %v993
      %v996 = vld [vmem:[%s263] sm:$0xff]
      %v997 = vld [vmem:[%s263 + $0x8] sm:$0xff]
      %v998 = vmul.f32 %v996, 0.5
      %v999 = vmul.f32 %v997, 0.5
      %v1000 = vadd.f32 %v994, %v998
      %v1001 = vadd.f32 %v995, %v999
      %v1002 = vmax.f32 %v1000, -3.0
      %v1003 = vmax.f32 %v1001, -3.0
      %v1004 = vmin.f32 %v1002, 3.0
      %v1005 = vmin.f32 %v1003, 3.0
      %s1006 = scalar_lea.vmem %s138, 352
      %1007 = vst.msk [vmem:[%s1006] sm:$0xff] %vm144, %v1004
      %1008 = vst.msk [vmem:[%s1006 + $0x8] sm:$0xff] %vm144, %v1005
      %v1009 = vld [vmem:[%s200] sm:$0xff]
      %v1010 = vld [vmem:[%s200 + $0x8] sm:$0xff]
      %v1011 = vmul.f32 %v1009, -0.25
      %v1012 = vmul.f32 %v1010, -0.25
      %v1013 = vld [vmem:[%s209] sm:$0xff]
      %v1014 = vld [vmem:[%s209 + $0x8] sm:$0xff]
      %v1015 = vmul.f32 %v1013, 0.5
      %v1016 = vmul.f32 %v1014, 0.5
      %v1017 = vadd.f32 %v1011, %v1015
      %v1018 = vadd.f32 %v1012, %v1016
      %v1019 = vld [vmem:[%s245] sm:$0xff]
      %v1020 = vld [vmem:[%s245 + $0x8] sm:$0xff]
      %v1021 = vmul.f32 %v1019, 0.5
      %v1022 = vmul.f32 %v1020, 0.5
      %v1023 = vadd.f32 %v1017, %v1021
      %v1024 = vadd.f32 %v1018, %v1022
      %v1025 = vld [vmem:[%s254] sm:$0xff]
      %v1026 = vld [vmem:[%s254 + $0x8] sm:$0xff]
      %v1027 = vsub.f32 %v1023, %v1025
      %v1028 = vsub.f32 %v1024, %v1026
      %v1029 = vld [vmem:[%s290] sm:$0xff]
      %v1030 = vld [vmem:[%s290 + $0x8] sm:$0xff]
      %v1031 = vmul.f32 %v1029, -0.25
      %v1032 = vmul.f32 %v1030, -0.25
      %v1033 = vadd.f32 %v1027, %v1031
      %v1034 = vadd.f32 %v1028, %v1032
      %v1035 = vld [vmem:[%s299] sm:$0xff]
      %v1036 = vld [vmem:[%s299 + $0x8] sm:$0xff]
      %v1037 = vmul.f32 %v1035, 0.5
      %v1038 = vmul.f32 %v1036, 0.5
      %v1039 = vadd.f32 %v1033, %v1037
      %v1040 = vadd.f32 %v1034, %v1038
      %v1041 = vmax.f32 %v1039, -3.0
      %v1042 = vmax.f32 %v1040, -3.0
      %v1043 = vmin.f32 %v1041, 3.0
      %v1044 = vmin.f32 %v1042, 3.0
      %s1045 = scalar_lea.vmem %s138, 368
      %1046 = vst.msk [vmem:[%s1045] sm:$0xff] %vm144, %v1043
      %1047 = vst.msk [vmem:[%s1045 + $0x8] sm:$0xff] %vm144, %v1044
      %v1048 = vld [vmem:[%s245] sm:$0xff]
      %v1049 = vld [vmem:[%s245 + $0x8] sm:$0xff]
      %v1050 = vmul.f32 %v1048, 0.5
      %v1051 = vmul.f32 %v1049, 0.5
      %v1052 = vld [vmem:[%s254] sm:$0xff]
      %v1053 = vld [vmem:[%s254 + $0x8] sm:$0xff]
      %v1054 = vsub.f32 %v1050, %v1052
      %v1055 = vsub.f32 %v1051, %v1053
      %v1056 = vld [vmem:[%s263] sm:$0xff]
      %v1057 = vld [vmem:[%s263 + $0x8] sm:$0xff]
      %v1058 = vmul.f32 %v1056, 0.5
      %v1059 = vmul.f32 %v1057, 0.5
      %v1060 = vadd.f32 %v1054, %v1058
      %v1061 = vadd.f32 %v1055, %v1059
      %v1062 = vld [vmem:[%s290] sm:$0xff]
      %v1063 = vld [vmem:[%s290 + $0x8] sm:$0xff]
      %v1064 = vmul.f32 %v1062, -0.25
      %v1065 = vmul.f32 %v1063, -0.25
      %v1066 = vadd.f32 %v1060, %v1064
      %v1067 = vadd.f32 %v1061, %v1065
      %v1068 = vld [vmem:[%s299] sm:$0xff]
      %v1069 = vld [vmem:[%s299 + $0x8] sm:$0xff]
      %v1070 = vmul.f32 %v1068, 0.5
      %v1071 = vmul.f32 %v1069, 0.5
      %v1072 = vadd.f32 %v1066, %v1070
      %v1073 = vadd.f32 %v1067, %v1071
      %v1074 = vld [vmem:[%s308] sm:$0xff]
      %v1075 = vld [vmem:[%s308 + $0x8] sm:$0xff]
      %v1076 = vmul.f32 %v1074, -0.25
      %v1077 = vmul.f32 %v1075, -0.25
      %v1078 = vadd.f32 %v1072, %v1076
      %v1079 = vadd.f32 %v1073, %v1077
      %v1080 = vmax.f32 %v1078, -3.0
      %v1081 = vmax.f32 %v1079, -3.0
      %v1082 = vmin.f32 %v1080, 3.0
      %v1083 = vmin.f32 %v1081, 3.0
      %s1084 = scalar_lea.vmem %s138, 384
      %1085 = vst.msk [vmem:[%s1084] sm:$0xff] %vm144, %v1082
      %1086 = vst.msk [vmem:[%s1084 + $0x8] sm:$0xff] %vm144, %v1083
      %v1087 = vld [vmem:[%s209] sm:$0xff]
      %v1088 = vld [vmem:[%s209 + $0x8] sm:$0xff]
      %v1089 = vmul.f32 %v1087, 0.5
      %v1090 = vmul.f32 %v1088, 0.5
      %v1091 = vld [vmem:[%s218] sm:$0xff]
      %v1092 = vld [vmem:[%s218 + $0x8] sm:$0xff]
      %v1093 = vmul.f32 %v1091, -0.25
      %v1094 = vmul.f32 %v1092, -0.25
      %v1095 = vadd.f32 %v1089, %v1093
      %v1096 = vadd.f32 %v1090, %v1094
      %v1097 = vld [vmem:[%s254] sm:$0xff]
      %v1098 = vld [vmem:[%s254 + $0x8] sm:$0xff]
      %v1099 = vsub.f32 %v1095, %v1097
      %v1100 = vsub.f32 %v1096, %v1098
      %v1101 = vld [vmem:[%s263] sm:$0xff]
      %v1102 = vld [vmem:[%s263 + $0x8] sm:$0xff]
      %v1103 = vmul.f32 %v1101, 0.5
      %v1104 = vmul.f32 %v1102, 0.5
      %v1105 = vadd.f32 %v1099, %v1103
      %v1106 = vadd.f32 %v1100, %v1104
      %v1107 = vld [vmem:[%s299] sm:$0xff]
      %v1108 = vld [vmem:[%s299 + $0x8] sm:$0xff]
      %v1109 = vmul.f32 %v1107, 0.5
      %v1110 = vmul.f32 %v1108, 0.5
      %v1111 = vadd.f32 %v1105, %v1109
      %v1112 = vadd.f32 %v1106, %v1110
      %v1113 = vld [vmem:[%s308] sm:$0xff]
      %v1114 = vld [vmem:[%s308 + $0x8] sm:$0xff]
      %v1115 = vmul.f32 %v1113, -0.25
      %v1116 = vmul.f32 %v1114, -0.25
      %v1117 = vadd.f32 %v1111, %v1115
      %v1118 = vadd.f32 %v1112, %v1116
      %v1119 = vmax.f32 %v1117, -3.0
      %v1120 = vmax.f32 %v1118, -3.0
      %v1121 = vmin.f32 %v1119, 3.0
      %v1122 = vmin.f32 %v1120, 3.0
      %s1123 = scalar_lea.vmem %s138, 400
      %1124 = vst.msk [vmem:[%s1123] sm:$0xff] %vm144, %v1121
      %1125 = vst.msk [vmem:[%s1123 + $0x8] sm:$0xff] %vm144, %v1122
      %v1126 = vld [vmem:[#allocation2] sm:$0xff]
      %v1127 = vld [vmem:[#allocation2 + $0x8] sm:$0xff]
      %v1128 = vmul.f32 %v1126, -0.083333336
      %v1129 = vmul.f32 %v1127, -0.083333336
      %v1130 = vld [vmem:[%s155] sm:$0xff]
      %v1131 = vld [vmem:[%s155 + $0x8] sm:$0xff]
      %v1132 = vmul.f32 %v1130, 0.16666667
      %v1133 = vmul.f32 %v1131, 0.16666667
      %v1134 = vadd.f32 %v1128, %v1132
      %v1135 = vadd.f32 %v1129, %v1133
      %v1136 = vld [vmem:[%s164] sm:$0xff]
      %v1137 = vld [vmem:[%s164 + $0x8] sm:$0xff]
      %v1138 = vmul.f32 %v1136, -0.16666667
      %v1139 = vmul.f32 %v1137, -0.16666667
      %v1140 = vadd.f32 %v1134, %v1138
      %v1141 = vadd.f32 %v1135, %v1139
      %v1142 = vld [vmem:[%s173] sm:$0xff]
      %v1143 = vld [vmem:[%s173 + $0x8] sm:$0xff]
      %v1144 = vmul.f32 %v1142, 0.16666667
      %v1145 = vmul.f32 %v1143, 0.16666667
      %v1146 = vadd.f32 %v1140, %v1144
      %v1147 = vadd.f32 %v1141, %v1145
      %v1148 = vld [vmem:[%s182] sm:$0xff]
      %v1149 = vld [vmem:[%s182 + $0x8] sm:$0xff]
      %v1150 = vmul.f32 %v1148, -0.083333336
      %v1151 = vmul.f32 %v1149, -0.083333336
      %v1152 = vadd.f32 %v1146, %v1150
      %v1153 = vadd.f32 %v1147, %v1151
      %v1154 = vld [vmem:[%s189] sm:$0xff]
      %v1155 = vld [vmem:[%s189 + $0x8] sm:$0xff]
      %v1156 = vmul.f32 %v1154, 0.16666667
      %v1157 = vmul.f32 %v1155, 0.16666667
      %v1158 = vadd.f32 %v1152, %v1156
      %v1159 = vadd.f32 %v1153, %v1157
      %v1160 = vld [vmem:[%s200] sm:$0xff]
      %v1161 = vld [vmem:[%s200 + $0x8] sm:$0xff]
      %v1162 = vmul.f32 %v1160, -0.5
      %v1163 = vmul.f32 %v1161, -0.5
      %v1164 = vadd.f32 %v1158, %v1162
      %v1165 = vadd.f32 %v1159, %v1163
      %v1166 = vld [vmem:[%s209] sm:$0xff]
      %v1167 = vld [vmem:[%s209 + $0x8] sm:$0xff]
      %v1168 = vmul.f32 %v1166, 0.6666667
      %v1169 = vmul.f32 %v1167, 0.6666667
      %v1170 = vadd.f32 %v1164, %v1168
      %v1171 = vadd.f32 %v1165, %v1169
      %v1172 = vld [vmem:[%s218] sm:$0xff]
      %v1173 = vld [vmem:[%s218 + $0x8] sm:$0xff]
      %v1174 = vmul.f32 %v1172, -0.5
      %v1175 = vmul.f32 %v1173, -0.5
      %v1176 = vadd.f32 %v1170, %v1174
      %v1177 = vadd.f32 %v1171, %v1175
      %v1178 = vld [vmem:[%s227] sm:$0xff]
      %v1179 = vld [vmem:[%s227 + $0x8] sm:$0xff]
      %v1180 = vmul.f32 %v1178, 0.16666667
      %v1181 = vmul.f32 %v1179, 0.16666667
      %v1182 = vadd.f32 %v1176, %v1180
      %v1183 = vadd.f32 %v1177, %v1181
      %v1184 = vld [vmem:[%s234] sm:$0xff]
      %v1185 = vld [vmem:[%s234 + $0x8] sm:$0xff]
      %v1186 = vmul.f32 %v1184, -0.16666667
      %v1187 = vmul.f32 %v1185, -0.16666667
      %v1188 = vadd.f32 %v1182, %v1186
      %v1189 = vadd.f32 %v1183, %v1187
      %v1190 = vld [vmem:[%s245] sm:$0xff]
      %v1191 = vld [vmem:[%s245 + $0x8] sm:$0xff]
      %v1192 = vmul.f32 %v1190, 0.6666667
      %v1193 = vmul.f32 %v1191, 0.6666667
      %v1194 = vadd.f32 %v1188, %v1192
      %v1195 = vadd.f32 %v1189, %v1193
      %v1196 = vld [vmem:[%s254] sm:$0xff]
      %v1197 = vld [vmem:[%s254 + $0x8] sm:$0xff]
      %v1198 = vsub.f32 %v1194, %v1196
      %v1199 = vsub.f32 %v1195, %v1197
      %v1200 = vld [vmem:[%s263] sm:$0xff]
      %v1201 = vld [vmem:[%s263 + $0x8] sm:$0xff]
      %v1202 = vmul.f32 %v1200, 0.6666667
      %v1203 = vmul.f32 %v1201, 0.6666667
      %v1204 = vadd.f32 %v1198, %v1202
      %v1205 = vadd.f32 %v1199, %v1203
      %v1206 = vld [vmem:[%s272] sm:$0xff]
      %v1207 = vld [vmem:[%s272 + $0x8] sm:$0xff]
      %v1208 = vmul.f32 %v1206, -0.16666667
      %v1209 = vmul.f32 %v1207, -0.16666667
      %v1210 = vadd.f32 %v1204, %v1208
      %v1211 = vadd.f32 %v1205, %v1209
      %v1212 = vmax.f32 %v1210, -3.0
      %v1213 = vmax.f32 %v1211, -3.0
      %v1214 = vmin.f32 %v1212, 3.0
      %v1215 = vmin.f32 %v1213, 3.0
      %s1216 = scalar_lea.vmem %s138, 416
      %1217 = vst.msk [vmem:[%s1216] sm:$0xff] %vm144, %v1214
      %1218 = vst.msk [vmem:[%s1216 + $0x8] sm:$0xff] %vm144, %v1215
      %v1219 = vld [vmem:[#allocation2] sm:$0xff]
      %v1220 = vld [vmem:[#allocation2 + $0x8] sm:$0xff]
      %v1221 = vmul.f32 %v1219, -0.083333336
      %v1222 = vmul.f32 %v1220, -0.083333336
      %v1223 = vld [vmem:[%s155] sm:$0xff]
      %v1224 = vld [vmem:[%s155 + $0x8] sm:$0xff]
      %v1225 = vmul.f32 %v1223, 0.16666667
      %v1226 = vmul.f32 %v1224, 0.16666667
      %v1227 = vadd.f32 %v1221, %v1225
      %v1228 = vadd.f32 %v1222, %v1226
      %v1229 = vld [vmem:[%s164] sm:$0xff]
      %v1230 = vld [vmem:[%s164 + $0x8] sm:$0xff]
      %v1231 = vmul.f32 %v1229, -0.16666667
      %v1232 = vmul.f32 %v1230, -0.16666667
      %v1233 = vadd.f32 %v1227, %v1231
      %v1234 = vadd.f32 %v1228, %v1232
      %v1235 = vld [vmem:[%s189] sm:$0xff]
      %v1236 = vld [vmem:[%s189 + $0x8] sm:$0xff]
      %v1237 = vmul.f32 %v1235, 0.16666667
      %v1238 = vmul.f32 %v1236, 0.16666667
      %v1239 = vadd.f32 %v1233, %v1237
      %v1240 = vadd.f32 %v1234, %v1238
      %v1241 = vld [vmem:[%s200] sm:$0xff]
      %v1242 = vld [vmem:[%s200 + $0x8] sm:$0xff]
      %v1243 = vmul.f32 %v1241, -0.5
      %v1244 = vmul.f32 %v1242, -0.5
      %v1245 = vadd.f32 %v1239, %v1243
      %v1246 = vadd.f32 %v1240, %v1244
      %v1247 = vld [vmem:[%s209] sm:$0xff]
      %v1248 = vld [vmem:[%s209 + $0x8] sm:$0xff]
      %v1249 = vmul.f32 %v1247, 0.6666667
      %v1250 = vmul.f32 %v1248, 0.6666667
      %v1251 = vadd.f32 %v1245, %v1249
      %v1252 = vadd.f32 %v1246, %v1250
      %v1253 = vld [vmem:[%s234] sm:$0xff]
      %v1254 = vld [vmem:[%s234 + $0x8] sm:$0xff]
      %v1255 = vmul.f32 %v1253, -0.16666667
      %v1256 = vmul.f32 %v1254, -0.16666667
      %v1257 = vadd.f32 %v1251, %v1255
      %v1258 = vadd.f32 %v1252, %v1256
      %v1259 = vld [vmem:[%s245] sm:$0xff]
      %v1260 = vld [vmem:[%s245 + $0x8] sm:$0xff]
      %v1261 = vmul.f32 %v1259, 0.6666667
      %v1262 = vmul.f32 %v1260, 0.6666667
      %v1263 = vadd.f32 %v1257, %v1261
      %v1264 = vadd.f32 %v1258, %v1262
      %v1265 = vld [vmem:[%s254] sm:$0xff]
      %v1266 = vld [vmem:[%s254 + $0x8] sm:$0xff]
      %v1267 = vsub.f32 %v1263, %v1265
      %v1268 = vsub.f32 %v1264, %v1266
      %v1269 = vld [vmem:[%s279] sm:$0xff]
      %v1270 = vld [vmem:[%s279 + $0x8] sm:$0xff]
      %v1271 = vmul.f32 %v1269, 0.16666667
      %v1272 = vmul.f32 %v1270, 0.16666667
      %v1273 = vadd.f32 %v1267, %v1271
      %v1274 = vadd.f32 %v1268, %v1272
      %v1275 = vld [vmem:[%s290] sm:$0xff]
      %v1276 = vld [vmem:[%s290 + $0x8] sm:$0xff]
      %v1277 = vmul.f32 %v1275, -0.5
      %v1278 = vmul.f32 %v1276, -0.5
      %v1279 = vadd.f32 %v1273, %v1277
      %v1280 = vadd.f32 %v1274, %v1278
      %v1281 = vld [vmem:[%s299] sm:$0xff]
      %v1282 = vld [vmem:[%s299 + $0x8] sm:$0xff]
      %v1283 = vmul.f32 %v1281, 0.6666667
      %v1284 = vmul.f32 %v1282, 0.6666667
      %v1285 = vadd.f32 %v1279, %v1283
      %v1286 = vadd.f32 %v1280, %v1284
      %v1287 = vld [vmem:[%s324] sm:$0xff]
      %v1288 = vld [vmem:[%s324 + $0x8] sm:$0xff]
      %v1289 = vmul.f32 %v1287, -0.083333336
      %v1290 = vmul.f32 %v1288, -0.083333336
      %v1291 = vadd.f32 %v1285, %v1289
      %v1292 = vadd.f32 %v1286, %v1290
      %v1293 = vld [vmem:[%s335] sm:$0xff]
      %v1294 = vld [vmem:[%s335 + $0x8] sm:$0xff]
      %v1295 = vmul.f32 %v1293, 0.16666667
      %v1296 = vmul.f32 %v1294, 0.16666667
      %v1297 = vadd.f32 %v1291, %v1295
      %v1298 = vadd.f32 %v1292, %v1296
      %v1299 = vld [vmem:[%s344] sm:$0xff]
      %v1300 = vld [vmem:[%s344 + $0x8] sm:$0xff]
      %v1301 = vmul.f32 %v1299, -0.16666667
      %v1302 = vmul.f32 %v1300, -0.16666667
      %v1303 = vadd.f32 %v1297, %v1301
      %v1304 = vadd.f32 %v1298, %v1302
      %v1305 = vmax.f32 %v1303, -3.0
      %v1306 = vmax.f32 %v1304, -3.0
      %v1307 = vmin.f32 %v1305, 3.0
      %v1308 = vmin.f32 %v1306, 3.0
      %s1309 = scalar_lea.vmem %s138, 432
      %1310 = vst.msk [vmem:[%s1309] sm:$0xff] %vm144, %v1307
      %1311 = vst.msk [vmem:[%s1309 + $0x8] sm:$0xff] %vm144, %v1308
      %v1312 = vld [vmem:[%s234] sm:$0xff]
      %v1313 = vld [vmem:[%s234 + $0x8] sm:$0xff]
      %v1314 = vmul.f32 %v1312, -0.16666667
      %v1315 = vmul.f32 %v1313, -0.16666667
      %v1316 = vld [vmem:[%s245] sm:$0xff]
      %v1317 = vld [vmem:[%s245 + $0x8] sm:$0xff]
      %v1318 = vmul.f32 %v1316, 0.6666667
      %v1319 = vmul.f32 %v1317, 0.6666667
      %v1320 = vadd.f32 %v1314, %v1318
      %v1321 = vadd.f32 %v1315, %v1319
      %v1322 = vld [vmem:[%s254] sm:$0xff]
      %v1323 = vld [vmem:[%s254 + $0x8] sm:$0xff]
      %v1324 = vsub.f32 %v1320, %v1322
      %v1325 = vsub.f32 %v1321, %v1323
      %v1326 = vld [vmem:[%s263] sm:$0xff]
      %v1327 = vld [vmem:[%s263 + $0x8] sm:$0xff]
      %v1328 = vmul.f32 %v1326, 0.6666667
      %v1329 = vmul.f32 %v1327, 0.6666667
      %v1330 = vadd.f32 %v1324, %v1328
      %v1331 = vadd.f32 %v1325, %v1329
      %v1332 = vld [vmem:[%s272] sm:$0xff]
      %v1333 = vld [vmem:[%s272 + $0x8] sm:$0xff]
      %v1334 = vmul.f32 %v1332, -0.16666667
      %v1335 = vmul.f32 %v1333, -0.16666667
      %v1336 = vadd.f32 %v1330, %v1334
      %v1337 = vadd.f32 %v1331, %v1335
      %v1338 = vld [vmem:[%s279] sm:$0xff]
      %v1339 = vld [vmem:[%s279 + $0x8] sm:$0xff]
      %v1340 = vmul.f32 %v1338, 0.16666667
      %v1341 = vmul.f32 %v1339, 0.16666667
      %v1342 = vadd.f32 %v1336, %v1340
      %v1343 = vadd.f32 %v1337, %v1341
      %v1344 = vld [vmem:[%s290] sm:$0xff]
      %v1345 = vld [vmem:[%s290 + $0x8] sm:$0xff]
      %v1346 = vmul.f32 %v1344, -0.5
      %v1347 = vmul.f32 %v1345, -0.5
      %v1348 = vadd.f32 %v1342, %v1346
      %v1349 = vadd.f32 %v1343, %v1347
      %v1350 = vld [vmem:[%s299] sm:$0xff]
      %v1351 = vld [vmem:[%s299 + $0x8] sm:$0xff]
      %v1352 = vmul.f32 %v1350, 0.6666667
      %v1353 = vmul.f32 %v1351, 0.6666667
      %v1354 = vadd.f32 %v1348, %v1352
      %v1355 = vadd.f32 %v1349, %v1353
      %v1356 = vld [vmem:[%s308] sm:$0xff]
      %v1357 = vld [vmem:[%s308 + $0x8] sm:$0xff]
      %v1358 = vmul.f32 %v1356, -0.5
      %v1359 = vmul.f32 %v1357, -0.5
      %v1360 = vadd.f32 %v1354, %v1358
      %v1361 = vadd.f32 %v1355, %v1359
      %v1362 = vld [vmem:[%s317] sm:$0xff]
      %v1363 = vld [vmem:[%s317 + $0x8] sm:$0xff]
      %v1364 = vmul.f32 %v1362, 0.16666667
      %v1365 = vmul.f32 %v1363, 0.16666667
      %v1366 = vadd.f32 %v1360, %v1364
      %v1367 = vadd.f32 %v1361, %v1365
      %v1368 = vld [vmem:[%s324] sm:$0xff]
      %v1369 = vld [vmem:[%s324 + $0x8] sm:$0xff]
      %v1370 = vmul.f32 %v1368, -0.083333336
      %v1371 = vmul.f32 %v1369, -0.083333336
      %v1372 = vadd.f32 %v1366, %v1370
      %v1373 = vadd.f32 %v1367, %v1371
      %v1374 = vld [vmem:[%s335] sm:$0xff]
      %v1375 = vld [vmem:[%s335 + $0x8] sm:$0xff]
      %v1376 = vmul.f32 %v1374, 0.16666667
      %v1377 = vmul.f32 %v1375, 0.16666667
      %v1378 = vadd.f32 %v1372, %v1376
      %v1379 = vadd.f32 %v1373, %v1377
      %v1380 = vld [vmem:[%s344] sm:$0xff]
      %v1381 = vld [vmem:[%s344 + $0x8] sm:$0xff]
      %v1382 = vmul.f32 %v1380, -0.16666667
      %v1383 = vmul.f32 %v1381, -0.16666667
      %v1384 = vadd.f32 %v1378, %v1382
      %v1385 = vadd.f32 %v1379, %v1383
      %v1386 = vld [vmem:[%s353] sm:$0xff]
      %v1387 = vld [vmem:[%s353 + $0x8] sm:$0xff]
      %v1388 = vmul.f32 %v1386, 0.16666667
      %v1389 = vmul.f32 %v1387, 0.16666667
      %v1390 = vadd.f32 %v1384, %v1388
      %v1391 = vadd.f32 %v1385, %v1389
      %v1392 = vld [vmem:[%s362] sm:$0xff]
      %v1393 = vld [vmem:[%s362 + $0x8] sm:$0xff]
      %v1394 = vmul.f32 %v1392, -0.083333336
      %v1395 = vmul.f32 %v1393, -0.083333336
      %v1396 = vadd.f32 %v1390, %v1394
      %v1397 = vadd.f32 %v1391, %v1395
      %v1398 = vmax.f32 %v1396, -3.0
      %v1399 = vmax.f32 %v1397, -3.0
      %v1400 = vmin.f32 %v1398, 3.0
      %v1401 = vmin.f32 %v1399, 3.0
      %s1402 = scalar_lea.vmem %s138, 448
      %1403 = vst.msk [vmem:[%s1402] sm:$0xff] %vm144, %v1400
      %1404 = vst.msk [vmem:[%s1402 + $0x8] sm:$0xff] %vm144, %v1401
      %v1405 = vld [vmem:[%s164] sm:$0xff]
      %v1406 = vld [vmem:[%s164 + $0x8] sm:$0xff]
      %v1407 = vmul.f32 %v1405, -0.16666667
      %v1408 = vmul.f32 %v1406, -0.16666667
      %v1409 = vld [vmem:[%s173] sm:$0xff]
      %v1410 = vld [vmem:[%s173 + $0x8] sm:$0xff]
      %v1411 = vmul.f32 %v1409, 0.16666667
      %v1412 = vmul.f32 %v1410, 0.16666667
      %v1413 = vadd.f32 %v1407, %v1411
      %v1414 = vadd.f32 %v1408, %v1412
      %v1415 = vld [vmem:[%s182] sm:$0xff]
      %v1416 = vld [vmem:[%s182 + $0x8] sm:$0xff]
      %v1417 = vmul.f32 %v1415, -0.083333336
      %v1418 = vmul.f32 %v1416, -0.083333336
      %v1419 = vadd.f32 %v1413, %v1417
      %v1420 = vadd.f32 %v1414, %v1418
      %v1421 = vld [vmem:[%s209] sm:$0xff]
      %v1422 = vld [vmem:[%s209 + $0x8] sm:$0xff]
      %v1423 = vmul.f32 %v1421, 0.6666667
      %v1424 = vmul.f32 %v1422, 0.6666667
      %v1425 = vadd.f32 %v1419, %v1423
      %v1426 = vadd.f32 %v1420, %v1424
      %v1427 = vld [vmem:[%s218] sm:$0xff]
      %v1428 = vld [vmem:[%s218 + $0x8] sm:$0xff]
      %v1429 = vmul.f32 %v1427, -0.5
      %v1430 = vmul.f32 %v1428, -0.5
      %v1431 = vadd.f32 %v1425, %v1429
      %v1432 = vadd.f32 %v1426, %v1430
      %v1433 = vld [vmem:[%s227] sm:$0xff]
      %v1434 = vld [vmem:[%s227 + $0x8] sm:$0xff]
      %v1435 = vmul.f32 %v1433, 0.16666667
      %v1436 = vmul.f32 %v1434, 0.16666667
      %v1437 = vadd.f32 %v1431, %v1435
      %v1438 = vadd.f32 %v1432, %v1436
      %v1439 = vld [vmem:[%s254] sm:$0xff]
      %v1440 = vld [vmem:[%s254 + $0x8] sm:$0xff]
      %v1441 = vsub.f32 %v1437, %v1439
      %v1442 = vsub.f32 %v1438, %v1440
      %v1443 = vld [vmem:[%s263] sm:$0xff]
      %v1444 = vld [vmem:[%s263 + $0x8] sm:$0xff]
      %v1445 = vmul.f32 %v1443, 0.6666667
      %v1446 = vmul.f32 %v1444, 0.6666667
      %v1447 = vadd.f32 %v1441, %v1445
      %v1448 = vadd.f32 %v1442, %v1446
      %v1449 = vld [vmem:[%s272] sm:$0xff]
      %v1450 = vld [vmem:[%s272 + $0x8] sm:$0xff]
      %v1451 = vmul.f32 %v1449, -0.16666667
      %v1452 = vmul.f32 %v1450, -0.16666667
      %v1453 = vadd.f32 %v1447, %v1451
      %v1454 = vadd.f32 %v1448, %v1452
      %v1455 = vld [vmem:[%s299] sm:$0xff]
      %v1456 = vld [vmem:[%s299 + $0x8] sm:$0xff]
      %v1457 = vmul.f32 %v1455, 0.6666667
      %v1458 = vmul.f32 %v1456, 0.6666667
      %v1459 = vadd.f32 %v1453, %v1457
      %v1460 = vadd.f32 %v1454, %v1458
      %v1461 = vld [vmem:[%s308] sm:$0xff]
      %v1462 = vld [vmem:[%s308 + $0x8] sm:$0xff]
      %v1463 = vmul.f32 %v1461, -0.5
      %v1464 = vmul.f32 %v1462, -0.5
      %v1465 = vadd.f32 %v1459, %v1463
      %v1466 = vadd.f32 %v1460, %v1464
      %v1467 = vld [vmem:[%s317] sm:$0xff]
      %v1468 = vld [vmem:[%s317 + $0x8] sm:$0xff]
      %v1469 = vmul.f32 %v1467, 0.16666667
      %v1470 = vmul.f32 %v1468, 0.16666667
      %v1471 = vadd.f32 %v1465, %v1469
      %v1472 = vadd.f32 %v1466, %v1470
      %v1473 = vld [vmem:[%s344] sm:$0xff]
      %v1474 = vld [vmem:[%s344 + $0x8] sm:$0xff]
      %v1475 = vmul.f32 %v1473, -0.16666667
      %v1476 = vmul.f32 %v1474, -0.16666667
      %v1477 = vadd.f32 %v1471, %v1475
      %v1478 = vadd.f32 %v1472, %v1476
      %v1479 = vld [vmem:[%s353] sm:$0xff]
      %v1480 = vld [vmem:[%s353 + $0x8] sm:$0xff]
      %v1481 = vmul.f32 %v1479, 0.16666667
      %v1482 = vmul.f32 %v1480, 0.16666667
      %v1483 = vadd.f32 %v1477, %v1481
      %v1484 = vadd.f32 %v1478, %v1482
      %v1485 = vld [vmem:[%s362] sm:$0xff]
      %v1486 = vld [vmem:[%s362 + $0x8] sm:$0xff]
      %v1487 = vmul.f32 %v1485, -0.083333336
      %v1488 = vmul.f32 %v1486, -0.083333336
      %v1489 = vadd.f32 %v1483, %v1487
      %v1490 = vadd.f32 %v1484, %v1488
      %v1491 = vmax.f32 %v1489, -3.0
      %v1492 = vmax.f32 %v1490, -3.0
      %v1493 = vmin.f32 %v1491, 3.0
      %v1494 = vmin.f32 %v1492, 3.0
      %s1495 = scalar_lea.vmem %s138, 464
      %1496 = vst.msk [vmem:[%s1495] sm:$0xff] %vm144, %v1493
      %1497 = vst.msk [vmem:[%s1495 + $0x8] sm:$0xff] %vm144, %v1494
      %s1498 = smul.u32 2, %s17
      %p1499 = scmp.lt.s32.totalorder %s16, 1
      %s1500 = scalar_select %p1499, %s16, 1
      %p1501 = scmp.lt.s32.totalorder %s1498, 1
      %s1502 = scalar_select %p1501, %s1498, 1
      %s1503 = smul.addr %s1500, 60
      %s1504 = sadd.s32 %s1502, %s1503
      %s1505 = smul.addr %s1504, 8
      %s1506 = scalar_lea.vmem %s1, %s1505
      // Predicated region
      $region25: #{tpu_custom_call.1} parent=23 // pred_check
        %p1507 = pneg %p70
      $region26: #{tpu_custom_call.1} parent=23 // pred_check_branch
        %1509 = sbr.rel (%p1507) target = $region28
      $region27: #{tpu_custom_call.1} parent=23 // pred_region
        %s1510 = smul.u32 2, %s17
      $region28: #{tpu_custom_call.1} parent=23 // pred_fallthru
        _
    $region24: #{tpu_custom_call.1} parent=5 // pred_fallthru
      _
    %p1511 = scmp.le.s32.totalorder 2, %s7
    // Predicated region
    $region29: #{tpu_custom_call.1} parent=5 // pred_check
      %p1512 = pneg %p1511
    $region30: #{tpu_custom_call.1} parent=5 // pred_check_branch
      %1514 = sbr.rel (%p1512) target = $region32
    $region31: #{tpu_custom_call.1} parent=5 // pred_region
      %s1515 = ssub.s32 %s7, 2
      // Predicated region
      $region33: #{tpu_custom_call.1} parent=31 // pred_check
        %p1516 = pneg %p76
      $region34: #{tpu_custom_call.1} parent=31 // pred_check_branch
        %1518 = sbr.rel (%p1516) target = $region36
      $region35: #{tpu_custom_call.1} parent=31 // pred_region
        %s1519 = smul.u32 2, %s19
        %p1520 = scmp.lt.s32.totalorder %s18, 1
        %s1521 = scalar_select %p1520, %s18, 1
        %p1522 = scmp.lt.s32.totalorder %s1519, 1
        %s1523 = scalar_select %p1522, %s1519, 1
        %s1524 = smul.addr %s1521, 60
        %s1525 = sadd.s32 %s1523, %s1524
        %s1526 = smul.addr %s1525, 8
        %s1527 = scalar_lea.vmem %s1, %s1526
      $region36: #{tpu_custom_call.1} parent=31 // pred_fallthru
        _
    $region32: #{tpu_custom_call.1} parent=5 // pred_fallthru
      _
  $region6: #{tpu_custom_call.1} parent=0 // loop_footer
    %s11 = sadd.s32 1, %s7
  $region7: #{tpu_custom_call.1} parent=0 // loop_footer_branch
    %6 = sbr.rel target = $region3
  $region8: #{tpu_custom_call.1} parent=0 // loop_exit
    _

</llo_original>
